<compile_context>
chip_gen: v7x
topology: tpu7x:2x2x1
jax: 0.10.0
libtpu: 0.0.40
codegen_flags: <defaults>
</compile_context>

<pallas_src>
import functools

import jax
import jax.numpy as jnp
from jax import lax
from jax.experimental import pallas as pl
from jax.experimental.pallas import tpu as pltpu


# ----------------------------------------------------------------------------
# Kernel 1: fused conv1(4x4)+ReLU + conv2(3x3)+ReLU, one sample per grid step.
# ----------------------------------------------------------------------------
def _conv_kernel(x1_ref, w1_ref, b1_ref, w2_ref, b2_ref, o_ref, *, W, R2P):
    # x1_ref: (1, R1P, 16*C) bf16 -- conv1 im2col built in the wrapper.
    # One (R1P,16C)@(16C,32) MXU matmul replaces 16 K=C matmuls.
    a1 = jnp.dot(x1_ref[0], w1_ref[...], preferred_element_type=jnp.float32)
    h1 = jnp.maximum(a1 + b1_ref[...], 0.0).astype(jnp.bfloat16)      # (R1P, 32)

    # conv2 im2col in-kernel: 9 shifted row slices of h1 concatenated along the
    # lane axis -> one (R2P,288)@(288,32) matmul instead of 9 K=32 matmuls.
    pieces = [h1[di * W + dj: di * W + dj + R2P, :]
              for di in range(3) for dj in range(3)]
    x2 = jnp.concatenate(pieces, axis=1)                               # (R2P, 288)
    a2 = jnp.dot(x2, w2_ref[...], preferred_element_type=jnp.float32)
    h2 = jnp.maximum(a2 + b2_ref[...], 0.0)                            # (R2P, 32)

    # Emit h2 in its natural strided row layout (row = oh*W+ow; rows with
    # ow >= OW2 are finite wrap-around garbage).  No compaction / cross-sublane
    # copies; the matching fc1 weight rows are zeroed at init so they add 0.
    o_ref[0] = h2.astype(o_ref.dtype)


# ----------------------------------------------------------------------------
# Kernel 2: fc1(+ReLU) + fc2, K-pipelined (grid axis 1, "arbitrary") and split
# over two 256-wide output halves (grid axis 0, "parallel" -> both TCs on v7x).
# fc2 is a VPU multiply + lane reduction (no 1-lane-wide MXU matmul).
# ----------------------------------------------------------------------------
def _fc_kernel(h_ref, w3_ref, b3_ref, w4_ref, o_ref, acc_ref):
    k = pl.program_id(1)

    @pl.when(k == 0)
    def _():
        acc_ref[...] = jnp.zeros_like(acc_ref)

    acc_ref[...] += jnp.dot(h_ref[...], w3_ref[...],
                            preferred_element_type=jnp.float32)

    @pl.when(k == pl.num_programs(1) - 1)
    def _():
        a = jnp.maximum(acc_ref[...] + b3_ref[...], 0.0)               # fp32
        part = jnp.sum(a * w4_ref[...], axis=1, keepdims=True)         # (N, 1)
        o_ref[0] = part.astype(o_ref.dtype)


# ----------------------------------------------------------------------------
# Parameters: raw PyTorch-layout init + one-time layout/cast preparation.
# ----------------------------------------------------------------------------
def init_v_net_params(key, input_shape):
    C, H, W = input_shape
    k1, k2, k3, k4, k5, k6, k7, k8 = jax.random.split(key, 8)
    OH2, OW2 = H - 5, W - 5
    conv_out = 32 * OH2 * OW2
    return dict(
        w1=0.05 * jax.random.normal(k1, (32, C, 4, 4), jnp.float32),
        b1=0.10 * jax.random.normal(k2, (32,), jnp.float32),
        w2=0.05 * jax.random.normal(k3, (32, 32, 3, 3), jnp.float32),
        b2=0.10 * jax.random.normal(k4, (32,), jnp.float32),
        # fc weights stored as (in, out); fc1 input index uses PyTorch NCHW
        # flatten ordering: c * (OH2*OW2) + oh * OW2 + ow.
        w3=0.02 * jax.random.normal(k5, (conv_out, 512), jnp.float32),
        b3=0.10 * jax.random.normal(k6, (512,), jnp.float32),
        w4=0.02 * jax.random.normal(k7, (512, 1), jnp.float32),
        b4=0.10 * jax.random.normal(k8, (1,), jnp.float32),
    )


def prepare_params(raw, input_shape):
    """One-time weight layout/cast, hoisted out of the forward hot path."""
    C, H, W = input_shape
    OH2, OW2 = H - 5, W - 5
    # conv weights flattened to one matmul each, bf16 (MXU-native).
    w1f = jnp.transpose(raw["w1"], (2, 3, 1, 0)).reshape(16 * C, 32)
    w2f = jnp.transpose(raw["w2"], (2, 3, 1, 0)).reshape(9 * 32, 32)
    # fc1 rows: kernel-2 feature index is (oh*W + ow)*32 + c over the strided
    # conv2 layout (R2P = OH2*W rows).  Permute from the PyTorch order once and
    # zero-pad the ow >= OW2 positions so garbage rows contribute nothing.
    w3_t = jnp.transpose(raw["w3"].reshape(32, OH2, OW2, 512), (1, 2, 0, 3))
    w3_t = jnp.pad(w3_t, ((0, 0), (0, W - OW2), (0, 0), (0, 0)))
    w3p = w3_t.reshape(OH2 * W * 32, 512).astype(jnp.bfloat16)
    return dict(
        w1=w1f.astype(jnp.bfloat16),
        b1=raw["b1"].reshape(1, 32).astype(jnp.float32),
        w2=w2f.astype(jnp.bfloat16),
        b2=raw["b2"].reshape(1, 32).astype(jnp.float32),
        w3=w3p,
        b3=raw["b3"].reshape(1, 512).astype(jnp.float32),
        w4=raw["w4"].reshape(1, 512).astype(jnp.float32),
        b4=raw["b4"].reshape(1, 1).astype(jnp.float32),
    )


# ----------------------------------------------------------------------------
# Forward
# ----------------------------------------------------------------------------
def v_net_forward(p, x_nchw, input_shape, *, fc_k_chunks=4):
    C, H, W = input_shape
    N = x_nchw.shape[0]
    OH2 = H - 5
    R2P = OH2 * W                    # conv2 rows emitted (strided layout, padded)
    R1P = R2P + 2 * W + 2            # conv1 rows needed by conv2's 9 shifts
    HWP = R1P + 3 * W + 3            # x rows needed by conv1's 16 shifts
    F = R2P * 32                     # fc1 contraction length (row-zeroed w3)

    # conv1 im2col in the wrapper: pure layout plumbing (~26 KB/sample) that
    # turns the kernel-1 input into a lane-dense (R1P, 16C) slab.
    x_rows = jnp.transpose(x_nchw, (0, 2, 3, 1)).reshape(N, H * W, C)
    x_rows = x_rows.astype(jnp.bfloat16)
    x_rows = jnp.concatenate(
        [x_rows, jnp.zeros((N, HWP - H * W, C), jnp.bfloat16)], axis=1)
    x1 = jnp.concatenate(
        [x_rows[:, di * W + dj: di * W + dj + R1P, :]
         for di in range(4) for dj in range(4)], axis=-1)          # (N, R1P, 16C)

    conv_kernel = functools.partial(_conv_kernel, W=W, R2P=R2P)
    h2 = pl.pallas_call(
        conv_kernel,
        out_shape=jax.ShapeDtypeStruct((N, R2P, 32), jnp.bfloat16),
        grid=(N,),
        in_specs=[
            pl.BlockSpec((1, R1P, 16 * C), lambda i: (i, 0, 0)),
            pl.BlockSpec((16 * C, 32), lambda i: (0, 0)),
            pl.BlockSpec((1, 32), lambda i: (0, 0)),
            pl.BlockSpec((9 * 32, 32), lambda i: (0, 0)),
            pl.BlockSpec((1, 32), lambda i: (0, 0)),
        ],
        out_specs=pl.BlockSpec((1, R2P, 32), lambda i: (i, 0, 0)),
        compiler_params=pltpu.CompilerParams(
            dimension_semantics=("parallel",)),
    )(x1, p["w1"], p["b1"], p["w2"], p["b2"])

    # Trailing-dim flatten only (cheap in XLA, ~22 KB); the feature order
    # matches the row-permuted / row-zeroed w3 prepared at init.
    h_flat = h2.reshape(N, F)

    NH = 256                              # output half handled per parallel j
    assert F % fc_k_chunks == 0
    KC = F // fc_k_chunks
    assert KC % 128 == 0

    partials = pl.pallas_call(
        _fc_kernel,
        out_shape=jax.ShapeDtypeStruct((2, N, 1), jnp.float32),
        grid=(2, fc_k_chunks),
        in_specs=[
            pl.BlockSpec((N, KC), lambda j, k: (0, k)),
            pl.BlockSpec((KC, NH), lambda j, k: (k, j)),
            pl.BlockSpec((1, NH), lambda j, k: (0, j)),
            pl.BlockSpec((1, NH), lambda j, k: (0, j)),
        ],
        out_specs=pl.BlockSpec((1, N, 1), lambda j, k: (j, 0, 0)),
        scratch_shapes=[pltpu.VMEM((N, NH), jnp.float32)],
        compiler_params=pltpu.CompilerParams(
            dimension_semantics=("parallel", "arbitrary")),
    )(h_flat, p["w3"], p["b3"], p["w4"])

    # Combine the two output halves and add the fc2 bias (scalar epilogue).
    return partials[0] + partials[1] + p["b4"]


# ----------------------------------------------------------------------------
# Pure-JAX fp32 reference (PyTorch semantics) for a loose-tolerance self-check.
# ----------------------------------------------------------------------------
def _reference_forward(raw, x):
    y = lax.conv_general_dilated(x, raw["w1"], (1, 1), "VALID",
                                 dimension_numbers=("NCHW", "OIHW", "NCHW"))
    y = jax.nn.relu(y + raw["b1"][None, :, None, None])
    y = lax.conv_general_dilated(y, raw["w2"], (1, 1), "VALID",
                                 dimension_numbers=("NCHW", "OIHW", "NCHW"))
    y = jax.nn.relu(y + raw["b2"][None, :, None, None])
    y = y.reshape(y.shape[0], -1)                   # NCHW flatten, as in .view
    y = jax.nn.relu(y @ raw["w3"] + raw["b3"])
    return y @ raw["w4"] + raw["b4"]


if __name__ == "__main__":
    input_shape = (4, 16, 16)     # (C, H, W) -> conv_out = 32 * 11 * 11 = 3872
    batch = 2

    key = jax.random.PRNGKey(0)
    kp, kx = jax.random.split(key)
    raw_params = init_v_net_params(kp, input_shape)
    params = prepare_params(raw_params, input_shape)   # one-time layout/cast
    x = jax.random.normal(kx, (batch,) + input_shape, jnp.float32)

    fwd = jax.jit(functools.partial(v_net_forward, input_shape=input_shape))
    y = fwd(params, x)
    jax.block_until_ready(y)
    assert y.shape == (batch, 1), y.shape

    y_ref = _reference_forward(raw_params, x)
    assert jnp.allclose(y, y_ref, rtol=5e-2, atol=5e-2), (y, y_ref)
    print("KERNEL_OK")
</pallas_src>

<mosaic_0001>
module attributes {stable_mosaic.version = 11 : i64} {
  func.func @_conv_kernel(%arg0: i32, %arg1: memref<1x210x64xbf16, #tpu.memory_space<vmem>>, %arg2: memref<64x32xbf16, #tpu.memory_space<vmem>>, %arg3: memref<1x32xf32, #tpu.memory_space<vmem>>, %arg4: memref<288x32xbf16, #tpu.memory_space<vmem>>, %arg5: memref<1x32xf32, #tpu.memory_space<vmem>>, %arg6: memref<1x176x32xbf16, #tpu.memory_space<vmem>>) attributes {dimension_semantics = [#tpu.dimension_semantics<parallel>], iteration_bounds = array<i64: 2>, scalar_prefetch = 0 : i64, scratch_operands = 0 : i64, tpu.core_type = #tpu.core_type<tc>, window_params = [{transform_indices = @transform_0, window_bounds = array<i64: 1, 210, 64>}, {pipeline_mode = #tpu.pipeline_mode<synchronous>, transform_indices = @transform_1, window_bounds = array<i64: 64, 32>}, {pipeline_mode = #tpu.pipeline_mode<synchronous>, transform_indices = @transform_2, window_bounds = array<i64: 1, 32>}, {pipeline_mode = #tpu.pipeline_mode<synchronous>, transform_indices = @transform_3, window_bounds = array<i64: 288, 32>}, {pipeline_mode = #tpu.pipeline_mode<synchronous>, transform_indices = @transform_4, window_bounds = array<i64: 1, 32>}, {transform_indices = @transform_5, window_bounds = array<i64: 1, 176, 32>}]} {
    %c0 = arith.constant 0 : index
    %c0_0 = arith.constant 0 : index
    %c0_1 = arith.constant 0 : index
    %0 = vector.load %arg1[%c0, %c0_0, %c0_1] : memref<1x210x64xbf16, #tpu.memory_space<vmem>>, vector<1x210x64xbf16>
    %1 = vector.shape_cast %0 : vector<1x210x64xbf16> to vector<210x64xbf16>
    %c0_2 = arith.constant 0 : index
    %c0_3 = arith.constant 0 : index
    %2 = vector.load %arg2[%c0_2, %c0_3] : memref<64x32xbf16, #tpu.memory_space<vmem>>, vector<64x32xbf16>
    %cst = arith.constant dense<0.000000e+00> : vector<210x32xf32>
    %3 = tpu.matmul %1, %2, %cst {dimension_numbers = #tpu.dot_dimension_numbers<[1], [0], [0], [1], [0, 0, 1, 1], [], []>} : vector<210x64xbf16>, vector<64x32xbf16>, vector<210x32xf32> -> vector<210x32xf32>
    %c0_4 = arith.constant 0 : index
    %c0_5 = arith.constant 0 : index
    %4 = vector.load %arg3[%c0_4, %c0_5] : memref<1x32xf32, #tpu.memory_space<vmem>>, vector<1x32xf32>
    %5 = vector.broadcast %4 : vector<1x32xf32> to vector<210x32xf32>
    %6 = arith.addf %3, %5 : vector<210x32xf32>
    %cst_6 = arith.constant 0.000000e+00 : f32
    %7 = vector.broadcast %cst_6 : f32 to vector<210x32xf32>
    %8 = arith.maximumf %6, %7 : vector<210x32xf32>
    %9 = arith.truncf %8 : vector<210x32xf32> to vector<210x32xbf16>
    %10 = vector.extract_strided_slice %9 {offsets = [0, 0], sizes = [176, 32], strides = [1, 1]} : vector<210x32xbf16> to vector<176x32xbf16>
    %11 = vector.extract_strided_slice %9 {offsets = [1, 0], sizes = [176, 32], strides = [1, 1]} : vector<210x32xbf16> to vector<176x32xbf16>
    %12 = vector.extract_strided_slice %9 {offsets = [2, 0], sizes = [176, 32], strides = [1, 1]} : vector<210x32xbf16> to vector<176x32xbf16>
    %13 = vector.extract_strided_slice %9 {offsets = [16, 0], sizes = [176, 32], strides = [1, 1]} : vector<210x32xbf16> to vector<176x32xbf16>
    %14 = vector.extract_strided_slice %9 {offsets = [17, 0], sizes = [176, 32], strides = [1, 1]} : vector<210x32xbf16> to vector<176x32xbf16>
    %15 = vector.extract_strided_slice %9 {offsets = [18, 0], sizes = [176, 32], strides = [1, 1]} : vector<210x32xbf16> to vector<176x32xbf16>
    %16 = vector.extract_strided_slice %9 {offsets = [32, 0], sizes = [176, 32], strides = [1, 1]} : vector<210x32xbf16> to vector<176x32xbf16>
    %17 = vector.extract_strided_slice %9 {offsets = [33, 0], sizes = [176, 32], strides = [1, 1]} : vector<210x32xbf16> to vector<176x32xbf16>
    %18 = vector.extract_strided_slice %9 {offsets = [34, 0], sizes = [176, 32], strides = [1, 1]} : vector<210x32xbf16> to vector<176x32xbf16>
    %19 = tpu.concatenate %10, %11, %12, %13, %14, %15, %16, %17, %18 in 1 : vector<176x32xbf16>, vector<176x32xbf16>, vector<176x32xbf16>, vector<176x32xbf16>, vector<176x32xbf16>, vector<176x32xbf16>, vector<176x32xbf16>, vector<176x32xbf16>, vector<176x32xbf16> -> vector<176x288xbf16>
    %c0_7 = arith.constant 0 : index
    %c0_8 = arith.constant 0 : index
    %20 = vector.load %arg4[%c0_7, %c0_8] : memref<288x32xbf16, #tpu.memory_space<vmem>>, vector<288x32xbf16>
    %cst_9 = arith.constant dense<0.000000e+00> : vector<176x32xf32>
    %21 = tpu.matmul %19, %20, %cst_9 {dimension_numbers = #tpu.dot_dimension_numbers<[1], [0], [0], [1], [0, 0, 1, 1], [], []>} : vector<176x288xbf16>, vector<288x32xbf16>, vector<176x32xf32> -> vector<176x32xf32>
    %c0_10 = arith.constant 0 : index
    %c0_11 = arith.constant 0 : index
    %22 = vector.load %arg5[%c0_10, %c0_11] : memref<1x32xf32, #tpu.memory_space<vmem>>, vector<1x32xf32>
    %23 = vector.broadcast %22 : vector<1x32xf32> to vector<176x32xf32>
    %24 = arith.addf %21, %23 : vector<176x32xf32>
    %cst_12 = arith.constant 0.000000e+00 : f32
    %25 = vector.broadcast %cst_12 : f32 to vector<176x32xf32>
    %26 = arith.maximumf %24, %25 : vector<176x32xf32>
    %27 = arith.truncf %26 : vector<176x32xf32> to vector<176x32xbf16>
    %c0_13 = arith.constant 0 : index
    %c0_14 = arith.constant 0 : index
    %c0_15 = arith.constant 0 : index
    %28 = vector.load %arg6[%c0_13, %c0_14, %c0_15] : memref<1x176x32xbf16, #tpu.memory_space<vmem>>, vector<1x176x32xbf16>
    %29 = vector.shape_cast %28 : vector<1x176x32xbf16> to vector<176x32xbf16>
    %30 = vector.shape_cast %27 : vector<176x32xbf16> to vector<1x176x32xbf16>
    tpu.vector_store %arg6[%c0_13, %c0_14, %c0_15], %30 {strides = array<i32>} : memref<1x176x32xbf16, #tpu.memory_space<vmem>>, vector<1x176x32xbf16>,
    return
  }
  func.func @transform_0(%arg0: i32) -> (i32, i32, i32) {
    %c0_i32 = arith.constant 0 : i32
    %c0_i32_0 = arith.constant 0 : i32
    %c0_i32_1 = arith.constant 0 : i32
    return %arg0, %c0_i32, %c0_i32_0 : i32, i32, i32
  }
  func.func @transform_1(%arg0: i32) -> (i32, i32) {
    %c0_i32 = arith.constant 0 : i32
    %c0_i32_0 = arith.constant 0 : i32
    %c0_i32_1 = arith.constant 0 : i32
    return %c0_i32, %c0_i32_0 : i32, i32
  }
  func.func @transform_2(%arg0: i32) -> (i32, i32) {
    %c0_i32 = arith.constant 0 : i32
    %c0_i32_0 = arith.constant 0 : i32
    %c0_i32_1 = arith.constant 0 : i32
    return %c0_i32, %c0_i32_0 : i32, i32
  }
  func.func @transform_3(%arg0: i32) -> (i32, i32) {
    %c0_i32 = arith.constant 0 : i32
    %c0_i32_0 = arith.constant 0 : i32
    %c0_i32_1 = arith.constant 0 : i32
    return %c0_i32, %c0_i32_0 : i32, i32
  }
  func.func @transform_4(%arg0: i32) -> (i32, i32) {
    %c0_i32 = arith.constant 0 : i32
    %c0_i32_0 = arith.constant 0 : i32
    %c0_i32_1 = arith.constant 0 : i32
    return %c0_i32, %c0_i32_0 : i32, i32
  }
  func.func @transform_5(%arg0: i32) -> (i32, i32, i32) {
    %c0_i32 = arith.constant 0 : i32
    %c0_i32_0 = arith.constant 0 : i32
    %c0_i32_1 = arith.constant 0 : i32
    return %arg0, %c0_i32, %c0_i32_0 : i32, i32, i32
  }
}

module attributes {stable_mosaic.version = 11 : i64} {
  func.func @_fc_kernel(%arg0: i32, %arg1: i32, %arg2: memref<2x1408xbf16, #tpu.memory_space<vmem>>, %arg3: memref<1408x256xbf16, #tpu.memory_space<vmem>>, %arg4: memref<1x256xf32, #tpu.memory_space<vmem>>, %arg5: memref<1x256xf32, #tpu.memory_space<vmem>>, %arg6: memref<1x2x1xf32, #tpu.memory_space<vmem>>, %arg7: memref<2x256xf32, #tpu.memory_space<vmem>>) attributes {dimension_semantics = [#tpu.dimension_semantics<parallel>, #tpu.dimension_semantics<arbitrary>], iteration_bounds = array<i64: 2, 4>, scalar_prefetch = 0 : i64, scratch_operands = 1 : i64, tpu.core_type = #tpu.core_type<tc>, window_params = [{transform_indices = @transform_0, window_bounds = array<i64: 2, 1408>}, {transform_indices = @transform_1, window_bounds = array<i64: 1408, 256>}, {transform_indices = @transform_2, window_bounds = array<i64: 1, 256>}, {transform_indices = @transform_3, window_bounds = array<i64: 1, 256>}, {transform_indices = @transform_4, window_bounds = array<i64: 1, 2, 1>}]} {
    %c0_i32 = arith.constant 0 : i32
    %0 = arith.cmpi eq, %arg1, %c0_i32 : i32
    %1 = arith.extui %0 : i1 to i32
    %c0_i32_0 = arith.constant 0 : i32
    %2 = arith.cmpi ne, %1, %c0_i32_0 : i32
    scf.if %2 {
      %cst_9 = arith.constant 0.000000e+00 : f32
      %12 = vector.broadcast %cst_9 : f32 to vector<2x256xf32>
      %c0_10 = arith.constant 0 : index
      %c0_11 = arith.constant 0 : index
      %13 = vector.load %arg7[%c0_10, %c0_11] : memref<2x256xf32, #tpu.memory_space<vmem>>, vector<2x256xf32>
      tpu.vector_store %arg7[%c0_10, %c0_11], %12 {strides = array<i32>} : memref<2x256xf32, #tpu.memory_space<vmem>>, vector<2x256xf32>,
    } else {
    }
    %c0 = arith.constant 0 : index
    %c0_1 = arith.constant 0 : index
    %3 = vector.load %arg7[%c0, %c0_1] : memref<2x256xf32, #tpu.memory_space<vmem>>, vector<2x256xf32>
    %c0_2 = arith.constant 0 : index
    %c0_3 = arith.constant 0 : index
    %4 = vector.load %arg2[%c0_2, %c0_3] : memref<2x1408xbf16, #tpu.memory_space<vmem>>, vector<2x1408xbf16>
    %c0_4 = arith.constant 0 : index
    %c0_5 = arith.constant 0 : index
    %5 = vector.load %arg3[%c0_4, %c0_5] : memref<1408x256xbf16, #tpu.memory_space<vmem>>, vector<1408x256xbf16>
    %cst = arith.constant dense<0.000000e+00> : vector<2x256xf32>
    %6 = tpu.matmul %4, %5, %cst {dimension_numbers = #tpu.dot_dimension_numbers<[1], [0], [0], [1], [0, 0, 1, 1], [], []>} : vector<2x1408xbf16>, vector<1408x256xbf16>, vector<2x256xf32> -> vector<2x256xf32>
    %7 = arith.addf %3, %6 : vector<2x256xf32>
    %c0_6 = arith.constant 0 : index
    %c0_7 = arith.constant 0 : index
    %8 = vector.load %arg7[%c0_6, %c0_7] : memref<2x256xf32, #tpu.memory_space<vmem>>, vector<2x256xf32>
    tpu.vector_store %arg7[%c0_6, %c0_7], %7 {strides = array<i32>} : memref<2x256xf32, #tpu.memory_space<vmem>>, vector<2x256xf32>,
    %c3_i32 = arith.constant 3 : i32
    %9 = arith.cmpi eq, %arg1, %c3_i32 : i32
    %10 = arith.extui %9 : i1 to i32
    %c0_i32_8 = arith.constant 0 : i32
    %11 = arith.cmpi ne, %10, %c0_i32_8 : i32
    scf.if %11 {
      %c0_9 = arith.constant 0 : index
      %c0_10 = arith.constant 0 : index
      %12 = vector.load %arg7[%c0_9, %c0_10] : memref<2x256xf32, #tpu.memory_space<vmem>>, vector<2x256xf32>
      %c0_11 = arith.constant 0 : index
      %c0_12 = arith.constant 0 : index
      %13 = vector.load %arg4[%c0_11, %c0_12] : memref<1x256xf32, #tpu.memory_space<vmem>>, vector<1x256xf32>
      %14 = vector.broadcast %13 : vector<1x256xf32> to vector<2x256xf32>
      %15 = arith.addf %12, %14 : vector<2x256xf32>
      %cst_13 = arith.constant 0.000000e+00 : f32
      %16 = vector.broadcast %cst_13 : f32 to vector<2x256xf32>
      %17 = arith.maximumf %15, %16 : vector<2x256xf32>
      %c0_14 = arith.constant 0 : index
      %c0_15 = arith.constant 0 : index
      %18 = vector.load %arg5[%c0_14, %c0_15] : memref<1x256xf32, #tpu.memory_space<vmem>>, vector<1x256xf32>
      %19 = vector.broadcast %18 : vector<1x256xf32> to vector<2x256xf32>
      %20 = arith.mulf %17, %19 : vector<2x256xf32>
      %cst_16 = arith.constant dense<0.000000e+00> : vector<2xf32>
      %21 = vector.multi_reduction <add>, %20, %cst_16 [1] : vector<2x256xf32> to vector<2xf32>
      %22 = vector.shape_cast %21 : vector<2xf32> to vector<2x1xf32>
      %c0_17 = arith.constant 0 : index
      %c0_18 = arith.constant 0 : index
      %c0_19 = arith.constant 0 : index
      %23 = vector.load %arg6[%c0_17, %c0_18, %c0_19] : memref<1x2x1xf32, #tpu.memory_space<vmem>>, vector<1x2x1xf32>
      %24 = vector.shape_cast %23 : vector<1x2x1xf32> to vector<2x1xf32>
      %25 = vector.shape_cast %22 : vector<2x1xf32> to vector<1x2x1xf32>
      tpu.vector_store %arg6[%c0_17, %c0_18, %c0_19], %25 {strides = array<i32>} : memref<1x2x1xf32, #tpu.memory_space<vmem>>, vector<1x2x1xf32>,
    } else {
    }
    return
  }
  func.func @transform_0(%arg0: i32, %arg1: i32) -> (i32, i32) {
    %c0_i32 = arith.constant 0 : i32
    %c0_i32_0 = arith.constant 0 : i32
    return %c0_i32, %arg1 : i32, i32
  }
  func.func @transform_1(%arg0: i32, %arg1: i32) -> (i32, i32) {
    %c0_i32 = arith.constant 0 : i32
    return %arg1, %arg0 : i32, i32
  }
  func.func @transform_2(%arg0: i32, %arg1: i32) -> (i32, i32) {
    %c0_i32 = arith.constant 0 : i32
    %c0_i32_0 = arith.constant 0 : i32
    return %c0_i32, %arg0 : i32, i32
  }
  func.func @transform_3(%arg0: i32, %arg1: i32) -> (i32, i32) {
    %c0_i32 = arith.constant 0 : i32
    %c0_i32_0 = arith.constant 0 : i32
    return %c0_i32, %arg0 : i32, i32
  }
  func.func @transform_4(%arg0: i32, %arg1: i32) -> (i32, i32, i32) {
    %c0_i32 = arith.constant 0 : i32
    %c0_i32_0 = arith.constant 0 : i32
    %c0_i32_1 = arith.constant 0 : i32
    return %arg0, %c0_i32, %c0_i32_0 : i32, i32, i32
  }
}

</mosaic_0001>

<llo_original>
// kernel: v_net_forward.2
$region0: #{v_net_forward.2}
  #allocation0 [shape = 'u32[]', space=smem, size = 0x4, offset = 0x4, fixed_abs, tag = 'smem constant byte address 0x4 - core index']
  #allocation1 [shape = 'u32[144,128]{1,0:T(1,128)}', space=vmem, size = 0x12000, scoped, tag = 'internal scratch']
  %s0 = inlined_call_operand.vmem [shape: bf16[2,210,64], index: 0, kind: input, shape index: {}]
  %s1 = inlined_call_operand.vmem [shape: bf16[64,32], index: 1, kind: input, shape index: {}]
  %s2 = inlined_call_operand.hbm [shape: f32[1,32], index: 2, kind: input, shape index: {}]
  %s3 = inlined_call_operand.vmem [shape: bf16[288,32], index: 3, kind: input, shape index: {}]
  %s4 = inlined_call_operand.hbm [shape: f32[1,32], index: 4, kind: input, shape index: {}]
  %s5 = inlined_call_operand.vmem [shape: bf16[2,176,32], index: 5, kind: output, shape index: {}]
  %s6 = sld [smem:[#allocation0]]
  $region61: #{v_net_forward.2} parent=0
    _
  %s8 = ssub.s32 1, %s6
  %s9 = scalar_select 0, %s8, %s6
  $region1: #{v_net_forward.2} parent=0
    #allocation2 [shape = 'u8[512]{0}', space=vmem, size = 0x400, scoped, tag = 'input window, operand 2, single buffered']
    #allocation3 [shape = 's32[2]{0}', space=sflag, size = 0x8, scoped, tag = 'scoped memory for v_net_forward.2']
    #allocation4 [shape = 'u8[512]{0}', space=vmem, size = 0x400, scoped, tag = 'input window, operand 4, single buffered']
    #allocation5 [shape = 's32[1]{0}', space=sflag, size = 0x4, scoped, tag = 'scoped memory for v_net_forward.2']
    %10 = vsyncpa [#allocation3], 0
    %11 = vsyncpa [#allocation5], 0
    loop: start=0, step=1, limit=4
    $region2: #{v_net_forward.2} parent=1 // loop_pre_header
      _
    $region3: #{v_net_forward.2} parent=1 // loop_header
      %s13 = sphi 0, %s17
      %p14 = scmp.ge.s32.totalorder %s13, 4
      %s23 = sphi 0, %s25
      %s26 = sphi 0, %s23
      %s27 = sphi 0, %s26
      %s43 = sphi 0, %s27
      %s47 = sphi 0, %s47
      %s49 = sphi 0, %s47
      %s50 = sphi 0, %s49
      %s64 = sphi 0, %s50
      %s68 = sphi 0, %s68
      %s70 = sphi 0, %s68
      %s71 = sphi 0, %s70
      %s85 = sphi 0, %s71
      %s89 = sphi 0, %s89
      %s91 = sphi 0, %s89
      %s92 = sphi 0, %s91
      %s106 = sphi 0, %s92
      %s110 = sphi 0, %s110
      %s112 = sphi 0, %s110
      %s113 = sphi 0, %s112
      %s127 = sphi 0, %s113
      %s133 = sphi 0, %s135
      %s136 = sphi 0, %s133
      %s137 = sphi 0, %s136
      %s153 = sphi 0, %s137
    $region4: #{v_net_forward.2} parent=1 // loop_header_branch
      %16 = sbr.rel (%p14) target = $region8
    $region5: #{v_net_forward.2} parent=1 // loop_body
      %s18 = ssub.s32 %s13, 1
      %s19 = ssub.s32 %s13, 2
      %s20 = sadd.s32 %s13, 1
      %s21 = ssub.s32 %s13, %s20
      %p22 = scmp.eq.s32.totalorder %s21, 0
      %s24 = sadd.s32 %s23, 1
      %s25 = scalar_select %p22, %s23, %s24
      %p28 = pneg %p22
      %p29 = scmp.eq.s32.totalorder %s13, 1
      %p30 = por %p28, %p29
      %p31 = scmp.ne.s32.totalorder %s23, %s26
      %p32 = scmp.eq.s32.totalorder %s13, 0
      %p33 = por %p31, %p32
      %p34 = scmp.ne.s32.totalorder %s23, %s26
      %p35 = scmp.eq.s32.totalorder %s18, 1
      %p36 = por %p34, %p35
      %p37 = scmp.ne.s32.totalorder %s26, %s27
      %p38 = scmp.eq.s32.totalorder %s18, 0
      %p39 = por %p37, %p38
      %p40 = scmp.ne.s32.totalorder %s26, %s27
      %p41 = scmp.eq.s32.totalorder %s19, 1
      %p42 = por %p40, %p41
      %p44 = scmp.ne.s32.totalorder %s27, %s43
      %p45 = scmp.eq.s32.totalorder %s19, 0
      %p46 = por %p44, %p45
      %s48 = sadd.s32 %s47, 1
      %p51 = scmp.eq.s32.totalorder %s13, 1
      %p52 = scmp.ne.s32.totalorder %s47, %s49
      %p53 = scmp.eq.s32.totalorder %s13, 0
      %p54 = por %p52, %p53
      %p55 = scmp.ne.s32.totalorder %s47, %s49
      %p56 = scmp.eq.s32.totalorder %s18, 1
      %p57 = por %p55, %p56
      %p58 = scmp.ne.s32.totalorder %s49, %s50
      %p59 = scmp.eq.s32.totalorder %s18, 0
      %p60 = por %p58, %p59
      %p61 = scmp.ne.s32.totalorder %s49, %s50
      %p62 = scmp.eq.s32.totalorder %s19, 1
      %p63 = por %p61, %p62
      %p65 = scmp.ne.s32.totalorder %s50, %s64
      %p66 = scmp.eq.s32.totalorder %s19, 0
      %p67 = por %p65, %p66
      %s69 = sadd.s32 %s68, 1
      %p72 = scmp.eq.s32.totalorder %s13, 1
      %p73 = scmp.ne.s32.totalorder %s68, %s70
      %p74 = scmp.eq.s32.totalorder %s13, 0
      %p75 = por %p73, %p74
      %p76 = scmp.ne.s32.totalorder %s68, %s70
      %p77 = scmp.eq.s32.totalorder %s18, 1
      %p78 = por %p76, %p77
      %p79 = scmp.ne.s32.totalorder %s70, %s71
      %p80 = scmp.eq.s32.totalorder %s18, 0
      %p81 = por %p79, %p80
      %p82 = scmp.ne.s32.totalorder %s70, %s71
      %p83 = scmp.eq.s32.totalorder %s19, 1
      %p84 = por %p82, %p83
      %p86 = scmp.ne.s32.totalorder %s71, %s85
      %p87 = scmp.eq.s32.totalorder %s19, 0
      %p88 = por %p86, %p87
      %s90 = sadd.s32 %s89, 1
      %p93 = scmp.eq.s32.totalorder %s13, 1
      %p94 = scmp.ne.s32.totalorder %s89, %s91
      %p95 = scmp.eq.s32.totalorder %s13, 0
      %p96 = por %p94, %p95
      %p97 = scmp.ne.s32.totalorder %s89, %s91
      %p98 = scmp.eq.s32.totalorder %s18, 1
      %p99 = por %p97, %p98
      %p100 = scmp.ne.s32.totalorder %s91, %s92
      %p101 = scmp.eq.s32.totalorder %s18, 0
      %p102 = por %p100, %p101
      %p103 = scmp.ne.s32.totalorder %s91, %s92
      %p104 = scmp.eq.s32.totalorder %s19, 1
      %p105 = por %p103, %p104
      %p107 = scmp.ne.s32.totalorder %s92, %s106
      %p108 = scmp.eq.s32.totalorder %s19, 0
      %p109 = por %p107, %p108
      %s111 = sadd.s32 %s110, 1
      %p114 = scmp.eq.s32.totalorder %s13, 1
      %p115 = scmp.ne.s32.totalorder %s110, %s112
      %p116 = scmp.eq.s32.totalorder %s13, 0
      %p117 = por %p115, %p116
      %p118 = scmp.ne.s32.totalorder %s110, %s112
      %p119 = scmp.eq.s32.totalorder %s18, 1
      %p120 = por %p118, %p119
      %p121 = scmp.ne.s32.totalorder %s112, %s113
      %p122 = scmp.eq.s32.totalorder %s18, 0
      %p123 = por %p121, %p122
      %p124 = scmp.ne.s32.totalorder %s112, %s113
      %p125 = scmp.eq.s32.totalorder %s19, 1
      %p126 = por %p124, %p125
      %p128 = scmp.ne.s32.totalorder %s113, %s127
      %p129 = scmp.eq.s32.totalorder %s19, 0
      %p130 = por %p128, %p129
      %s131 = ssub.s32 %s13, %s20
      %p132 = scmp.eq.s32.totalorder %s131, 0
      %s134 = sadd.s32 %s133, 1
      %s135 = scalar_select %p132, %s133, %s134
      %p138 = pneg %p132
      %p139 = scmp.eq.s32.totalorder %s13, 1
      %p140 = por %p138, %p139
      %p141 = scmp.ne.s32.totalorder %s133, %s136
      %p142 = scmp.eq.s32.totalorder %s13, 0
      %p143 = por %p141, %p142
      %p144 = scmp.ne.s32.totalorder %s133, %s136
      %p145 = scmp.eq.s32.totalorder %s18, 1
      %p146 = por %p144, %p145
      %p147 = scmp.ne.s32.totalorder %s136, %s137
      %p148 = scmp.eq.s32.totalorder %s18, 0
      %p149 = por %p147, %p148
      %p150 = scmp.ne.s32.totalorder %s136, %s137
      %p151 = scmp.eq.s32.totalorder %s19, 1
      %p152 = por %p150, %p151
      %p154 = scmp.ne.s32.totalorder %s137, %s153
      %p155 = scmp.eq.s32.totalorder %s19, 0
      %p156 = por %p154, %p155
      %p157 = scmp.le.s32.totalorder 1, %s13
      %p158 = scmp.lt.s32.totalorder %s13, 3
      %p159 = pnand %p157, %p158
      %p160 = pneg %p159
      // Predicated region
      $region9: #{v_net_forward.2} parent=5 // pred_check
        _
      $region10: #{v_net_forward.2} parent=5 // pred_check_branch
        %162 = sbr.rel (%p159) target = $region12
      $region11: #{v_net_forward.2} parent=5 // pred_region
        %s163 = ssub.s32 %s13, 1
        // Predicated region
        $region13: #{v_net_forward.2} parent=11 // pred_check
          %p164 = pneg %p60
        $region14: #{v_net_forward.2} parent=11 // pred_check_branch
          %166 = sbr.rel (%p164) target = $region16
        $region15: #{v_net_forward.2} parent=11 // pred_region
          _
        $region16: #{v_net_forward.2} parent=11 // pred_fallthru
          _
        // Predicated region
        $region17: #{v_net_forward.2} parent=11 // pred_check
          %p167 = pneg %p81
        $region18: #{v_net_forward.2} parent=11 // pred_check_branch
          %169 = sbr.rel (%p167) target = $region20
        $region19: #{v_net_forward.2} parent=11 // pred_region
          %s171 = ssub.s32 16, 16
          %172 = vsyncadd [#allocation3], %s171
          %s174 = sshll.u32 [#allocation2], 4
          %s175 = int_to_ptr.vmem [resolvable:$true] %s174
          %177 = dma.hbm_to_vmem [thread:$0]  %s2, 16, %s175, [#allocation3]
        $region20: #{v_net_forward.2} parent=11 // pred_fallthru
          _
        // Predicated region
        $region21: #{v_net_forward.2} parent=11 // pred_check
          %p178 = pneg %p102
        $region22: #{v_net_forward.2} parent=11 // pred_check_branch
          %180 = sbr.rel (%p178) target = $region24
        $region23: #{v_net_forward.2} parent=11 // pred_region
          _
        $region24: #{v_net_forward.2} parent=11 // pred_fallthru
          _
        // Predicated region
        $region25: #{v_net_forward.2} parent=11 // pred_check
          %p181 = pneg %p123
        $region26: #{v_net_forward.2} parent=11 // pred_check_branch
          %183 = sbr.rel (%p181) target = $region28
        $region27: #{v_net_forward.2} parent=11 // pred_region
          %s185 = ssub.s32 16, 16
          %186 = vsyncadd [#allocation5], %s185
          %s188 = sshll.u32 [#allocation4], 4
          %s189 = int_to_ptr.vmem [resolvable:$true] %s188
          %191 = dma.hbm_to_vmem [thread:$0]  %s4, 16, %s189, [#allocation5]
        $region28: #{v_net_forward.2} parent=11 // pred_fallthru
          _
      $region12: #{v_net_forward.2} parent=5 // pred_fallthru
        _
      %p192 = scmp.lt.s32.totalorder %s13, 2
      // Predicated region
      $region29: #{v_net_forward.2} parent=5 // pred_check
        %p193 = pneg %p192
      $region30: #{v_net_forward.2} parent=5 // pred_check_branch
        %195 = sbr.rel (%p193) target = $region32
      $region31: #{v_net_forward.2} parent=5 // pred_region
        // Predicated region
        $region33: #{v_net_forward.2} parent=31 // pred_check
          %p196 = pneg %p33
        $region34: #{v_net_forward.2} parent=31 // pred_check_branch
          %198 = sbr.rel (%p196) target = $region36
        $region35: #{v_net_forward.2} parent=31 // pred_region
          %p199 = scmp.lt.s32.totalorder %s13, 1
          %s200 = scalar_select %p199, %s13, 1
          %s201 = smul.addr %s200, 27
          %s202 = smul.addr %s201, 4
          %s203 = scalar_lea.vmem %s0, %s202
        $region36: #{v_net_forward.2} parent=31 // pred_fallthru
          _
      $region32: #{v_net_forward.2} parent=5 // pred_fallthru
        _
      %p204 = scmp.le.s32.totalorder 1, %s13
      %p205 = scmp.lt.s32.totalorder %s13, 3
      %p206 = pnand %p204, %p205
      %p207 = pneg %p206
      // Predicated region
      $region37: #{v_net_forward.2} parent=5 // pred_check
        _
      $region38: #{v_net_forward.2} parent=5 // pred_check_branch
        %209 = sbr.rel (%p206) target = $region40
      $region39: #{v_net_forward.2} parent=5 // pred_region
        %s210 = ssub.s32 %s13, 1
        // Predicated region
        $region41: #{v_net_forward.2} parent=39 // pred_check
          %p211 = pneg %p81
        $region42: #{v_net_forward.2} parent=39 // pred_check_branch
          %213 = sbr.rel (%p211) target = $region44
        $region43: #{v_net_forward.2} parent=39 // pred_region
          %214 = dma.done [#allocation3], 16
        $region44: #{v_net_forward.2} parent=39 // pred_fallthru
          _
        // Predicated region
        $region45: #{v_net_forward.2} parent=39 // pred_check
          %p215 = pneg %p123
        $region46: #{v_net_forward.2} parent=39 // pred_check_branch
          %217 = sbr.rel (%p215) target = $region48
        $region47: #{v_net_forward.2} parent=39 // pred_region
          %218 = dma.done [#allocation5], 16
        $region48: #{v_net_forward.2} parent=39 // pred_fallthru
          _
        %p219 = scmp.lt.s32.totalorder %s18, 1
        %s220 = scalar_select %p219, %s18, 1
        %s221 = smul.addr %s220, 27
        %s222 = smul.addr %s221, 4
        %s223 = scalar_lea.vmem %s0, %s222
        %p224 = pneg %p39
        %p225 = pneg %p36
        %p226 = pneg %p60
        %p227 = pneg %p57
        %p228 = pneg %p81
        %p229 = pneg %p78
        %p230 = pneg %p102
        %p231 = pneg %p99
        %p232 = pneg %p123
        %p233 = pneg %p120
        %p234 = pneg %p149
        %p235 = pneg %p146
        %p236 = scmp.lt.s32.totalorder %s18, 1
        %s237 = scalar_select %p236, %s18, 1
        %s238 = smul.addr %s237, 22
        %s239 = smul.addr %s238, 4
        %s240 = scalar_lea.vmem %s5, %s239
        %p241 = scmp.lt.s32.totalorder %s18, 1
        %s242 = scalar_select %p241, %s18, 1
        %s243 = smul.addr %s242, 27
        %s244 = smul.addr %s243, 4
        %s245 = scalar_lea.vmem %s0, %s244
        %p246 = scmp.lt.s32.totalorder %s18, 1
        %s247 = scalar_select %p246, %s18, 1
        %s248 = smul.addr %s247, 22
        %s249 = smul.addr %s248, 4
        %s250 = scalar_lea.vmem %s5, %s249
        %v252 = vld [vmem:[%s245] sm:$0xf]
        %v253 = vld [vmem:[%s245 + $0x4] sm:$0xf]
        %v254 = vld [vmem:[%s245 + $0x8] sm:$0xf]
        %v255 = vld [vmem:[%s245 + $0xc] sm:$0xf]
        %v256 = vld [vmem:[%s245 + $0x10] sm:$0xf]
        %v257 = vld [vmem:[%s245 + $0x14] sm:$0xf]
        %v258 = vld [vmem:[%s245 + $0x18] sm:$0xf]
        %v259 = vld [vmem:[%s245 + $0x1c] sm:$0xf]
        %v260 = vld [vmem:[%s245 + $0x20] sm:$0xf]
        %v261 = vld [vmem:[%s245 + $0x24] sm:$0xf]
        %v262 = vld [vmem:[%s245 + $0x28] sm:$0xf]
        %v263 = vld [vmem:[%s245 + $0x2c] sm:$0xf]
        %v264 = vld [vmem:[%s245 + $0x30] sm:$0xf]
        %v265 = vld [vmem:[%s245 + $0x34] sm:$0xf]
        %v266 = vld [vmem:[%s245 + $0x38] sm:$0xf]
        %v267 = vld [vmem:[%s245 + $0x3c] sm:$0xf]
        %v268 = vld [vmem:[%s245 + $0x40] sm:$0xf]
        %v269 = vld [vmem:[%s245 + $0x44] sm:$0xf]
        %v270 = vld [vmem:[%s245 + $0x48] sm:$0xf]
        %v271 = vld [vmem:[%s245 + $0x4c] sm:$0xf]
        %v272 = vld [vmem:[%s245 + $0x50] sm:$0xf]
        %v273 = vld [vmem:[%s245 + $0x54] sm:$0xf]
        %v274 = vld [vmem:[%s245 + $0x58] sm:$0xf]
        %v275 = vld [vmem:[%s245 + $0x5c] sm:$0xf]
        %v276 = vld [vmem:[%s245 + $0x60] sm:$0xf]
        %v277 = vld [vmem:[%s245 + $0x64] sm:$0xf]
        %v278 = vld [vmem:[%s245 + $0x68] sm:$0x1]
        %v279 = vld [vmem:[%s1] sm:$0xf]
        %v280 = vld [vmem:[%s1 + $0x4] sm:$0xf]
        %v281 = vld [vmem:[%s1 + $0x8] sm:$0xf]
        %v282 = vld [vmem:[%s1 + $0xc] sm:$0xf]
        %v283 = vld [vmem:[%s1 + $0x10] sm:$0xf]
        %v284 = vld [vmem:[%s1 + $0x14] sm:$0xf]
        %v285 = vld [vmem:[%s1 + $0x18] sm:$0xf]
        %v286 = vld [vmem:[%s1 + $0x1c] sm:$0xf]
        %v287 = vld [vmem:[#allocation2] sm:$0x1]
        %v289 = vlaneseq
        %v290 = vshrl.u32 %v289, 7
        %v291 = vsub.s32 0, %v290
        %v292 = vrot.slane %v287, %v291
        %v321 = vunpack.c.l.b16 %v252
        %v322 = vunpack.c.l.b16 %v253
        %v323 = vunpack.c.l.b16 %v254
        %v324 = vunpack.c.l.b16 %v255
        %v325 = vunpack.c.l.b16 %v256
        %v326 = vunpack.c.l.b16 %v257
        %v327 = vunpack.c.l.b16 %v258
        %v328 = vunpack.c.l.b16 %v259
        %v329 = vunpack.c.l.b16 %v260
        %v330 = vunpack.c.l.b16 %v261
        %v331 = vunpack.c.l.b16 %v262
        %v332 = vunpack.c.l.b16 %v263
        %v333 = vunpack.c.l.b16 %v264
        %v334 = vunpack.c.l.b16 %v265
        %v335 = vunpack.c.l.b16 %v266
        %v336 = vunpack.c.l.b16 %v267
        %v337 = vunpack.c.l.b16 %v268
        %v338 = vunpack.c.l.b16 %v269
        %v339 = vunpack.c.l.b16 %v270
        %v340 = vunpack.c.l.b16 %v271
        %v341 = vunpack.c.l.b16 %v272
        %v342 = vunpack.c.l.b16 %v273
        %v343 = vunpack.c.l.b16 %v274
        %v344 = vunpack.c.l.b16 %v275
        %v345 = vunpack.c.l.b16 %v276
        %v346 = vunpack.c.l.b16 %v277
        %v347 = vunpack.c.l.b16 %v278
        %v348 = vpack.c.b16 %v322, %v321
        %v349 = vpack.c.b16 %v324, %v323
        %v350 = vpack.c.b16 %v326, %v325
        %v351 = vpack.c.b16 %v328, %v327
        %v352 = vpack.c.b16 %v330, %v329
        %v353 = vpack.c.b16 %v332, %v331
        %v354 = vpack.c.b16 %v334, %v333
        %v355 = vpack.c.b16 %v336, %v335
        %v356 = vpack.c.b16 %v338, %v337
        %v357 = vpack.c.b16 %v340, %v339
        %v358 = vpack.c.b16 %v342, %v341
        %v359 = vpack.c.b16 %v344, %v343
        %v360 = vpack.c.b16 %v346, %v345
        %v361 = vpack.c.b16 %v347, %v347
        %v370 = vunpack.c.l.b16 %v279
        %v371 = vunpack.c.l.b16 %v280
        %v372 = vunpack.c.l.b16 %v281
        %v373 = vunpack.c.l.b16 %v282
        %v374 = vunpack.c.l.b16 %v283
        %v375 = vunpack.c.l.b16 %v284
        %v376 = vunpack.c.l.b16 %v285
        %v377 = vunpack.c.l.b16 %v286
        %v378 = vpack.c.b16 %v371, %v370
        %v379 = vpack.c.b16 %v373, %v372
        %v380 = vpack.c.b16 %v375, %v374
        %v381 = vpack.c.b16 %v377, %v376
        %vm386 = vcmask 523264
        %v388 = vsel %vm386, %v348, 0
        %v391 = vsel %vm386, %v349, 0
        %v394 = vsel %vm386, %v350, 0
        %v397 = vsel %vm386, %v351, 0
        %v400 = vsel %vm386, %v352, 0
        %v403 = vsel %vm386, %v353, 0
        %v406 = vsel %vm386, %v354, 0
        %v409 = vsel %vm386, %v355, 0
        %v412 = vsel %vm386, %v356, 0
        %v415 = vsel %vm386, %v357, 0
        %v418 = vsel %vm386, %v358, 0
        %v421 = vsel %vm386, %v359, 0
        %v424 = vsel %vm386, %v360, 0
        %v427 = vsel %vm386, %v361, 0
        %429 = vmatprep.subr.bf16.mxu0 0
        %430 = vmatpush1.bf16.msra.mxu0 %v378
        %431 = vmatprep.subr.bf16.mxu0 0
        %432 = vmatpush1.bf16.msra.mxu0 %v379
        %433 = vmatprep.subr.bf16.mxu0 0
        %434 = vmatpush1.bf16.msra.mxu0 %v380
        %435 = vmatprep.subr.bf16.mxu0 0
        %436 = vmatpush1.bf16.msra.mxu0 %v381
        %437 = vmatprep.subr.bf16.mxu0 0
        %438 = vmatpush1.bf16.msra.mxu0 0
        %439 = vmatprep.subr.bf16.mxu0 0
        %440 = vmatpush1.bf16.msra.mxu0 0
        %441 = vmatprep.subr.bf16.mxu0 0
        %442 = vmatpush1.bf16.msra.mxu0 0
        %443 = vmatprep.subr.bf16.mxu0 0
        %444 = vmatpush1.bf16.msra.mxu0 0
        %445 = vmatprep.subr.bf16.mxu0 0
        %446 = vmatpush1.bf16.msra.mxu0 0
        %447 = vmatprep.subr.bf16.mxu0 0
        %448 = vmatpush1.bf16.msra.mxu0 0
        %449 = vmatprep.subr.bf16.mxu0 0
        %450 = vmatpush1.bf16.msra.mxu0 0
        %451 = vmatprep.subr.bf16.mxu0 0
        %452 = vmatpush1.bf16.msra.mxu0 0
        %453 = vmatprep.subr.bf16.mxu0 0
        %454 = vmatpush1.bf16.msra.mxu0 0
        %455 = vmatprep.subr.bf16.mxu0 0
        %456 = vmatpush1.bf16.msra.mxu0 0
        %457 = vmatprep.subr.bf16.mxu0 0
        %458 = vmatpush1.bf16.msra.mxu0 0
        %459 = vmatprep.subr.bf16.mxu0 0
        %460 = vmatpush1.bf16.msra.mxu0 0
        %461 = vmatprep.mubr.bf16.mxu0 0
        %462 = vmatmul.mubr.bf16.gmra.mrb[0].mxu0 %v388
        %v463 = vpop.f32.mrb[0].mxu0
        %v464 = vadd.f32 %v292, %v463
        %v465 = vpop.f32.mrb[0].mxu0
        %v466 = vpop.f32.mrb[0].mxu0
        %v467 = vadd.f32 %v292, %v466
        %v468 = vpop.f32.mrb[0].mxu0
        %469 = vmatprep.mubr.bf16.mxu0 0
        %470 = vmatmul.mubr.bf16.gmra.mrb[0].mxu0 %v391
        %v471 = vpop.f32.mrb[0].mxu0
        %v472 = vadd.f32 %v292, %v471
        %v473 = vpop.f32.mrb[0].mxu0
        %v474 = vpop.f32.mrb[0].mxu0
        %v475 = vadd.f32 %v292, %v474
        %v476 = vpop.f32.mrb[0].mxu0
        %477 = vmatprep.mubr.bf16.mxu0 0
        %478 = vmatmul.mubr.bf16.gmra.mrb[0].mxu0 %v394
        %v479 = vpop.f32.mrb[0].mxu0
        %v480 = vadd.f32 %v292, %v479
        %v481 = vpop.f32.mrb[0].mxu0
        %v482 = vpop.f32.mrb[0].mxu0
        %v483 = vadd.f32 %v292, %v482
        %v484 = vpop.f32.mrb[0].mxu0
        %485 = vmatprep.mubr.bf16.mxu0 0
        %486 = vmatmul.mubr.bf16.gmra.mrb[0].mxu0 %v397
        %v487 = vpop.f32.mrb[0].mxu0
        %v488 = vadd.f32 %v292, %v487
        %v489 = vpop.f32.mrb[0].mxu0
        %v490 = vpop.f32.mrb[0].mxu0
        %v491 = vadd.f32 %v292, %v490
        %v492 = vpop.f32.mrb[0].mxu0
        %493 = vmatprep.mubr.bf16.mxu0 0
        %494 = vmatmul.mubr.bf16.gmra.mrb[0].mxu0 %v400
        %v495 = vpop.f32.mrb[0].mxu0
        %v496 = vadd.f32 %v292, %v495
        %v497 = vpop.f32.mrb[0].mxu0
        %v498 = vpop.f32.mrb[0].mxu0
        %v499 = vadd.f32 %v292, %v498
        %v500 = vpop.f32.mrb[0].mxu0
        %501 = vmatprep.mubr.bf16.mxu0 0
        %502 = vmatmul.mubr.bf16.gmra.mrb[0].mxu0 %v403
        %v503 = vpop.f32.mrb[0].mxu0
        %v504 = vadd.f32 %v292, %v503
        %v505 = vpop.f32.mrb[0].mxu0
        %v506 = vpop.f32.mrb[0].mxu0
        %v507 = vadd.f32 %v292, %v506
        %v508 = vpop.f32.mrb[0].mxu0
        %509 = vmatprep.mubr.bf16.mxu0 0
        %510 = vmatmul.mubr.bf16.gmra.mrb[0].mxu0 %v406
        %v511 = vpop.f32.mrb[0].mxu0
        %v512 = vadd.f32 %v292, %v511
        %v513 = vpop.f32.mrb[0].mxu0
        %v514 = vpop.f32.mrb[0].mxu0
        %v515 = vadd.f32 %v292, %v514
        %v516 = vpop.f32.mrb[0].mxu0
        %517 = vmatprep.mubr.bf16.mxu0 0
        %518 = vmatmul.mubr.bf16.gmra.mrb[0].mxu0 %v409
        %v519 = vpop.f32.mrb[0].mxu0
        %v520 = vadd.f32 %v292, %v519
        %v521 = vpop.f32.mrb[0].mxu0
        %v522 = vpop.f32.mrb[0].mxu0
        %v523 = vadd.f32 %v292, %v522
        %v524 = vpop.f32.mrb[0].mxu0
        %525 = vmatprep.mubr.bf16.mxu0 0
        %526 = vmatmul.mubr.bf16.gmra.mrb[0].mxu0 %v412
        %v527 = vpop.f32.mrb[0].mxu0
        %v528 = vadd.f32 %v292, %v527
        %v529 = vpop.f32.mrb[0].mxu0
        %v530 = vpop.f32.mrb[0].mxu0
        %v531 = vadd.f32 %v292, %v530
        %v532 = vpop.f32.mrb[0].mxu0
        %533 = vmatprep.mubr.bf16.mxu0 0
        %534 = vmatmul.mubr.bf16.gmra.mrb[0].mxu0 %v415
        %v535 = vpop.f32.mrb[0].mxu0
        %v536 = vadd.f32 %v292, %v535
        %v537 = vpop.f32.mrb[0].mxu0
        %v538 = vpop.f32.mrb[0].mxu0
        %v539 = vadd.f32 %v292, %v538
        %v540 = vpop.f32.mrb[0].mxu0
        %541 = vmatprep.mubr.bf16.mxu0 0
        %542 = vmatmul.mubr.bf16.gmra.mrb[0].mxu0 %v418
        %v543 = vpop.f32.mrb[0].mxu0
        %v544 = vadd.f32 %v292, %v543
        %v545 = vpop.f32.mrb[0].mxu0
        %v546 = vpop.f32.mrb[0].mxu0
        %v547 = vadd.f32 %v292, %v546
        %v548 = vpop.f32.mrb[0].mxu0
        %549 = vmatprep.mubr.bf16.mxu0 0
        %550 = vmatmul.mubr.bf16.gmra.mrb[0].mxu0 %v421
        %v551 = vpop.f32.mrb[0].mxu0
        %v552 = vadd.f32 %v292, %v551
        %v553 = vpop.f32.mrb[0].mxu0
        %v554 = vpop.f32.mrb[0].mxu0
        %v555 = vadd.f32 %v292, %v554
        %v556 = vpop.f32.mrb[0].mxu0
        %557 = vmatprep.mubr.bf16.mxu0 0
        %558 = vmatmul.mubr.bf16.gmra.mrb[0].mxu0 %v424
        %v559 = vpop.f32.mrb[0].mxu0
        %v560 = vadd.f32 %v292, %v559
        %v561 = vpop.f32.mrb[0].mxu0
        %v562 = vpop.f32.mrb[0].mxu0
        %v563 = vadd.f32 %v292, %v562
        %v564 = vpop.f32.mrb[0].mxu0
        %565 = vmatprep.mubr.bf16.mxu0 0
        %566 = vmatmul.mubr.bf16.gmra.mrb[0].mxu0 %v427
        %v567 = vpop.f32.mrb[0].mxu0
        %v568 = vadd.f32 %v292, %v567
        %v569 = vpop.f32.mrb[0].mxu0
        %v570 = vpop.f32.mrb[0].mxu0
        %v571 = vpop.f32.mrb[0].mxu0
        %572 = vdwg.mxu0
        %v573 = vmax.f32 %v464, 0.0
        %v574 = vmax.f32 %v467, 0.0
        %v575 = vmax.f32 %v472, 0.0
        %v576 = vmax.f32 %v475, 0.0
        %v577 = vmax.f32 %v480, 0.0
        %v578 = vmax.f32 %v483, 0.0
        %v579 = vmax.f32 %v488, 0.0
        %v580 = vmax.f32 %v491, 0.0
        %v581 = vmax.f32 %v496, 0.0
        %v582 = vmax.f32 %v499, 0.0
        %v583 = vmax.f32 %v504, 0.0
        %v584 = vmax.f32 %v507, 0.0
        %v585 = vmax.f32 %v512, 0.0
        %v586 = vmax.f32 %v515, 0.0
        %v587 = vmax.f32 %v520, 0.0
        %v588 = vmax.f32 %v523, 0.0
        %v589 = vmax.f32 %v528, 0.0
        %v590 = vmax.f32 %v531, 0.0
        %v591 = vmax.f32 %v536, 0.0
        %v592 = vmax.f32 %v539, 0.0
        %v593 = vmax.f32 %v544, 0.0
        %v594 = vmax.f32 %v547, 0.0
        %v595 = vmax.f32 %v552, 0.0
        %v596 = vmax.f32 %v555, 0.0
        %v597 = vmax.f32 %v560, 0.0
        %v598 = vmax.f32 %v563, 0.0
        %v599 = vmax.f32 %v568, 0.0
        %v600 = vpack.c.bf16 %v574, %v573
        %v601 = vpack.c.bf16 %v576, %v575
        %v602 = vpack.c.bf16 %v578, %v577
        %v603 = vpack.c.bf16 %v580, %v579
        %v604 = vpack.c.bf16 %v582, %v581
        %v605 = vpack.c.bf16 %v584, %v583
        %v606 = vpack.c.bf16 %v586, %v585
        %v607 = vpack.c.bf16 %v588, %v587
        %v608 = vpack.c.bf16 %v590, %v589
        %v609 = vpack.c.bf16 %v592, %v591
        %v610 = vpack.c.bf16 %v594, %v593
        %v611 = vpack.c.bf16 %v596, %v595
        %v612 = vpack.c.bf16 %v598, %v597
        %v613 = vpack.c.bf16 %v599, %v599
        %vm614 = vsmask.f32 7424
        %v616 = vshrl.u32 %v600, 16
        %v618 = vshll.u32 %v600, 16
        %v620 = vrot.slane %v618, 1
        %v621 = vor.u32 %v616, %v620
        %v623 = vshll.u32 %v601, 16
        %v625 = vrot.slane %v623, 1
        %v626 = vsel %vm614, %v621, %v625
        %v627 = vshrl.u32 %v601, 16
        %v629 = vor.u32 %v627, %v625
        %v631 = vshll.u32 %v602, 16
        %v633 = vrot.slane %v631, 1
        %v634 = vsel %vm614, %v629, %v633
        %v635 = vshrl.u32 %v602, 16
        %v637 = vor.u32 %v635, %v633
        %v639 = vshll.u32 %v603, 16
        %v641 = vrot.slane %v639, 1
        %v642 = vsel %vm614, %v637, %v641
        %v643 = vshrl.u32 %v603, 16
        %v645 = vor.u32 %v643, %v641
        %v647 = vshll.u32 %v604, 16
        %v649 = vrot.slane %v647, 1
        %v650 = vsel %vm614, %v645, %v649
        %v651 = vshrl.u32 %v604, 16
        %v653 = vor.u32 %v651, %v649
        %v655 = vshll.u32 %v605, 16
        %v657 = vrot.slane %v655, 1
        %v658 = vsel %vm614, %v653, %v657
        %v659 = vshrl.u32 %v605, 16
        %v661 = vor.u32 %v659, %v657
        %v663 = vshll.u32 %v606, 16
        %v665 = vrot.slane %v663, 1
        %v666 = vsel %vm614, %v661, %v665
        %v667 = vshrl.u32 %v606, 16
        %v669 = vor.u32 %v667, %v665
        %v671 = vshll.u32 %v607, 16
        %v673 = vrot.slane %v671, 1
        %v674 = vsel %vm614, %v669, %v673
        %v675 = vshrl.u32 %v607, 16
        %v677 = vor.u32 %v675, %v673
        %v679 = vshll.u32 %v608, 16
        %v681 = vrot.slane %v679, 1
        %v682 = vsel %vm614, %v677, %v681
        %v683 = vshrl.u32 %v608, 16
        %v685 = vor.u32 %v683, %v681
        %v687 = vshll.u32 %v609, 16
        %v689 = vrot.slane %v687, 1
        %v690 = vsel %vm614, %v685, %v689
        %v691 = vshrl.u32 %v609, 16
        %v693 = vor.u32 %v691, %v689
        %v695 = vshll.u32 %v610, 16
        %v697 = vrot.slane %v695, 1
        %v698 = vsel %vm614, %v693, %v697
        %v699 = vshrl.u32 %v610, 16
        %v701 = vor.u32 %v699, %v697
        %v703 = vshll.u32 %v611, 16
        %v705 = vrot.slane %v703, 1
        %v706 = vsel %vm614, %v701, %v705
        %707 = vrot.lane.b32.xlu0 %v626, 32
        %v708 = vpop.permute.xlu0 %707
        %709 = vrot.lane.b32.xlu0 %v634, 32
        %v710 = vpop.permute.xlu0 %709
        %711 = vrot.lane.b32.xlu0 %v642, 32
        %v712 = vpop.permute.xlu0 %711
        %713 = vrot.lane.b32.xlu0 %v650, 32
        %v714 = vpop.permute.xlu0 %713
        %715 = vrot.lane.b32.xlu0 %v658, 32
        %v716 = vpop.permute.xlu0 %715
        %717 = vrot.lane.b32.xlu0 %v666, 32
        %v718 = vpop.permute.xlu0 %717
        %719 = vrot.lane.b32.xlu0 %v674, 32
        %v720 = vpop.permute.xlu0 %719
        %721 = vrot.lane.b32.xlu0 %v682, 32
        %v722 = vpop.permute.xlu0 %721
        %723 = vrot.lane.b32.xlu0 %v690, 32
        %v724 = vpop.permute.xlu0 %723
        %725 = vrot.lane.b32.xlu0 %v698, 32
        %v726 = vpop.permute.xlu0 %725
        %727 = vrot.lane.b32.xlu0 %v706, 32
        %v728 = vpop.permute.xlu0 %727
        %vm741 = vcmask 1046528
        %v742 = vrot.slane %v600, 1
        %v743 = vrot.slane %v601, 1
        %v744 = vsel %vm741, %v742, %v743
        %v745 = vrot.slane %v602, 1
        %v746 = vsel %vm741, %v743, %v745
        %v747 = vrot.slane %v603, 1
        %v748 = vsel %vm741, %v745, %v747
        %v749 = vrot.slane %v604, 1
        %v750 = vsel %vm741, %v747, %v749
        %v751 = vrot.slane %v605, 1
        %v752 = vsel %vm741, %v749, %v751
        %v753 = vrot.slane %v606, 1
        %v754 = vsel %vm741, %v751, %v753
        %v755 = vrot.slane %v607, 1
        %v756 = vsel %vm741, %v753, %v755
        %v757 = vrot.slane %v608, 1
        %v758 = vsel %vm741, %v755, %v757
        %v759 = vrot.slane %v609, 1
        %v760 = vsel %vm741, %v757, %v759
        %v761 = vrot.slane %v610, 1
        %v762 = vsel %vm741, %v759, %v761
        %v763 = vrot.slane %v611, 1
        %v764 = vsel %vm741, %v761, %v763
        %765 = vrot.lane.b32.xlu0 %v744, 64
        %v766 = vpop.permute.xlu0 %765
        %767 = vrot.lane.b32.xlu0 %v746, 64
        %v768 = vpop.permute.xlu0 %767
        %769 = vrot.lane.b32.xlu0 %v748, 64
        %v770 = vpop.permute.xlu0 %769
        %771 = vrot.lane.b32.xlu0 %v750, 64
        %v772 = vpop.permute.xlu0 %771
        %773 = vrot.lane.b32.xlu0 %v752, 64
        %v774 = vpop.permute.xlu0 %773
        %775 = vrot.lane.b32.xlu0 %v754, 64
        %v776 = vpop.permute.xlu0 %775
        %777 = vrot.lane.b32.xlu0 %v756, 64
        %v778 = vpop.permute.xlu0 %777
        %779 = vrot.lane.b32.xlu0 %v758, 64
        %v780 = vpop.permute.xlu0 %779
        %781 = vrot.lane.b32.xlu0 %v760, 64
        %v782 = vpop.permute.xlu0 %781
        %783 = vrot.lane.b32.xlu0 %v762, 64
        %v784 = vpop.permute.xlu0 %783
        %785 = vrot.lane.b32.xlu0 %v764, 64
        %v786 = vpop.permute.xlu0 %785
        %787 = vrot.lane.b32.xlu0 %v601, 96
        %v788 = vpop.permute.xlu0 %787
        %789 = vrot.lane.b32.xlu0 %v602, 96
        %v790 = vpop.permute.xlu0 %789
        %791 = vrot.lane.b32.xlu0 %v603, 96
        %v792 = vpop.permute.xlu0 %791
        %793 = vrot.lane.b32.xlu0 %v604, 96
        %v794 = vpop.permute.xlu0 %793
        %795 = vrot.lane.b32.xlu0 %v605, 96
        %v796 = vpop.permute.xlu0 %795
        %797 = vrot.lane.b32.xlu0 %v606, 96
        %v798 = vpop.permute.xlu0 %797
        %799 = vrot.lane.b32.xlu0 %v607, 96
        %v800 = vpop.permute.xlu0 %799
        %801 = vrot.lane.b32.xlu0 %v608, 96
        %v802 = vpop.permute.xlu0 %801
        %803 = vrot.lane.b32.xlu0 %v609, 96
        %v804 = vpop.permute.xlu0 %803
        %805 = vrot.lane.b32.xlu0 %v610, 96
        %v806 = vpop.permute.xlu0 %805
        %807 = vrot.lane.b32.xlu0 %v611, 96
        %v808 = vpop.permute.xlu0 %807
        %v809 = vshrl.u32 %v611, 16
        %v811 = vor.u32 %v809, %v705
        %v813 = vshll.u32 %v612, 16
        %v815 = vrot.slane %v813, 1
        %v816 = vsel %vm614, %v811, %v815
        %v818 = vrot.slane %v612, 1
        %v819 = vsel %vm741, %v763, %v818
        %820 = vrot.lane.b32.xlu0 %v746, 32
        %v821 = vpop.permute.xlu0 %820
        %822 = vrot.lane.b32.xlu0 %v748, 32
        %v823 = vpop.permute.xlu0 %822
        %824 = vrot.lane.b32.xlu0 %v750, 32
        %v825 = vpop.permute.xlu0 %824
        %826 = vrot.lane.b32.xlu0 %v752, 32
        %v827 = vpop.permute.xlu0 %826
        %828 = vrot.lane.b32.xlu0 %v754, 32
        %v829 = vpop.permute.xlu0 %828
        %830 = vrot.lane.b32.xlu0 %v756, 32
        %v831 = vpop.permute.xlu0 %830
        %832 = vrot.lane.b32.xlu0 %v758, 32
        %v833 = vpop.permute.xlu0 %832
        %834 = vrot.lane.b32.xlu0 %v760, 32
        %v835 = vpop.permute.xlu0 %834
        %836 = vrot.lane.b32.xlu0 %v762, 32
        %v837 = vpop.permute.xlu0 %836
        %838 = vrot.lane.b32.xlu0 %v764, 32
        %v839 = vpop.permute.xlu0 %838
        %840 = vrot.lane.b32.xlu0 %v819, 32
        %v841 = vpop.permute.xlu0 %840
        %842 = vrot.lane.b32.xlu0 %v602, 64
        %v843 = vpop.permute.xlu0 %842
        %844 = vrot.lane.b32.xlu0 %v603, 64
        %v845 = vpop.permute.xlu0 %844
        %846 = vrot.lane.b32.xlu0 %v604, 64
        %v847 = vpop.permute.xlu0 %846
        %848 = vrot.lane.b32.xlu0 %v605, 64
        %v849 = vpop.permute.xlu0 %848
        %850 = vrot.lane.b32.xlu0 %v606, 64
        %v851 = vpop.permute.xlu0 %850
        %852 = vrot.lane.b32.xlu0 %v607, 64
        %v853 = vpop.permute.xlu0 %852
        %854 = vrot.lane.b32.xlu0 %v608, 64
        %v855 = vpop.permute.xlu0 %854
        %856 = vrot.lane.b32.xlu0 %v609, 64
        %v857 = vpop.permute.xlu0 %856
        %858 = vrot.lane.b32.xlu0 %v610, 64
        %v859 = vpop.permute.xlu0 %858
        %860 = vrot.lane.b32.xlu0 %v611, 64
        %v861 = vpop.permute.xlu0 %860
        %862 = vrot.lane.b32.xlu0 %v612, 64
        %v863 = vpop.permute.xlu0 %862
        %v864 = vshrl.u32 %v612, 16
        %v866 = vor.u32 %v864, %v815
        %v868 = vshll.u32 %v613, 16
        %v870 = vrot.slane %v868, 1
        %v871 = vsel %vm614, %v866, %v870
        %872 = vrot.lane.b32.xlu0 %v642, 96
        %v873 = vpop.permute.xlu0 %872
        %874 = vrot.lane.b32.xlu0 %v650, 96
        %v875 = vpop.permute.xlu0 %874
        %876 = vrot.lane.b32.xlu0 %v658, 96
        %v877 = vpop.permute.xlu0 %876
        %878 = vrot.lane.b32.xlu0 %v666, 96
        %v879 = vpop.permute.xlu0 %878
        %880 = vrot.lane.b32.xlu0 %v674, 96
        %v881 = vpop.permute.xlu0 %880
        %882 = vrot.lane.b32.xlu0 %v682, 96
        %v883 = vpop.permute.xlu0 %882
        %884 = vrot.lane.b32.xlu0 %v690, 96
        %v885 = vpop.permute.xlu0 %884
        %886 = vrot.lane.b32.xlu0 %v698, 96
        %v887 = vpop.permute.xlu0 %886
        %888 = vrot.lane.b32.xlu0 %v706, 96
        %v889 = vpop.permute.xlu0 %888
        %890 = vrot.lane.b32.xlu0 %v816, 96
        %v891 = vpop.permute.xlu0 %890
        %892 = vrot.lane.b32.xlu0 %v871, 96
        %v893 = vpop.permute.xlu0 %892
        %v895 = vrot.slane %v613, 1
        %v896 = vsel %vm741, %v818, %v895
        %vm897 = vcmask 261120
        %v899 = vsel %vm897, %v600, %v708
        %v901 = vsel %vm897, %v601, %v710
        %v903 = vsel %vm897, %v602, %v712
        %v905 = vsel %vm897, %v603, %v714
        %v907 = vsel %vm897, %v604, %v716
        %v909 = vsel %vm897, %v605, %v718
        %v911 = vsel %vm897, %v606, %v720
        %v913 = vsel %vm897, %v607, %v722
        %v915 = vsel %vm897, %v608, %v724
        %v917 = vsel %vm897, %v609, %v726
        %v919 = vsel %vm897, %v610, %v728
        %v921 = vsel %vm386, %v899, %v766
        %v923 = vsel %vm386, %v901, %v768
        %v925 = vsel %vm386, %v903, %v770
        %v927 = vsel %vm386, %v905, %v772
        %v929 = vsel %vm386, %v907, %v774
        %v931 = vsel %vm386, %v909, %v776
        %v933 = vsel %vm386, %v911, %v778
        %v935 = vsel %vm386, %v913, %v780
        %v937 = vsel %vm386, %v915, %v782
        %v939 = vsel %vm386, %v917, %v784
        %v941 = vsel %vm386, %v919, %v786
        %vm942 = vcmask 785408
        %v944 = vsel %vm942, %v921, %v788
        %v947 = vsel %vm942, %v923, %v790
        %v950 = vsel %vm942, %v925, %v792
        %v953 = vsel %vm942, %v927, %v794
        %v956 = vsel %vm942, %v929, %v796
        %v959 = vsel %vm942, %v931, %v798
        %v962 = vsel %vm942, %v933, %v800
        %v965 = vsel %vm942, %v935, %v802
        %v968 = vsel %vm942, %v937, %v804
        %v971 = vsel %vm942, %v939, %v806
        %v974 = vsel %vm942, %v941, %v808
        %v978 = vsel %vm897, %v634, %v821
        %v981 = vsel %vm897, %v642, %v823
        %v984 = vsel %vm897, %v650, %v825
        %v987 = vsel %vm897, %v658, %v827
        %v990 = vsel %vm897, %v666, %v829
        %v993 = vsel %vm897, %v674, %v831
        %v996 = vsel %vm897, %v682, %v833
        %v999 = vsel %vm897, %v690, %v835
        %v1002 = vsel %vm897, %v698, %v837
        %v1005 = vsel %vm897, %v706, %v839
        %v1008 = vsel %vm897, %v816, %v841
        %v1010 = vsel %vm386, %v978, %v843
        %v1012 = vsel %vm386, %v981, %v845
        %v1014 = vsel %vm386, %v984, %v847
        %v1016 = vsel %vm386, %v987, %v849
        %v1018 = vsel %vm386, %v990, %v851
        %v1020 = vsel %vm386, %v993, %v853
        %v1022 = vsel %vm386, %v996, %v855
        %v1024 = vsel %vm386, %v999, %v857
        %v1026 = vsel %vm386, %v1002, %v859
        %v1028 = vsel %vm386, %v1005, %v861
        %v1030 = vsel %vm386, %v1008, %v863
        %v1032 = vsel %vm942, %v1010, %v873
        %v1035 = vsel %vm942, %v1012, %v875
        %v1038 = vsel %vm942, %v1014, %v877
        %v1041 = vsel %vm942, %v1016, %v879
        %v1044 = vsel %vm942, %v1018, %v881
        %v1047 = vsel %vm942, %v1020, %v883
        %v1050 = vsel %vm942, %v1022, %v885
        %v1053 = vsel %vm942, %v1024, %v887
        %v1056 = vsel %vm942, %v1026, %v889
        %v1059 = vsel %vm942, %v1028, %v891
        %v1062 = vsel %vm942, %v1030, %v893
        %v1064 = vld [vmem:[%s3] sm:$0xf]
        %v1065 = vld [vmem:[%s3 + $0x4] sm:$0xf]
        %v1066 = vld [vmem:[%s3 + $0x8] sm:$0xf]
        %v1067 = vld [vmem:[%s3 + $0xc] sm:$0xf]
        %v1068 = vld [vmem:[%s3 + $0x10] sm:$0xf]
        %v1069 = vld [vmem:[%s3 + $0x14] sm:$0xf]
        %v1070 = vld [vmem:[%s3 + $0x18] sm:$0xf]
        %v1071 = vld [vmem:[%s3 + $0x1c] sm:$0xf]
        %v1072 = vld [vmem:[%s3 + $0x20] sm:$0xf]
        %v1073 = vld [vmem:[%s3 + $0x24] sm:$0xf]
        %v1074 = vld [vmem:[%s3 + $0x28] sm:$0xf]
        %v1075 = vld [vmem:[%s3 + $0x2c] sm:$0xf]
        %v1076 = vld [vmem:[%s3 + $0x30] sm:$0xf]
        %v1077 = vld [vmem:[%s3 + $0x34] sm:$0xf]
        %v1078 = vld [vmem:[%s3 + $0x38] sm:$0xf]
        %v1079 = vld [vmem:[%s3 + $0x3c] sm:$0xf]
        %v1080 = vld [vmem:[%s3 + $0x40] sm:$0xf]
        %v1081 = vld [vmem:[%s3 + $0x44] sm:$0xf]
        %v1082 = vld [vmem:[%s3 + $0x48] sm:$0xf]
        %v1083 = vld [vmem:[%s3 + $0x4c] sm:$0xf]
        %v1084 = vld [vmem:[%s3 + $0x50] sm:$0xf]
        %v1085 = vld [vmem:[%s3 + $0x54] sm:$0xf]
        %v1086 = vld [vmem:[%s3 + $0x58] sm:$0xf]
        %v1087 = vld [vmem:[%s3 + $0x5c] sm:$0xf]
        %v1088 = vld [vmem:[%s3 + $0x60] sm:$0xf]
        %v1089 = vld [vmem:[%s3 + $0x64] sm:$0xf]
        %v1090 = vld [vmem:[%s3 + $0x68] sm:$0xf]
        %v1091 = vld [vmem:[%s3 + $0x6c] sm:$0xf]
        %v1092 = vld [vmem:[%s3 + $0x70] sm:$0xf]
        %v1093 = vld [vmem:[%s3 + $0x74] sm:$0xf]
        %v1094 = vld [vmem:[%s3 + $0x78] sm:$0xf]
        %v1095 = vld [vmem:[%s3 + $0x7c] sm:$0xf]
        %v1096 = vld [vmem:[%s3 + $0x80] sm:$0xf]
        %v1097 = vld [vmem:[%s3 + $0x84] sm:$0xf]
        %v1098 = vld [vmem:[%s3 + $0x88] sm:$0xf]
        %v1099 = vld [vmem:[%s3 + $0x8c] sm:$0xf]
        %v1100 = vld [vmem:[#allocation4] sm:$0x1]
        %v1102 = vlaneseq
        %v1103 = vshrl.u32 %v1102, 7
        %v1104 = vsub.s32 0, %v1103
        %v1105 = vrot.slane %v1100, %v1104
        %v1143 = vunpack.c.l.b16 %v1064
        %v1144 = vunpack.c.l.b16 %v1065
        %v1145 = vunpack.c.l.b16 %v1066
        %v1146 = vunpack.c.l.b16 %v1067
        %v1147 = vunpack.c.l.b16 %v1068
        %v1148 = vunpack.c.l.b16 %v1069
        %v1149 = vunpack.c.l.b16 %v1070
        %v1150 = vunpack.c.l.b16 %v1071
        %v1151 = vunpack.c.l.b16 %v1072
        %v1152 = vunpack.c.l.b16 %v1073
        %v1153 = vunpack.c.l.b16 %v1074
        %v1154 = vunpack.c.l.b16 %v1075
        %v1155 = vunpack.c.l.b16 %v1076
        %v1156 = vunpack.c.l.b16 %v1077
        %v1157 = vunpack.c.l.b16 %v1078
        %v1158 = vunpack.c.l.b16 %v1079
        %v1159 = vunpack.c.l.b16 %v1080
        %v1160 = vunpack.c.l.b16 %v1081
        %v1161 = vunpack.c.l.b16 %v1082
        %v1162 = vunpack.c.l.b16 %v1083
        %v1163 = vunpack.c.l.b16 %v1084
        %v1164 = vunpack.c.l.b16 %v1085
        %v1165 = vunpack.c.l.b16 %v1086
        %v1166 = vunpack.c.l.b16 %v1087
        %v1167 = vunpack.c.l.b16 %v1088
        %v1168 = vunpack.c.l.b16 %v1089
        %v1169 = vunpack.c.l.b16 %v1090
        %v1170 = vunpack.c.l.b16 %v1091
        %v1171 = vunpack.c.l.b16 %v1092
        %v1172 = vunpack.c.l.b16 %v1093
        %v1173 = vunpack.c.l.b16 %v1094
        %v1174 = vunpack.c.l.b16 %v1095
        %v1175 = vunpack.c.l.b16 %v1096
        %v1176 = vunpack.c.l.b16 %v1097
        %v1177 = vunpack.c.l.b16 %v1098
        %v1178 = vunpack.c.l.b16 %v1099
        %v1179 = vpack.c.b16 %v1144, %v1143
        %v1180 = vpack.c.b16 %v1146, %v1145
        %v1181 = vpack.c.b16 %v1148, %v1147
        %v1182 = vpack.c.b16 %v1150, %v1149
        %v1183 = vpack.c.b16 %v1152, %v1151
        %v1184 = vpack.c.b16 %v1154, %v1153
        %v1185 = vpack.c.b16 %v1156, %v1155
        %v1186 = vpack.c.b16 %v1158, %v1157
        %v1187 = vpack.c.b16 %v1160, %v1159
        %v1188 = vpack.c.b16 %v1162, %v1161
        %v1189 = vpack.c.b16 %v1164, %v1163
        %v1190 = vpack.c.b16 %v1166, %v1165
        %v1191 = vpack.c.b16 %v1168, %v1167
        %v1192 = vpack.c.b16 %v1170, %v1169
        %v1193 = vpack.c.b16 %v1172, %v1171
        %v1194 = vpack.c.b16 %v1174, %v1173
        %v1195 = vpack.c.b16 %v1176, %v1175
        %v1196 = vpack.c.b16 %v1178, %v1177
        %v1216 = vsel %vm897, %v748, 0
        %v1219 = vsel %vm897, %v750, 0
        %v1222 = vsel %vm897, %v752, 0
        %v1225 = vsel %vm897, %v754, 0
        %v1228 = vsel %vm897, %v756, 0
        %v1231 = vsel %vm897, %v758, 0
        %v1234 = vsel %vm897, %v760, 0
        %v1237 = vsel %vm897, %v762, 0
        %v1240 = vsel %vm897, %v764, 0
        %v1243 = vsel %vm897, %v819, 0
        %v1246 = vsel %vm897, %v896, 0
        %1248 = vmatprep.subr.bf16.mxu0 0
        %1249 = vmatpush1.bf16.msra.mxu0 %v1179
        %1250 = vmatprep.subr.bf16.mxu0 0
        %1251 = vmatpush1.bf16.msra.mxu0 %v1180
        %1252 = vmatprep.subr.bf16.mxu0 0
        %1253 = vmatpush1.bf16.msra.mxu0 %v1181
        %1254 = vmatprep.subr.bf16.mxu0 0
        %1255 = vmatpush1.bf16.msra.mxu0 %v1182
        %1256 = vmatprep.subr.bf16.mxu0 0
        %1257 = vmatpush1.bf16.msra.mxu0 %v1183
        %1258 = vmatprep.subr.bf16.mxu0 0
        %1259 = vmatpush1.bf16.msra.mxu0 %v1184
        %1260 = vmatprep.subr.bf16.mxu0 0
        %1261 = vmatpush1.bf16.msra.mxu0 %v1185
        %1262 = vmatprep.subr.bf16.mxu0 0
        %1263 = vmatpush1.bf16.msra.mxu0 %v1186
        %1264 = vmatprep.subr.bf16.mxu0 0
        %1265 = vmatpush1.bf16.msra.mxu0 %v1187
        %1266 = vmatprep.subr.bf16.mxu0 0
        %1267 = vmatpush1.bf16.msra.mxu0 %v1188
        %1268 = vmatprep.subr.bf16.mxu0 0
        %1269 = vmatpush1.bf16.msra.mxu0 %v1189
        %1270 = vmatprep.subr.bf16.mxu0 0
        %1271 = vmatpush1.bf16.msra.mxu0 %v1190
        %1272 = vmatprep.subr.bf16.mxu0 0
        %1273 = vmatpush1.bf16.msra.mxu0 %v1191
        %1274 = vmatprep.subr.bf16.mxu0 0
        %1275 = vmatpush1.bf16.msra.mxu0 %v1192
        %1276 = vmatprep.subr.bf16.mxu0 0
        %1277 = vmatpush1.bf16.msra.mxu0 %v1193
        %1278 = vmatprep.subr.bf16.mxu0 0
        %1279 = vmatpush1.bf16.msra.mxu0 %v1194
        %1280 = vmatprep.mubr.bf16.mxu0 %v1032
        %1281 = vmatmul.mubr.bf16.gmra.mrb[0].mxu0 %v944
        %v1282 = vpop.f32.mrb[0].mxu0
        %v1283 = vadd.f32 %v1105, %v1282
        %v1284 = vpop.f32.mrb[0].mxu0
        %v1285 = vpop.f32.mrb[0].mxu0
        %v1286 = vadd.f32 %v1105, %v1285
        %v1287 = vpop.f32.mrb[0].mxu0
        %1288 = vmatprep.mubr.bf16.mxu0 %v1035
        %1289 = vmatmul.mubr.bf16.gmra.mrb[0].mxu0 %v947
        %v1290 = vpop.f32.mrb[0].mxu0
        %v1291 = vadd.f32 %v1105, %v1290
        %v1292 = vpop.f32.mrb[0].mxu0
        %v1293 = vpop.f32.mrb[0].mxu0
        %v1294 = vadd.f32 %v1105, %v1293
        %v1295 = vpop.f32.mrb[0].mxu0
        %1296 = vmatprep.mubr.bf16.mxu0 %v1038
        %1297 = vmatmul.mubr.bf16.gmra.mrb[0].mxu0 %v950
        %v1298 = vpop.f32.mrb[0].mxu0
        %v1299 = vadd.f32 %v1105, %v1298
        %v1300 = vpop.f32.mrb[0].mxu0
        %v1301 = vpop.f32.mrb[0].mxu0
        %v1302 = vadd.f32 %v1105, %v1301
        %v1303 = vpop.f32.mrb[0].mxu0
        %1304 = vmatprep.mubr.bf16.mxu0 %v1041
        %1305 = vmatmul.mubr.bf16.gmra.mrb[0].mxu0 %v953
        %v1306 = vpop.f32.mrb[0].mxu0
        %v1307 = vadd.f32 %v1105, %v1306
        %v1308 = vpop.f32.mrb[0].mxu0
        %v1309 = vpop.f32.mrb[0].mxu0
        %v1310 = vadd.f32 %v1105, %v1309
        %v1311 = vpop.f32.mrb[0].mxu0
        %1312 = vmatprep.mubr.bf16.mxu0 %v1044
        %1313 = vmatmul.mubr.bf16.gmra.mrb[0].mxu0 %v956
        %v1314 = vpop.f32.mrb[0].mxu0
        %v1315 = vadd.f32 %v1105, %v1314
        %v1316 = vpop.f32.mrb[0].mxu0
        %v1317 = vpop.f32.mrb[0].mxu0
        %v1318 = vadd.f32 %v1105, %v1317
        %v1319 = vpop.f32.mrb[0].mxu0
        %1320 = vmatprep.mubr.bf16.mxu0 %v1047
        %1321 = vmatmul.mubr.bf16.gmra.mrb[0].mxu0 %v959
        %v1322 = vpop.f32.mrb[0].mxu0
        %v1323 = vadd.f32 %v1105, %v1322
        %v1324 = vpop.f32.mrb[0].mxu0
        %v1325 = vpop.f32.mrb[0].mxu0
        %v1326 = vadd.f32 %v1105, %v1325
        %v1327 = vpop.f32.mrb[0].mxu0
        %1328 = vmatprep.mubr.bf16.mxu0 %v1050
        %1329 = vmatmul.mubr.bf16.gmra.mrb[0].mxu0 %v962
        %v1330 = vpop.f32.mrb[0].mxu0
        %v1331 = vadd.f32 %v1105, %v1330
        %v1332 = vpop.f32.mrb[0].mxu0
        %v1333 = vpop.f32.mrb[0].mxu0
        %v1334 = vadd.f32 %v1105, %v1333
        %v1335 = vpop.f32.mrb[0].mxu0
        %1336 = vmatprep.mubr.bf16.mxu0 %v1053
        %1337 = vmatmul.mubr.bf16.gmra.mrb[0].mxu0 %v965
        %v1338 = vpop.f32.mrb[0].mxu0
        %v1339 = vadd.f32 %v1105, %v1338
        %v1340 = vpop.f32.mrb[0].mxu0
        %v1341 = vpop.f32.mrb[0].mxu0
        %v1342 = vadd.f32 %v1105, %v1341
        %v1343 = vpop.f32.mrb[0].mxu0
        %1344 = vmatprep.mubr.bf16.mxu0 %v1056
        %1345 = vmatmul.mubr.bf16.gmra.mrb[0].mxu0 %v968
        %v1346 = vpop.f32.mrb[0].mxu0
        %v1347 = vadd.f32 %v1105, %v1346
        %v1348 = vpop.f32.mrb[0].mxu0
        %v1349 = vpop.f32.mrb[0].mxu0
        %v1350 = vadd.f32 %v1105, %v1349
        %v1351 = vpop.f32.mrb[0].mxu0
        %1352 = vmatprep.mubr.bf16.mxu0 %v1059
        %1353 = vmatmul.mubr.bf16.gmra.mrb[0].mxu0 %v971
        %v1354 = vpop.f32.mrb[0].mxu0
        %v1355 = vadd.f32 %v1105, %v1354
        %v1356 = vpop.f32.mrb[0].mxu0
        %v1357 = vpop.f32.mrb[0].mxu0
        %v1358 = vadd.f32 %v1105, %v1357
        %v1359 = vpop.f32.mrb[0].mxu0
        %1360 = vmatprep.mubr.bf16.mxu0 %v1062
        %1361 = vmatmul.mubr.bf16.gmra.mrb[0].mxu0 %v974
        %v1362 = vpop.f32.mrb[0].mxu0
        %v1363 = vadd.f32 %v1105, %v1362
        %v1364 = vpop.f32.mrb[0].mxu0
        %v1365 = vpop.f32.mrb[0].mxu0
        %v1366 = vadd.f32 %v1105, %v1365
        %v1367 = vpop.f32.mrb[0].mxu0
        %1368 = vdwg.mxu0
        %1369 = vmatprep.subr.bf16.mxu0 0
        %1370 = vmatpush1.bf16.msra.mxu0 %v1195
        %1371 = vmatprep.subr.bf16.mxu0 0
        %1372 = vmatpush1.bf16.msra.mxu0 %v1196
        %1373 = vmatprep.subr.bf16.mxu0 0
        %1374 = vmatpush1.bf16.msra.mxu0 0
        %1375 = vmatprep.subr.bf16.mxu0 0
        %1376 = vmatpush1.bf16.msra.mxu0 0
        %1377 = vmatprep.subr.bf16.mxu0 0
        %1378 = vmatpush1.bf16.msra.mxu0 0
        %1379 = vmatprep.subr.bf16.mxu0 0
        %1380 = vmatpush1.bf16.msra.mxu0 0
        %1381 = vmatprep.subr.bf16.mxu0 0
        %1382 = vmatpush1.bf16.msra.mxu0 0
        %1383 = vmatprep.subr.bf16.mxu0 0
        %1384 = vmatpush1.bf16.msra.mxu0 0
        %1385 = vmatprep.subr.bf16.mxu0 0
        %1386 = vmatpush1.bf16.msra.mxu0 0
        %1387 = vmatprep.subr.bf16.mxu0 0
        %1388 = vmatpush1.bf16.msra.mxu0 0
        %1389 = vmatprep.subr.bf16.mxu0 0
        %1390 = vmatpush1.bf16.msra.mxu0 0
        %1391 = vmatprep.subr.bf16.mxu0 0
        %1392 = vmatpush1.bf16.msra.mxu0 0
        %1393 = vmatprep.subr.bf16.mxu0 0
        %1394 = vmatpush1.bf16.msra.mxu0 0
        %1395 = vmatprep.subr.bf16.mxu0 0
        %1396 = vmatpush1.bf16.msra.mxu0 0
        %1397 = vmatprep.subr.bf16.mxu0 0
        %1398 = vmatpush1.bf16.msra.mxu0 0
        %1399 = vmatprep.subr.bf16.mxu0 0
        %1400 = vmatpush1.bf16.msra.mxu0 0
        %1401 = vmatprep.mubr.bf16.mxu0 0
        %1402 = vmatmul.mubr.bf16.gmra.mrb[0].mxu0 %v1216
        %v1403 = vpop.f32.mrb[0].mxu0
        %v1404 = vadd.f32 %v1283, %v1403
        %v1405 = vpop.f32.mrb[0].mxu0
        %v1406 = vpop.f32.mrb[0].mxu0
        %v1407 = vadd.f32 %v1286, %v1406
        %v1408 = vpop.f32.mrb[0].mxu0
        %1409 = vmatprep.mubr.bf16.mxu0 0
        %1410 = vmatmul.mubr.bf16.gmra.mrb[0].mxu0 %v1219
        %v1411 = vpop.f32.mrb[0].mxu0
        %v1412 = vadd.f32 %v1291, %v1411
        %v1413 = vpop.f32.mrb[0].mxu0
        %v1414 = vpop.f32.mrb[0].mxu0
        %v1415 = vadd.f32 %v1294, %v1414
        %v1416 = vpop.f32.mrb[0].mxu0
        %1417 = vmatprep.mubr.bf16.mxu0 0
        %1418 = vmatmul.mubr.bf16.gmra.mrb[0].mxu0 %v1222
        %v1419 = vpop.f32.mrb[0].mxu0
        %v1420 = vadd.f32 %v1299, %v1419
        %v1421 = vpop.f32.mrb[0].mxu0
        %v1422 = vpop.f32.mrb[0].mxu0
        %v1423 = vadd.f32 %v1302, %v1422
        %v1424 = vpop.f32.mrb[0].mxu0
        %1425 = vmatprep.mubr.bf16.mxu0 0
        %1426 = vmatmul.mubr.bf16.gmra.mrb[0].mxu0 %v1225
        %v1427 = vpop.f32.mrb[0].mxu0
        %v1428 = vadd.f32 %v1307, %v1427
        %v1429 = vpop.f32.mrb[0].mxu0
        %v1430 = vpop.f32.mrb[0].mxu0
        %v1431 = vadd.f32 %v1310, %v1430
        %v1432 = vpop.f32.mrb[0].mxu0
        %1433 = vmatprep.mubr.bf16.mxu0 0
        %1434 = vmatmul.mubr.bf16.gmra.mrb[0].mxu0 %v1228
        %v1435 = vpop.f32.mrb[0].mxu0
        %v1436 = vadd.f32 %v1315, %v1435
        %v1437 = vpop.f32.mrb[0].mxu0
        %v1438 = vpop.f32.mrb[0].mxu0
        %v1439 = vadd.f32 %v1318, %v1438
        %v1440 = vpop.f32.mrb[0].mxu0
        %1441 = vmatprep.mubr.bf16.mxu0 0
        %1442 = vmatmul.mubr.bf16.gmra.mrb[0].mxu0 %v1231
        %v1443 = vpop.f32.mrb[0].mxu0
        %v1444 = vadd.f32 %v1323, %v1443
        %v1445 = vpop.f32.mrb[0].mxu0
        %v1446 = vpop.f32.mrb[0].mxu0
        %v1447 = vadd.f32 %v1326, %v1446
        %v1448 = vpop.f32.mrb[0].mxu0
        %1449 = vmatprep.mubr.bf16.mxu0 0
        %1450 = vmatmul.mubr.bf16.gmra.mrb[0].mxu0 %v1234
        %v1451 = vpop.f32.mrb[0].mxu0
        %v1452 = vadd.f32 %v1331, %v1451
        %v1453 = vpop.f32.mrb[0].mxu0
        %v1454 = vpop.f32.mrb[0].mxu0
        %v1455 = vadd.f32 %v1334, %v1454
        %v1456 = vpop.f32.mrb[0].mxu0
        %1457 = vmatprep.mubr.bf16.mxu0 0
        %1458 = vmatmul.mubr.bf16.gmra.mrb[0].mxu0 %v1237
        %v1459 = vpop.f32.mrb[0].mxu0
        %v1460 = vadd.f32 %v1339, %v1459
        %v1461 = vpop.f32.mrb[0].mxu0
        %v1462 = vpop.f32.mrb[0].mxu0
        %v1463 = vadd.f32 %v1342, %v1462
        %v1464 = vpop.f32.mrb[0].mxu0
        %1465 = vmatprep.mubr.bf16.mxu0 0
        %1466 = vmatmul.mubr.bf16.gmra.mrb[0].mxu0 %v1240
        %v1467 = vpop.f32.mrb[0].mxu0
        %v1468 = vadd.f32 %v1347, %v1467
        %v1469 = vpop.f32.mrb[0].mxu0
        %v1470 = vpop.f32.mrb[0].mxu0
        %v1471 = vadd.f32 %v1350, %v1470
        %v1472 = vpop.f32.mrb[0].mxu0
        %1473 = vmatprep.mubr.bf16.mxu0 0
        %1474 = vmatmul.mubr.bf16.gmra.mrb[0].mxu0 %v1243
        %v1475 = vpop.f32.mrb[0].mxu0
        %v1476 = vadd.f32 %v1355, %v1475
        %v1477 = vpop.f32.mrb[0].mxu0
        %v1478 = vpop.f32.mrb[0].mxu0
        %v1479 = vadd.f32 %v1358, %v1478
        %v1480 = vpop.f32.mrb[0].mxu0
        %1481 = vmatprep.mubr.bf16.mxu0 0
        %1482 = vmatmul.mubr.bf16.gmra.mrb[0].mxu0 %v1246
        %v1483 = vpop.f32.mrb[0].mxu0
        %v1484 = vadd.f32 %v1363, %v1483
        %v1485 = vpop.f32.mrb[0].mxu0
        %v1486 = vpop.f32.mrb[0].mxu0
        %v1487 = vadd.f32 %v1366, %v1486
        %v1488 = vpop.f32.mrb[0].mxu0
        %1489 = vdwg.mxu0
        %v1490 = vmax.f32 %v1404, 0.0
        %v1491 = vmax.f32 %v1407, 0.0
        %v1492 = vmax.f32 %v1412, 0.0
        %v1493 = vmax.f32 %v1415, 0.0
        %v1494 = vmax.f32 %v1420, 0.0
        %v1495 = vmax.f32 %v1423, 0.0
        %v1496 = vmax.f32 %v1428, 0.0
        %v1497 = vmax.f32 %v1431, 0.0
        %v1498 = vmax.f32 %v1436, 0.0
        %v1499 = vmax.f32 %v1439, 0.0
        %v1500 = vmax.f32 %v1444, 0.0
        %v1501 = vmax.f32 %v1447, 0.0
        %v1502 = vmax.f32 %v1452, 0.0
        %v1503 = vmax.f32 %v1455, 0.0
        %v1504 = vmax.f32 %v1460, 0.0
        %v1505 = vmax.f32 %v1463, 0.0
        %v1506 = vmax.f32 %v1468, 0.0
        %v1507 = vmax.f32 %v1471, 0.0
        %v1508 = vmax.f32 %v1476, 0.0
        %v1509 = vmax.f32 %v1479, 0.0
        %v1510 = vmax.f32 %v1484, 0.0
        %v1511 = vmax.f32 %v1487, 0.0
        %v1512 = vpack.c.bf16 %v1491, %v1490
        %v1513 = vpack.c.bf16 %v1493, %v1492
        %v1514 = vpack.c.bf16 %v1495, %v1494
        %v1515 = vpack.c.bf16 %v1497, %v1496
        %v1516 = vpack.c.bf16 %v1499, %v1498
        %v1517 = vpack.c.bf16 %v1501, %v1500
        %v1518 = vpack.c.bf16 %v1503, %v1502
        %v1519 = vpack.c.bf16 %v1505, %v1504
        %v1520 = vpack.c.bf16 %v1507, %v1506
        %v1521 = vpack.c.bf16 %v1509, %v1508
        %v1522 = vpack.c.bf16 %v1511, %v1510
        %v1534 = vunpack.c.l.b16 %v1512
        %v1535 = vunpack.c.h.b16 %v1512
        %v1536 = vunpack.c.l.b16 %v1513
        %v1537 = vunpack.c.h.b16 %v1513
        %v1538 = vunpack.c.l.b16 %v1514
        %v1539 = vunpack.c.h.b16 %v1514
        %v1540 = vunpack.c.l.b16 %v1515
        %v1541 = vunpack.c.h.b16 %v1515
        %v1542 = vunpack.c.l.b16 %v1516
        %v1543 = vunpack.c.h.b16 %v1516
        %v1544 = vunpack.c.l.b16 %v1517
        %v1545 = vunpack.c.h.b16 %v1517
        %v1546 = vunpack.c.l.b16 %v1518
        %v1547 = vunpack.c.h.b16 %v1518
        %v1548 = vunpack.c.l.b16 %v1519
        %v1549 = vunpack.c.h.b16 %v1519
        %v1550 = vunpack.c.l.b16 %v1520
        %v1551 = vunpack.c.h.b16 %v1520
        %v1552 = vunpack.c.l.b16 %v1521
        %v1553 = vunpack.c.h.b16 %v1521
        %v1554 = vunpack.c.l.b16 %v1522
        %v1555 = vunpack.c.h.b16 %v1522
        %v1556 = vpack.c.b16 %v1534, %v1534
        %v1557 = vpack.c.b16 %v1535, %v1535
        %v1558 = vpack.c.b16 %v1536, %v1536
        %v1559 = vpack.c.b16 %v1537, %v1537
        %v1560 = vpack.c.b16 %v1538, %v1538
        %v1561 = vpack.c.b16 %v1539, %v1539
        %v1562 = vpack.c.b16 %v1540, %v1540
        %v1563 = vpack.c.b16 %v1541, %v1541
        %v1564 = vpack.c.b16 %v1542, %v1542
        %v1565 = vpack.c.b16 %v1543, %v1543
        %v1566 = vpack.c.b16 %v1544, %v1544
        %v1567 = vpack.c.b16 %v1545, %v1545
        %v1568 = vpack.c.b16 %v1546, %v1546
        %v1569 = vpack.c.b16 %v1547, %v1547
        %v1570 = vpack.c.b16 %v1548, %v1548
        %v1571 = vpack.c.b16 %v1549, %v1549
        %v1572 = vpack.c.b16 %v1550, %v1550
        %v1573 = vpack.c.b16 %v1551, %v1551
        %v1574 = vpack.c.b16 %v1552, %v1552
        %v1575 = vpack.c.b16 %v1553, %v1553
        %v1576 = vpack.c.b16 %v1554, %v1554
        %v1577 = vpack.c.b16 %v1555, %v1555
        %vm1600 = vcmask 257024
        %1601 = vst.msk [vmem:[%s250] sm:$0xf] %vm1600, %v1556
        %1602 = vst.msk [vmem:[%s250 + $0x4] sm:$0xf] %vm1600, %v1557
        %1603 = vst.msk [vmem:[%s250 + $0x8] sm:$0xf] %vm1600, %v1558
        %1604 = vst.msk [vmem:[%s250 + $0xc] sm:$0xf] %vm1600, %v1559
        %1605 = vst.msk [vmem:[%s250 + $0x10] sm:$0xf] %vm1600, %v1560
        %1606 = vst.msk [vmem:[%s250 + $0x14] sm:$0xf] %vm1600, %v1561
        %1607 = vst.msk [vmem:[%s250 + $0x18] sm:$0xf] %vm1600, %v1562
        %1608 = vst.msk [vmem:[%s250 + $0x1c] sm:$0xf] %vm1600, %v1563
        %1609 = vst.msk [vmem:[%s250 + $0x20] sm:$0xf] %vm1600, %v1564
        %1610 = vst.msk [vmem:[%s250 + $0x24] sm:$0xf] %vm1600, %v1565
        %1611 = vst.msk [vmem:[%s250 + $0x28] sm:$0xf] %vm1600, %v1566
        %1612 = vst.msk [vmem:[%s250 + $0x2c] sm:$0xf] %vm1600, %v1567
        %1613 = vst.msk [vmem:[%s250 + $0x30] sm:$0xf] %vm1600, %v1568
        %1614 = vst.msk [vmem:[%s250 + $0x34] sm:$0xf] %vm1600, %v1569
        %1615 = vst.msk [vmem:[%s250 + $0x38] sm:$0xf] %vm1600, %v1570
        %1616 = vst.msk [vmem:[%s250 + $0x3c] sm:$0xf] %vm1600, %v1571
        %1617 = vst.msk [vmem:[%s250 + $0x40] sm:$0xf] %vm1600, %v1572
        %1618 = vst.msk [vmem:[%s250 + $0x44] sm:$0xf] %vm1600, %v1573
        %1619 = vst.msk [vmem:[%s250 + $0x48] sm:$0xf] %vm1600, %v1574
        %1620 = vst.msk [vmem:[%s250 + $0x4c] sm:$0xf] %vm1600, %v1575
        %1621 = vst.msk [vmem:[%s250 + $0x50] sm:$0xf] %vm1600, %v1576
        %1622 = vst.msk [vmem:[%s250 + $0x54] sm:$0xf] %vm1600, %v1577
        %p1623 = scmp.lt.s32.totalorder %s18, 1
        %s1624 = scalar_select %p1623, %s18, 1
        %s1625 = smul.addr %s1624, 22
        %s1626 = smul.addr %s1625, 4
        %s1627 = scalar_lea.vmem %s5, %s1626
        // Predicated region
        $region49: #{v_net_forward.2} parent=39 // pred_check
          %p1628 = pneg %p146
        $region50: #{v_net_forward.2} parent=39 // pred_check_branch
          %1630 = sbr.rel (%p1628) target = $region52
        $region51: #{v_net_forward.2} parent=39 // pred_region
          _
        $region52: #{v_net_forward.2} parent=39 // pred_fallthru
          _
      $region40: #{v_net_forward.2} parent=5 // pred_fallthru
        _
      %p1631 = scmp.le.s32.totalorder 2, %s13
      // Predicated region
      $region53: #{v_net_forward.2} parent=5 // pred_check
        %p1632 = pneg %p1631
      $region54: #{v_net_forward.2} parent=5 // pred_check_branch
        %1634 = sbr.rel (%p1632) target = $region56
      $region55: #{v_net_forward.2} parent=5 // pred_region
        %s1635 = ssub.s32 %s13, 2
        // Predicated region
        $region57: #{v_net_forward.2} parent=55 // pred_check
          %p1636 = pneg %p152
        $region58: #{v_net_forward.2} parent=55 // pred_check_branch
          %1638 = sbr.rel (%p1636) target = $region60
        $region59: #{v_net_forward.2} parent=55 // pred_region
          %p1639 = scmp.lt.s32.totalorder %s19, 1
          %s1640 = scalar_select %p1639, %s19, 1
          %s1641 = smul.addr %s1640, 22
          %s1642 = smul.addr %s1641, 4
          %s1643 = scalar_lea.vmem %s5, %s1642
        $region60: #{v_net_forward.2} parent=55 // pred_fallthru
          _
      $region56: #{v_net_forward.2} parent=5 // pred_fallthru
        _
    $region6: #{v_net_forward.2} parent=1 // loop_footer
      %s17 = sadd.s32 1, %s13
    $region7: #{v_net_forward.2} parent=1 // loop_footer_branch
      %12 = sbr.rel target = $region3
    $region8: #{v_net_forward.2} parent=1 // loop_exit
      _
    %1644 = vsyncpa [#allocation3], 1
    %s1645 = scalar_lea.sflag [#allocation3], 1
    %1646 = vsyncpa %s1645, 1
    %1647 = vsyncpa [#allocation5], 1

// kernel: v_net_forward.3
$region0: #{v_net_forward.3}
  #allocation0 [shape = 'u32[]', space=smem, size = 0x4, offset = 0x4, fixed_abs, tag = 'smem constant byte address 0x4 - core index']
  #allocation1 [shape = 'u32[144,128]{1,0:T(1,128)}', space=vmem, size = 0x12000, scoped, tag = 'internal scratch']
  #allocation2 [shape = 'f32[2,256]{1,0:T(2,128)}', space=vmem, size = 0x800, scoped, tag = 'scratch operand']
  %s0 = inlined_call_operand.vmem [shape: bf16[2,5632], index: 0, kind: input, shape index: {}]
  %s1 = inlined_call_operand.vmem [shape: bf16[5632,512], index: 1, kind: input, shape index: {}]
  %s2 = inlined_call_operand.vmem [shape: f32[1,512], index: 2, kind: input, shape index: {}]
  %s3 = inlined_call_operand.vmem [shape: f32[1,512], index: 3, kind: input, shape index: {}]
  %s4 = inlined_call_operand.vmem [shape: f32[2,2,1], index: 4, kind: output, shape index: {}]
  %s5 = sld [smem:[#allocation0]]
  $region95: #{v_net_forward.3} parent=0
    _
  %s7 = ssub.s32 1, %s5
  %s8 = scalar_select 0, %s7, %s5
  $region1: #{v_net_forward.3} parent=0
    #allocation3 [shape = 'u8[1441792]{0}', space=vmem, size = 0x160000, scoped, tag = 'input window, operand 1']
    loop: start=0, step=1, limit=10
    $region2: #{v_net_forward.3} parent=1 // loop_pre_header
      _
    $region3: #{v_net_forward.3} parent=1 // loop_header
      %s10 = sphi 0, %s14
      %p11 = scmp.ge.s32.totalorder %s10, 10
      %s17 = sphi 0, %s29
      %s18 = sphi 0, %s25
      %s19 = sphi 0, %s17
      %s20 = sphi 0, %s18
      %s21 = sphi 0, %s19
      %s22 = sphi 0, %s20
      %s32 = sphi 0, %s34
      %s35 = sphi 0, %s32
      %s36 = sphi 0, %s35
      %s52 = sphi 0, %s36
      %s60 = sphi 0, %s62
      %s63 = sphi 0, %s60
      %s64 = sphi 0, %s63
      %s80 = sphi 0, %s64
      %s86 = sphi 0, %s88
      %s89 = sphi 0, %s86
      %s90 = sphi 0, %s89
      %s106 = sphi 0, %s90
      %s112 = sphi 0, %s114
      %s115 = sphi 0, %s112
      %s116 = sphi 0, %s115
      %s132 = sphi 0, %s116
      %s138 = sphi 0, %s140
      %s141 = sphi 0, %s138
      %s142 = sphi 0, %s141
      %s158 = sphi 0, %s142
    $region4: #{v_net_forward.3} parent=1 // loop_header_branch
      %13 = sbr.rel (%p11) target = $region8
    $region5: #{v_net_forward.3} parent=1 // loop_body
      %s15 = ssub.s32 %s10, 1
      %s16 = ssub.s32 %s10, 2
      %s23 = sadd.s32 1, %s18
      %p24 = scmp.ge.s32.totalorder %s23, 4
      %s25 = scalar_select %p24, 0, %s23
      %s26 = sadd.s32 1, %s17
      %s27 = scalar_select %p24, %s26, %s17
      %p28 = scmp.ge.s32.totalorder %s27, 2
      %s29 = scalar_select %p28, 0, %s27
      %s30 = ssub.s32 %s18, %s25
      %p31 = scmp.eq.s32.totalorder %s30, 0
      %s33 = sadd.s32 %s32, 1
      %s34 = scalar_select %p31, %s32, %s33
      %p37 = pneg %p31
      %p38 = scmp.eq.s32.totalorder %s10, 7
      %p39 = por %p37, %p38
      %p40 = scmp.ne.s32.totalorder %s32, %s35
      %p41 = scmp.eq.s32.totalorder %s10, 0
      %p42 = por %p40, %p41
      %p43 = scmp.ne.s32.totalorder %s32, %s35
      %p44 = scmp.eq.s32.totalorder %s15, 7
      %p45 = por %p43, %p44
      %p46 = scmp.ne.s32.totalorder %s35, %s36
      %p47 = scmp.eq.s32.totalorder %s15, 0
      %p48 = por %p46, %p47
      %p49 = scmp.ne.s32.totalorder %s35, %s36
      %p50 = scmp.eq.s32.totalorder %s16, 7
      %p51 = por %p49, %p50
      %p53 = scmp.ne.s32.totalorder %s36, %s52
      %p54 = scmp.eq.s32.totalorder %s16, 0
      %p55 = por %p53, %p54
      %s56 = ssub.s32 %s18, %s25
      %s57 = ssub.s32 %s17, %s29
      %s58 = sor.u32 %s56, %s57
      %p59 = scmp.eq.s32.totalorder %s58, 0
      %s61 = sadd.s32 %s60, 1
      %s62 = scalar_select %p59, %s60, %s61
      %p65 = pneg %p59
      %p66 = scmp.eq.s32.totalorder %s10, 7
      %p67 = por %p65, %p66
      %p68 = scmp.ne.s32.totalorder %s60, %s63
      %p69 = scmp.eq.s32.totalorder %s10, 0
      %p70 = por %p68, %p69
      %p71 = scmp.ne.s32.totalorder %s60, %s63
      %p72 = scmp.eq.s32.totalorder %s15, 7
      %p73 = por %p71, %p72
      %p74 = scmp.ne.s32.totalorder %s63, %s64
      %p75 = scmp.eq.s32.totalorder %s15, 0
      %p76 = por %p74, %p75
      %p77 = scmp.ne.s32.totalorder %s63, %s64
      %p78 = scmp.eq.s32.totalorder %s16, 7
      %p79 = por %p77, %p78
      %p81 = scmp.ne.s32.totalorder %s64, %s80
      %p82 = scmp.eq.s32.totalorder %s16, 0
      %p83 = por %p81, %p82
      %s84 = ssub.s32 %s17, %s29
      %p85 = scmp.eq.s32.totalorder %s84, 0
      %s87 = sadd.s32 %s86, 1
      %s88 = scalar_select %p85, %s86, %s87
      %p91 = pneg %p85
      %p92 = scmp.eq.s32.totalorder %s10, 7
      %p93 = por %p91, %p92
      %p94 = scmp.ne.s32.totalorder %s86, %s89
      %p95 = scmp.eq.s32.totalorder %s10, 0
      %p96 = por %p94, %p95
      %p97 = scmp.ne.s32.totalorder %s86, %s89
      %p98 = scmp.eq.s32.totalorder %s15, 7
      %p99 = por %p97, %p98
      %p100 = scmp.ne.s32.totalorder %s89, %s90
      %p101 = scmp.eq.s32.totalorder %s15, 0
      %p102 = por %p100, %p101
      %p103 = scmp.ne.s32.totalorder %s89, %s90
      %p104 = scmp.eq.s32.totalorder %s16, 7
      %p105 = por %p103, %p104
      %p107 = scmp.ne.s32.totalorder %s90, %s106
      %p108 = scmp.eq.s32.totalorder %s16, 0
      %p109 = por %p107, %p108
      %s110 = ssub.s32 %s17, %s29
      %p111 = scmp.eq.s32.totalorder %s110, 0
      %s113 = sadd.s32 %s112, 1
      %s114 = scalar_select %p111, %s112, %s113
      %p117 = pneg %p111
      %p118 = scmp.eq.s32.totalorder %s10, 7
      %p119 = por %p117, %p118
      %p120 = scmp.ne.s32.totalorder %s112, %s115
      %p121 = scmp.eq.s32.totalorder %s10, 0
      %p122 = por %p120, %p121
      %p123 = scmp.ne.s32.totalorder %s112, %s115
      %p124 = scmp.eq.s32.totalorder %s15, 7
      %p125 = por %p123, %p124
      %p126 = scmp.ne.s32.totalorder %s115, %s116
      %p127 = scmp.eq.s32.totalorder %s15, 0
      %p128 = por %p126, %p127
      %p129 = scmp.ne.s32.totalorder %s115, %s116
      %p130 = scmp.eq.s32.totalorder %s16, 7
      %p131 = por %p129, %p130
      %p133 = scmp.ne.s32.totalorder %s116, %s132
      %p134 = scmp.eq.s32.totalorder %s16, 0
      %p135 = por %p133, %p134
      %s136 = ssub.s32 %s17, %s29
      %p137 = scmp.eq.s32.totalorder %s136, 0
      %s139 = sadd.s32 %s138, 1
      %s140 = scalar_select %p137, %s138, %s139
      %p143 = pneg %p137
      %p144 = scmp.eq.s32.totalorder %s10, 7
      %p145 = por %p143, %p144
      %p146 = scmp.ne.s32.totalorder %s138, %s141
      %p147 = scmp.eq.s32.totalorder %s10, 0
      %p148 = por %p146, %p147
      %p149 = scmp.ne.s32.totalorder %s138, %s141
      %p150 = scmp.eq.s32.totalorder %s15, 7
      %p151 = por %p149, %p150
      %p152 = scmp.ne.s32.totalorder %s141, %s142
      %p153 = scmp.eq.s32.totalorder %s15, 0
      %p154 = por %p152, %p153
      %p155 = scmp.ne.s32.totalorder %s141, %s142
      %p156 = scmp.eq.s32.totalorder %s16, 7
      %p157 = por %p155, %p156
      %p159 = scmp.ne.s32.totalorder %s142, %s158
      %p160 = scmp.eq.s32.totalorder %s16, 0
      %p161 = por %p159, %p160
      %p162 = scmp.le.s32.totalorder 1, %s10
      %p163 = scmp.lt.s32.totalorder %s10, 9
      %p164 = pnand %p162, %p163
      %p165 = pneg %p164
      // Predicated region
      $region9: #{v_net_forward.3} parent=5 // pred_check
        _
      $region10: #{v_net_forward.3} parent=5 // pred_check_branch
        %167 = sbr.rel (%p164) target = $region12
      $region11: #{v_net_forward.3} parent=5 // pred_region
        %s168 = ssub.s32 %s10, 1
      $region12: #{v_net_forward.3} parent=5 // pred_fallthru
        _
      %p169 = scmp.lt.s32.totalorder %s10, 8
      // Predicated region
      $region13: #{v_net_forward.3} parent=5 // pred_check
        %p170 = pneg %p169
      $region14: #{v_net_forward.3} parent=5 // pred_check_branch
        %172 = sbr.rel (%p170) target = $region16
      $region15: #{v_net_forward.3} parent=5 // pred_region
        // Predicated region
        $region17: #{v_net_forward.3} parent=15 // pred_check
          %p173 = pneg %p42
        $region18: #{v_net_forward.3} parent=15 // pred_check_branch
          %175 = sbr.rel (%p173) target = $region20
        $region19: #{v_net_forward.3} parent=15 // pred_region
          %s176 = smul.u32 11, %s18
          %p177 = scmp.lt.s32.totalorder %s176, 43
          %s178 = scalar_select %p177, %s176, 43
          %s179 = scalar_lea.vmem %s0, %s178
          %s180 = smul.u32 11, %s18
        $region20: #{v_net_forward.3} parent=15 // pred_fallthru
          _
        // Predicated region
        $region21: #{v_net_forward.3} parent=15 // pred_check
          %p181 = pneg %p70
        $region22: #{v_net_forward.3} parent=15 // pred_check_branch
          %183 = sbr.rel (%p181) target = $region24
        $region23: #{v_net_forward.3} parent=15 // pred_region
          %s184 = sand.u32 %s60, 1
          %s185 = sand.u32 %s60, 1
          %s186 = smul.addr %s185, 1408
          %s187 = scalar_lea.vmem [#allocation3], %s186
          %s188 = smul.u32 176, %s18
          %s189 = smul.u32 2, %s17
          %s190 = smul.addr %s188, 4
          %s191 = sadd.s32 %s189, %s190
          %s192 = smul.addr %s191, 4
          %s193 = scalar_lea.vmem %s1, %s192
          // Predicated region
          $region25: #{v_net_forward.3} parent=23 // pred_check
            _
          $region26: #{v_net_forward.3} parent=23 // pred_check_branch
            %195 = sbr.rel (0) target = $region28
          $region27: #{v_net_forward.3} parent=23 // pred_region
            // Predicated region
            $region29: #{v_net_forward.3} parent=27 // pred_check
              _
            $region30: #{v_net_forward.3} parent=27 // pred_check_branch
              %197 = sbr.rel (0) target = $region32
            $region31: #{v_net_forward.3} parent=27 // pred_region
              // Predicated region
              $region44: #{v_net_forward.3} parent=31 // pred_check
                _
              $region45: #{v_net_forward.3} parent=31 // pred_check_branch
                %562 = sbr.rel (0) target = $region47
              $region46: #{v_net_forward.3} parent=31 // pred_region
                loop: start=0, step=1, limit=1
                $region48: #{v_net_forward.3} parent=46 // loop_pre_header
                  _
                $region49: #{v_net_forward.3} parent=46 // loop_header
                  %s564 = sphi 0, %s568
                  %p565 = scmp.ge.s32.totalorder %s564, 1
                  %s569 = sphi %s193, %s193
                  %s570 = sphi %s187, %s187
                $region50: #{v_net_forward.3} parent=46 // loop_header_branch
                  %567 = sbr.rel (%p565) target = $region54
                $region51: #{v_net_forward.3} parent=46 // loop_body
                  %v571 = vld [vmem:[%s569] sm:$0xff]
                  %572 = vst [vmem:[%s570] sm:$0xff] %v571
                  %v573 = vld [vmem:[%s569 + $0x10] sm:$0xff]
                  %574 = vst [vmem:[%s570 + $0x8] sm:$0xff] %v573
                  %v575 = vld [vmem:[%s569 + $0x20] sm:$0xff]
                  %576 = vst [vmem:[%s570 + $0x10] sm:$0xff] %v575
                  %v577 = vld [vmem:[%s569 + $0x30] sm:$0xff]
                  %578 = vst [vmem:[%s570 + $0x18] sm:$0xff] %v577
                  %v579 = vld [vmem:[%s569 + $0x40] sm:$0xff]
                  %580 = vst [vmem:[%s570 + $0x20] sm:$0xff] %v579
                  %v581 = vld [vmem:[%s569 + $0x50] sm:$0xff]
                  %582 = vst [vmem:[%s570 + $0x28] sm:$0xff] %v581
                  %v583 = vld [vmem:[%s569 + $0x60] sm:$0xff]
                  %584 = vst [vmem:[%s570 + $0x30] sm:$0xff] %v583
                  %v585 = vld [vmem:[%s569 + $0x70] sm:$0xff]
                  %586 = vst [vmem:[%s570 + $0x38] sm:$0xff] %v585
                  %v587 = vld [vmem:[%s569 + $0x80] sm:$0xff]
                  %588 = vst [vmem:[%s570 + $0x40] sm:$0xff] %v587
                  %v589 = vld [vmem:[%s569 + $0x90] sm:$0xff]
                  %590 = vst [vmem:[%s570 + $0x48] sm:$0xff] %v589
                  %v591 = vld [vmem:[%s569 + $0xa0] sm:$0xff]
                  %592 = vst [vmem:[%s570 + $0x50] sm:$0xff] %v591
                  %v593 = vld [vmem:[%s569 + $0xb0] sm:$0xff]
                  %594 = vst [vmem:[%s570 + $0x58] sm:$0xff] %v593
                  %v595 = vld [vmem:[%s569 + $0xc0] sm:$0xff]
                  %596 = vst [vmem:[%s570 + $0x60] sm:$0xff] %v595
                  %v597 = vld [vmem:[%s569 + $0xd0] sm:$0xff]
                  %598 = vst [vmem:[%s570 + $0x68] sm:$0xff] %v597
                  %v599 = vld [vmem:[%s569 + $0xe0] sm:$0xff]
                  %600 = vst [vmem:[%s570 + $0x70] sm:$0xff] %v599
                  %v601 = vld [vmem:[%s569 + $0xf0] sm:$0xff]
                  %602 = vst [vmem:[%s570 + $0x78] sm:$0xff] %v601
                  %v603 = vld [vmem:[%s569 + $0x100] sm:$0xff]
                  %604 = vst [vmem:[%s570 + $0x80] sm:$0xff] %v603
                  %v605 = vld [vmem:[%s569 + $0x110] sm:$0xff]
                  %606 = vst [vmem:[%s570 + $0x88] sm:$0xff] %v605
                  %v607 = vld [vmem:[%s569 + $0x120] sm:$0xff]
                  %608 = vst [vmem:[%s570 + $0x90] sm:$0xff] %v607
                  %v609 = vld [vmem:[%s569 + $0x130] sm:$0xff]
                  %610 = vst [vmem:[%s570 + $0x98] sm:$0xff] %v609
                  %v611 = vld [vmem:[%s569 + $0x140] sm:$0xff]
                  %612 = vst [vmem:[%s570 + $0xa0] sm:$0xff] %v611
                  %v613 = vld [vmem:[%s569 + $0x150] sm:$0xff]
                  %614 = vst [vmem:[%s570 + $0xa8] sm:$0xff] %v613
                  %v615 = vld [vmem:[%s569 + $0x160] sm:$0xff]
                  %616 = vst [vmem:[%s570 + $0xb0] sm:$0xff] %v615
                  %v617 = vld [vmem:[%s569 + $0x170] sm:$0xff]
                  %618 = vst [vmem:[%s570 + $0xb8] sm:$0xff] %v617
                  %v619 = vld [vmem:[%s569 + $0x180] sm:$0xff]
                  %620 = vst [vmem:[%s570 + $0xc0] sm:$0xff] %v619
                  %v621 = vld [vmem:[%s569 + $0x190] sm:$0xff]
                  %622 = vst [vmem:[%s570 + $0xc8] sm:$0xff] %v621
                  %v623 = vld [vmem:[%s569 + $0x1a0] sm:$0xff]
                  %624 = vst [vmem:[%s570 + $0xd0] sm:$0xff] %v623
                  %v625 = vld [vmem:[%s569 + $0x1b0] sm:$0xff]
                  %626 = vst [vmem:[%s570 + $0xd8] sm:$0xff] %v625
                  %v627 = vld [vmem:[%s569 + $0x1c0] sm:$0xff]
                  %628 = vst [vmem:[%s570 + $0xe0] sm:$0xff] %v627
                  %v629 = vld [vmem:[%s569 + $0x1d0] sm:$0xff]
                  %630 = vst [vmem:[%s570 + $0xe8] sm:$0xff] %v629
                  %v631 = vld [vmem:[%s569 + $0x1e0] sm:$0xff]
                  %632 = vst [vmem:[%s570 + $0xf0] sm:$0xff] %v631
                  %v633 = vld [vmem:[%s569 + $0x1f0] sm:$0xff]
                  %634 = vst [vmem:[%s570 + $0xf8] sm:$0xff] %v633
                  %v635 = vld [vmem:[%s569 + $0x200] sm:$0xff]
                  %636 = vst [vmem:[%s570 + $0x100] sm:$0xff] %v635
                  %v637 = vld [vmem:[%s569 + $0x210] sm:$0xff]
                  %638 = vst [vmem:[%s570 + $0x108] sm:$0xff] %v637
                  %v639 = vld [vmem:[%s569 + $0x220] sm:$0xff]
                  %640 = vst [vmem:[%s570 + $0x110] sm:$0xff] %v639
                  %v641 = vld [vmem:[%s569 + $0x230] sm:$0xff]
                  %642 = vst [vmem:[%s570 + $0x118] sm:$0xff] %v641
                  %v643 = vld [vmem:[%s569 + $0x240] sm:$0xff]
                  %644 = vst [vmem:[%s570 + $0x120] sm:$0xff] %v643
                  %v645 = vld [vmem:[%s569 + $0x250] sm:$0xff]
                  %646 = vst [vmem:[%s570 + $0x128] sm:$0xff] %v645
                  %v647 = vld [vmem:[%s569 + $0x260] sm:$0xff]
                  %648 = vst [vmem:[%s570 + $0x130] sm:$0xff] %v647
                  %v649 = vld [vmem:[%s569 + $0x270] sm:$0xff]
                  %650 = vst [vmem:[%s570 + $0x138] sm:$0xff] %v649
                  %v651 = vld [vmem:[%s569 + $0x280] sm:$0xff]
                  %652 = vst [vmem:[%s570 + $0x140] sm:$0xff] %v651
                  %v653 = vld [vmem:[%s569 + $0x290] sm:$0xff]
                  %654 = vst [vmem:[%s570 + $0x148] sm:$0xff] %v653
                  %v655 = vld [vmem:[%s569 + $0x2a0] sm:$0xff]
                  %656 = vst [vmem:[%s570 + $0x150] sm:$0xff] %v655
                  %v657 = vld [vmem:[%s569 + $0x2b0] sm:$0xff]
                  %658 = vst [vmem:[%s570 + $0x158] sm:$0xff] %v657
                  %v659 = vld [vmem:[%s569 + $0x2c0] sm:$0xff]
                  %660 = vst [vmem:[%s570 + $0x160] sm:$0xff] %v659
                  %v661 = vld [vmem:[%s569 + $0x2d0] sm:$0xff]
                  %662 = vst [vmem:[%s570 + $0x168] sm:$0xff] %v661
                  %v663 = vld [vmem:[%s569 + $0x2e0] sm:$0xff]
                  %664 = vst [vmem:[%s570 + $0x170] sm:$0xff] %v663
                  %v665 = vld [vmem:[%s569 + $0x2f0] sm:$0xff]
                  %666 = vst [vmem:[%s570 + $0x178] sm:$0xff] %v665
                  %v667 = vld [vmem:[%s569 + $0x300] sm:$0xff]
                  %668 = vst [vmem:[%s570 + $0x180] sm:$0xff] %v667
                  %v669 = vld [vmem:[%s569 + $0x310] sm:$0xff]
                  %670 = vst [vmem:[%s570 + $0x188] sm:$0xff] %v669
                  %v671 = vld [vmem:[%s569 + $0x320] sm:$0xff]
                  %672 = vst [vmem:[%s570 + $0x190] sm:$0xff] %v671
                  %v673 = vld [vmem:[%s569 + $0x330] sm:$0xff]
                  %674 = vst [vmem:[%s570 + $0x198] sm:$0xff] %v673
                  %v675 = vld [vmem:[%s569 + $0x340] sm:$0xff]
                  %676 = vst [vmem:[%s570 + $0x1a0] sm:$0xff] %v675
                  %v677 = vld [vmem:[%s569 + $0x350] sm:$0xff]
                  %678 = vst [vmem:[%s570 + $0x1a8] sm:$0xff] %v677
                  %v679 = vld [vmem:[%s569 + $0x360] sm:$0xff]
                  %680 = vst [vmem:[%s570 + $0x1b0] sm:$0xff] %v679
                  %v681 = vld [vmem:[%s569 + $0x370] sm:$0xff]
                  %682 = vst [vmem:[%s570 + $0x1b8] sm:$0xff] %v681
                  %v683 = vld [vmem:[%s569 + $0x380] sm:$0xff]
                  %684 = vst [vmem:[%s570 + $0x1c0] sm:$0xff] %v683
                  %v685 = vld [vmem:[%s569 + $0x390] sm:$0xff]
                  %686 = vst [vmem:[%s570 + $0x1c8] sm:$0xff] %v685
                  %v687 = vld [vmem:[%s569 + $0x3a0] sm:$0xff]
                  %688 = vst [vmem:[%s570 + $0x1d0] sm:$0xff] %v687
                  %v689 = vld [vmem:[%s569 + $0x3b0] sm:$0xff]
                  %690 = vst [vmem:[%s570 + $0x1d8] sm:$0xff] %v689
                  %v691 = vld [vmem:[%s569 + $0x3c0] sm:$0xff]
                  %692 = vst [vmem:[%s570 + $0x1e0] sm:$0xff] %v691
                  %v693 = vld [vmem:[%s569 + $0x3d0] sm:$0xff]
                  %694 = vst [vmem:[%s570 + $0x1e8] sm:$0xff] %v693
                  %v695 = vld [vmem:[%s569 + $0x3e0] sm:$0xff]
                  %696 = vst [vmem:[%s570 + $0x1f0] sm:$0xff] %v695
                  %v697 = vld [vmem:[%s569 + $0x3f0] sm:$0xff]
                  %698 = vst [vmem:[%s570 + $0x1f8] sm:$0xff] %v697
                  %v699 = vld [vmem:[%s569 + $0x400] sm:$0xff]
                  %700 = vst [vmem:[%s570 + $0x200] sm:$0xff] %v699
                  %v701 = vld [vmem:[%s569 + $0x410] sm:$0xff]
                  %702 = vst [vmem:[%s570 + $0x208] sm:$0xff] %v701
                  %v703 = vld [vmem:[%s569 + $0x420] sm:$0xff]
                  %704 = vst [vmem:[%s570 + $0x210] sm:$0xff] %v703
                  %v705 = vld [vmem:[%s569 + $0x430] sm:$0xff]
                  %706 = vst [vmem:[%s570 + $0x218] sm:$0xff] %v705
                  %v707 = vld [vmem:[%s569 + $0x440] sm:$0xff]
                  %708 = vst [vmem:[%s570 + $0x220] sm:$0xff] %v707
                  %v709 = vld [vmem:[%s569 + $0x450] sm:$0xff]
                  %710 = vst [vmem:[%s570 + $0x228] sm:$0xff] %v709
                  %v711 = vld [vmem:[%s569 + $0x460] sm:$0xff]
                  %712 = vst [vmem:[%s570 + $0x230] sm:$0xff] %v711
                  %v713 = vld [vmem:[%s569 + $0x470] sm:$0xff]
                  %714 = vst [vmem:[%s570 + $0x238] sm:$0xff] %v713
                  %v715 = vld [vmem:[%s569 + $0x480] sm:$0xff]
                  %716 = vst [vmem:[%s570 + $0x240] sm:$0xff] %v715
                  %v717 = vld [vmem:[%s569 + $0x490] sm:$0xff]
                  %718 = vst [vmem:[%s570 + $0x248] sm:$0xff] %v717
                  %v719 = vld [vmem:[%s569 + $0x4a0] sm:$0xff]
                  %720 = vst [vmem:[%s570 + $0x250] sm:$0xff] %v719
                  %v721 = vld [vmem:[%s569 + $0x4b0] sm:$0xff]
                  %722 = vst [vmem:[%s570 + $0x258] sm:$0xff] %v721
                  %v723 = vld [vmem:[%s569 + $0x4c0] sm:$0xff]
                  %724 = vst [vmem:[%s570 + $0x260] sm:$0xff] %v723
                  %v725 = vld [vmem:[%s569 + $0x4d0] sm:$0xff]
                  %726 = vst [vmem:[%s570 + $0x268] sm:$0xff] %v725
                  %v727 = vld [vmem:[%s569 + $0x4e0] sm:$0xff]
                  %728 = vst [vmem:[%s570 + $0x270] sm:$0xff] %v727
                  %v729 = vld [vmem:[%s569 + $0x4f0] sm:$0xff]
                  %730 = vst [vmem:[%s570 + $0x278] sm:$0xff] %v729
                  %v731 = vld [vmem:[%s569 + $0x500] sm:$0xff]
                  %732 = vst [vmem:[%s570 + $0x280] sm:$0xff] %v731
                  %v733 = vld [vmem:[%s569 + $0x510] sm:$0xff]
                  %734 = vst [vmem:[%s570 + $0x288] sm:$0xff] %v733
                  %v735 = vld [vmem:[%s569 + $0x520] sm:$0xff]
                  %736 = vst [vmem:[%s570 + $0x290] sm:$0xff] %v735
                  %v737 = vld [vmem:[%s569 + $0x530] sm:$0xff]
                  %738 = vst [vmem:[%s570 + $0x298] sm:$0xff] %v737
                  %v739 = vld [vmem:[%s569 + $0x540] sm:$0xff]
                  %740 = vst [vmem:[%s570 + $0x2a0] sm:$0xff] %v739
                  %v741 = vld [vmem:[%s569 + $0x550] sm:$0xff]
                  %742 = vst [vmem:[%s570 + $0x2a8] sm:$0xff] %v741
                  %v743 = vld [vmem:[%s569 + $0x560] sm:$0xff]
                  %744 = vst [vmem:[%s570 + $0x2b0] sm:$0xff] %v743
                  %v745 = vld [vmem:[%s569 + $0x570] sm:$0xff]
                  %746 = vst [vmem:[%s570 + $0x2b8] sm:$0xff] %v745
                  %v747 = vld [vmem:[%s569 + $0x580] sm:$0xff]
                  %748 = vst [vmem:[%s570 + $0x2c0] sm:$0xff] %v747
                  %v749 = vld [vmem:[%s569 + $0x590] sm:$0xff]
                  %750 = vst [vmem:[%s570 + $0x2c8] sm:$0xff] %v749
                  %v751 = vld [vmem:[%s569 + $0x5a0] sm:$0xff]
                  %752 = vst [vmem:[%s570 + $0x2d0] sm:$0xff] %v751
                  %v753 = vld [vmem:[%s569 + $0x5b0] sm:$0xff]
                  %754 = vst [vmem:[%s570 + $0x2d8] sm:$0xff] %v753
                  %v755 = vld [vmem:[%s569 + $0x5c0] sm:$0xff]
                  %756 = vst [vmem:[%s570 + $0x2e0] sm:$0xff] %v755
                  %v757 = vld [vmem:[%s569 + $0x5d0] sm:$0xff]
                  %758 = vst [vmem:[%s570 + $0x2e8] sm:$0xff] %v757
                  %v759 = vld [vmem:[%s569 + $0x5e0] sm:$0xff]
                  %760 = vst [vmem:[%s570 + $0x2f0] sm:$0xff] %v759
                  %v761 = vld [vmem:[%s569 + $0x5f0] sm:$0xff]
                  %762 = vst [vmem:[%s570 + $0x2f8] sm:$0xff] %v761
                  %v763 = vld [vmem:[%s569 + $0x600] sm:$0xff]
                  %764 = vst [vmem:[%s570 + $0x300] sm:$0xff] %v763
                  %v765 = vld [vmem:[%s569 + $0x610] sm:$0xff]
                  %766 = vst [vmem:[%s570 + $0x308] sm:$0xff] %v765
                  %v767 = vld [vmem:[%s569 + $0x620] sm:$0xff]
                  %768 = vst [vmem:[%s570 + $0x310] sm:$0xff] %v767
                  %v769 = vld [vmem:[%s569 + $0x630] sm:$0xff]
                  %770 = vst [vmem:[%s570 + $0x318] sm:$0xff] %v769
                  %v771 = vld [vmem:[%s569 + $0x640] sm:$0xff]
                  %772 = vst [vmem:[%s570 + $0x320] sm:$0xff] %v771
                  %v773 = vld [vmem:[%s569 + $0x650] sm:$0xff]
                  %774 = vst [vmem:[%s570 + $0x328] sm:$0xff] %v773
                  %v775 = vld [vmem:[%s569 + $0x660] sm:$0xff]
                  %776 = vst [vmem:[%s570 + $0x330] sm:$0xff] %v775
                  %v777 = vld [vmem:[%s569 + $0x670] sm:$0xff]
                  %778 = vst [vmem:[%s570 + $0x338] sm:$0xff] %v777
                  %v779 = vld [vmem:[%s569 + $0x680] sm:$0xff]
                  %780 = vst [vmem:[%s570 + $0x340] sm:$0xff] %v779
                  %v781 = vld [vmem:[%s569 + $0x690] sm:$0xff]
                  %782 = vst [vmem:[%s570 + $0x348] sm:$0xff] %v781
                  %v783 = vld [vmem:[%s569 + $0x6a0] sm:$0xff]
                  %784 = vst [vmem:[%s570 + $0x350] sm:$0xff] %v783
                  %v785 = vld [vmem:[%s569 + $0x6b0] sm:$0xff]
                  %786 = vst [vmem:[%s570 + $0x358] sm:$0xff] %v785
                  %v787 = vld [vmem:[%s569 + $0x6c0] sm:$0xff]
                  %788 = vst [vmem:[%s570 + $0x360] sm:$0xff] %v787
                  %v789 = vld [vmem:[%s569 + $0x6d0] sm:$0xff]
                  %790 = vst [vmem:[%s570 + $0x368] sm:$0xff] %v789
                  %v791 = vld [vmem:[%s569 + $0x6e0] sm:$0xff]
                  %792 = vst [vmem:[%s570 + $0x370] sm:$0xff] %v791
                  %v793 = vld [vmem:[%s569 + $0x6f0] sm:$0xff]
                  %794 = vst [vmem:[%s570 + $0x378] sm:$0xff] %v793
                  %v795 = vld [vmem:[%s569 + $0x700] sm:$0xff]
                  %796 = vst [vmem:[%s570 + $0x380] sm:$0xff] %v795
                  %v797 = vld [vmem:[%s569 + $0x710] sm:$0xff]
                  %798 = vst [vmem:[%s570 + $0x388] sm:$0xff] %v797
                  %v799 = vld [vmem:[%s569 + $0x720] sm:$0xff]
                  %800 = vst [vmem:[%s570 + $0x390] sm:$0xff] %v799
                  %v801 = vld [vmem:[%s569 + $0x730] sm:$0xff]
                  %802 = vst [vmem:[%s570 + $0x398] sm:$0xff] %v801
                  %v803 = vld [vmem:[%s569 + $0x740] sm:$0xff]
                  %804 = vst [vmem:[%s570 + $0x3a0] sm:$0xff] %v803
                  %v805 = vld [vmem:[%s569 + $0x750] sm:$0xff]
                  %806 = vst [vmem:[%s570 + $0x3a8] sm:$0xff] %v805
                  %v807 = vld [vmem:[%s569 + $0x760] sm:$0xff]
                  %808 = vst [vmem:[%s570 + $0x3b0] sm:$0xff] %v807
                  %v809 = vld [vmem:[%s569 + $0x770] sm:$0xff]
                  %810 = vst [vmem:[%s570 + $0x3b8] sm:$0xff] %v809
                  %v811 = vld [vmem:[%s569 + $0x780] sm:$0xff]
                  %812 = vst [vmem:[%s570 + $0x3c0] sm:$0xff] %v811
                  %v813 = vld [vmem:[%s569 + $0x790] sm:$0xff]
                  %814 = vst [vmem:[%s570 + $0x3c8] sm:$0xff] %v813
                  %v815 = vld [vmem:[%s569 + $0x7a0] sm:$0xff]
                  %816 = vst [vmem:[%s570 + $0x3d0] sm:$0xff] %v815
                  %v817 = vld [vmem:[%s569 + $0x7b0] sm:$0xff]
                  %818 = vst [vmem:[%s570 + $0x3d8] sm:$0xff] %v817
                  %v819 = vld [vmem:[%s569 + $0x7c0] sm:$0xff]
                  %820 = vst [vmem:[%s570 + $0x3e0] sm:$0xff] %v819
                  %v821 = vld [vmem:[%s569 + $0x7d0] sm:$0xff]
                  %822 = vst [vmem:[%s570 + $0x3e8] sm:$0xff] %v821
                  %v823 = vld [vmem:[%s569 + $0x7e0] sm:$0xff]
                  %824 = vst [vmem:[%s570 + $0x3f0] sm:$0xff] %v823
                  %v825 = vld [vmem:[%s569 + $0x7f0] sm:$0xff]
                  %826 = vst [vmem:[%s570 + $0x3f8] sm:$0xff] %v825
                  %v827 = vld [vmem:[%s569 + $0x800] sm:$0xff]
                  %828 = vst [vmem:[%s570 + $0x400] sm:$0xff] %v827
                  %v829 = vld [vmem:[%s569 + $0x810] sm:$0xff]
                  %830 = vst [vmem:[%s570 + $0x408] sm:$0xff] %v829
                  %v831 = vld [vmem:[%s569 + $0x820] sm:$0xff]
                  %832 = vst [vmem:[%s570 + $0x410] sm:$0xff] %v831
                  %v833 = vld [vmem:[%s569 + $0x830] sm:$0xff]
                  %834 = vst [vmem:[%s570 + $0x418] sm:$0xff] %v833
                  %v835 = vld [vmem:[%s569 + $0x840] sm:$0xff]
                  %836 = vst [vmem:[%s570 + $0x420] sm:$0xff] %v835
                  %v837 = vld [vmem:[%s569 + $0x850] sm:$0xff]
                  %838 = vst [vmem:[%s570 + $0x428] sm:$0xff] %v837
                  %v839 = vld [vmem:[%s569 + $0x860] sm:$0xff]
                  %840 = vst [vmem:[%s570 + $0x430] sm:$0xff] %v839
                  %v841 = vld [vmem:[%s569 + $0x870] sm:$0xff]
                  %842 = vst [vmem:[%s570 + $0x438] sm:$0xff] %v841
                  %v843 = vld [vmem:[%s569 + $0x880] sm:$0xff]
                  %844 = vst [vmem:[%s570 + $0x440] sm:$0xff] %v843
                  %v845 = vld [vmem:[%s569 + $0x890] sm:$0xff]
                  %846 = vst [vmem:[%s570 + $0x448] sm:$0xff] %v845
                  %v847 = vld [vmem:[%s569 + $0x8a0] sm:$0xff]
                  %848 = vst [vmem:[%s570 + $0x450] sm:$0xff] %v847
                  %v849 = vld [vmem:[%s569 + $0x8b0] sm:$0xff]
                  %850 = vst [vmem:[%s570 + $0x458] sm:$0xff] %v849
                  %v851 = vld [vmem:[%s569 + $0x8c0] sm:$0xff]
                  %852 = vst [vmem:[%s570 + $0x460] sm:$0xff] %v851
                  %v853 = vld [vmem:[%s569 + $0x8d0] sm:$0xff]
                  %854 = vst [vmem:[%s570 + $0x468] sm:$0xff] %v853
                  %v855 = vld [vmem:[%s569 + $0x8e0] sm:$0xff]
                  %856 = vst [vmem:[%s570 + $0x470] sm:$0xff] %v855
                  %v857 = vld [vmem:[%s569 + $0x8f0] sm:$0xff]
                  %858 = vst [vmem:[%s570 + $0x478] sm:$0xff] %v857
                  %v859 = vld [vmem:[%s569 + $0x900] sm:$0xff]
                  %860 = vst [vmem:[%s570 + $0x480] sm:$0xff] %v859
                  %v861 = vld [vmem:[%s569 + $0x910] sm:$0xff]
                  %862 = vst [vmem:[%s570 + $0x488] sm:$0xff] %v861
                  %v863 = vld [vmem:[%s569 + $0x920] sm:$0xff]
                  %864 = vst [vmem:[%s570 + $0x490] sm:$0xff] %v863
                  %v865 = vld [vmem:[%s569 + $0x930] sm:$0xff]
                  %866 = vst [vmem:[%s570 + $0x498] sm:$0xff] %v865
                  %v867 = vld [vmem:[%s569 + $0x940] sm:$0xff]
                  %868 = vst [vmem:[%s570 + $0x4a0] sm:$0xff] %v867
                  %v869 = vld [vmem:[%s569 + $0x950] sm:$0xff]
                  %870 = vst [vmem:[%s570 + $0x4a8] sm:$0xff] %v869
                  %v871 = vld [vmem:[%s569 + $0x960] sm:$0xff]
                  %872 = vst [vmem:[%s570 + $0x4b0] sm:$0xff] %v871
                  %v873 = vld [vmem:[%s569 + $0x970] sm:$0xff]
                  %874 = vst [vmem:[%s570 + $0x4b8] sm:$0xff] %v873
                  %v875 = vld [vmem:[%s569 + $0x980] sm:$0xff]
                  %876 = vst [vmem:[%s570 + $0x4c0] sm:$0xff] %v875
                  %v877 = vld [vmem:[%s569 + $0x990] sm:$0xff]
                  %878 = vst [vmem:[%s570 + $0x4c8] sm:$0xff] %v877
                  %v879 = vld [vmem:[%s569 + $0x9a0] sm:$0xff]
                  %880 = vst [vmem:[%s570 + $0x4d0] sm:$0xff] %v879
                  %v881 = vld [vmem:[%s569 + $0x9b0] sm:$0xff]
                  %882 = vst [vmem:[%s570 + $0x4d8] sm:$0xff] %v881
                  %v883 = vld [vmem:[%s569 + $0x9c0] sm:$0xff]
                  %884 = vst [vmem:[%s570 + $0x4e0] sm:$0xff] %v883
                  %v885 = vld [vmem:[%s569 + $0x9d0] sm:$0xff]
                  %886 = vst [vmem:[%s570 + $0x4e8] sm:$0xff] %v885
                  %v887 = vld [vmem:[%s569 + $0x9e0] sm:$0xff]
                  %888 = vst [vmem:[%s570 + $0x4f0] sm:$0xff] %v887
                  %v889 = vld [vmem:[%s569 + $0x9f0] sm:$0xff]
                  %890 = vst [vmem:[%s570 + $0x4f8] sm:$0xff] %v889
                  %v891 = vld [vmem:[%s569 + $0xa00] sm:$0xff]
                  %892 = vst [vmem:[%s570 + $0x500] sm:$0xff] %v891
                  %v893 = vld [vmem:[%s569 + $0xa10] sm:$0xff]
                  %894 = vst [vmem:[%s570 + $0x508] sm:$0xff] %v893
                  %v895 = vld [vmem:[%s569 + $0xa20] sm:$0xff]
                  %896 = vst [vmem:[%s570 + $0x510] sm:$0xff] %v895
                  %v897 = vld [vmem:[%s569 + $0xa30] sm:$0xff]
                  %898 = vst [vmem:[%s570 + $0x518] sm:$0xff] %v897
                  %v899 = vld [vmem:[%s569 + $0xa40] sm:$0xff]
                  %900 = vst [vmem:[%s570 + $0x520] sm:$0xff] %v899
                  %v901 = vld [vmem:[%s569 + $0xa50] sm:$0xff]
                  %902 = vst [vmem:[%s570 + $0x528] sm:$0xff] %v901
                  %v903 = vld [vmem:[%s569 + $0xa60] sm:$0xff]
                  %904 = vst [vmem:[%s570 + $0x530] sm:$0xff] %v903
                  %v905 = vld [vmem:[%s569 + $0xa70] sm:$0xff]
                  %906 = vst [vmem:[%s570 + $0x538] sm:$0xff] %v905
                  %v907 = vld [vmem:[%s569 + $0xa80] sm:$0xff]
                  %908 = vst [vmem:[%s570 + $0x540] sm:$0xff] %v907
                  %v909 = vld [vmem:[%s569 + $0xa90] sm:$0xff]
                  %910 = vst [vmem:[%s570 + $0x548] sm:$0xff] %v909
                  %v911 = vld [vmem:[%s569 + $0xaa0] sm:$0xff]
                  %912 = vst [vmem:[%s570 + $0x550] sm:$0xff] %v911
                  %v913 = vld [vmem:[%s569 + $0xab0] sm:$0xff]
                  %914 = vst [vmem:[%s570 + $0x558] sm:$0xff] %v913
                  %v915 = vld [vmem:[%s569 + $0xac0] sm:$0xff]
                  %916 = vst [vmem:[%s570 + $0x560] sm:$0xff] %v915
                  %v917 = vld [vmem:[%s569 + $0xad0] sm:$0xff]
                  %918 = vst [vmem:[%s570 + $0x568] sm:$0xff] %v917
                  %v919 = vld [vmem:[%s569 + $0xae0] sm:$0xff]
                  %920 = vst [vmem:[%s570 + $0x570] sm:$0xff] %v919
                  %v921 = vld [vmem:[%s569 + $0xaf0] sm:$0xff]
                  %922 = vst [vmem:[%s570 + $0x578] sm:$0xff] %v921
                $region52: #{v_net_forward.3} parent=46 // loop_footer
                  %s568 = sadd.s32 1, %s564
                $region53: #{v_net_forward.3} parent=46 // loop_footer_branch
                  %563 = sbr.rel target = $region49
                $region54: #{v_net_forward.3} parent=46 // loop_exit
                  _
              $region47: #{v_net_forward.3} parent=31 // pred_fallthru
                _
              // Predicated region
              $region55: #{v_net_forward.3} parent=31 // pred_check
                _
              $region56: #{v_net_forward.3} parent=31 // pred_check_branch
                %924 = sbr.rel target = $region58
              $region57: #{v_net_forward.3} parent=31 // pred_region
                _
              $region58: #{v_net_forward.3} parent=31 // pred_fallthru
                _
            $region32: #{v_net_forward.3} parent=27 // pred_fallthru
              _
            // Predicated region
            $region33: #{v_net_forward.3} parent=27 // pred_check
              _
            $region34: #{v_net_forward.3} parent=27 // pred_check_branch
              %199 = sbr.rel target = $region36
            $region35: #{v_net_forward.3} parent=27 // pred_region
              loop: start=0, step=1, limit=1
              $region37: #{v_net_forward.3} parent=35 // loop_pre_header
                _
              $region38: #{v_net_forward.3} parent=35 // loop_header
                %s202 = sphi 0, %s206
                %p203 = scmp.ge.s32.totalorder %s202, 1
                %s207 = sphi %s193, %s193
                %s208 = sphi %s187, %s187
              $region39: #{v_net_forward.3} parent=35 // loop_header_branch
                %205 = sbr.rel (%p203) target = $region43
              $region40: #{v_net_forward.3} parent=35 // loop_body
                %v209 = vld [vmem:[%s207] sm:$0xff]
                %210 = vst [vmem:[%s208] sm:$0xff] %v209
                %v211 = vld [vmem:[%s207 + $0x10] sm:$0xff]
                %212 = vst [vmem:[%s208 + $0x8] sm:$0xff] %v211
                %v213 = vld [vmem:[%s207 + $0x20] sm:$0xff]
                %214 = vst [vmem:[%s208 + $0x10] sm:$0xff] %v213
                %v215 = vld [vmem:[%s207 + $0x30] sm:$0xff]
                %216 = vst [vmem:[%s208 + $0x18] sm:$0xff] %v215
                %v217 = vld [vmem:[%s207 + $0x40] sm:$0xff]
                %218 = vst [vmem:[%s208 + $0x20] sm:$0xff] %v217
                %v219 = vld [vmem:[%s207 + $0x50] sm:$0xff]
                %220 = vst [vmem:[%s208 + $0x28] sm:$0xff] %v219
                %v221 = vld [vmem:[%s207 + $0x60] sm:$0xff]
                %222 = vst [vmem:[%s208 + $0x30] sm:$0xff] %v221
                %v223 = vld [vmem:[%s207 + $0x70] sm:$0xff]
                %224 = vst [vmem:[%s208 + $0x38] sm:$0xff] %v223
                %v225 = vld [vmem:[%s207 + $0x80] sm:$0xff]
                %226 = vst [vmem:[%s208 + $0x40] sm:$0xff] %v225
                %v227 = vld [vmem:[%s207 + $0x90] sm:$0xff]
                %228 = vst [vmem:[%s208 + $0x48] sm:$0xff] %v227
                %v229 = vld [vmem:[%s207 + $0xa0] sm:$0xff]
                %230 = vst [vmem:[%s208 + $0x50] sm:$0xff] %v229
                %v231 = vld [vmem:[%s207 + $0xb0] sm:$0xff]
                %232 = vst [vmem:[%s208 + $0x58] sm:$0xff] %v231
                %v233 = vld [vmem:[%s207 + $0xc0] sm:$0xff]
                %234 = vst [vmem:[%s208 + $0x60] sm:$0xff] %v233
                %v235 = vld [vmem:[%s207 + $0xd0] sm:$0xff]
                %236 = vst [vmem:[%s208 + $0x68] sm:$0xff] %v235
                %v237 = vld [vmem:[%s207 + $0xe0] sm:$0xff]
                %238 = vst [vmem:[%s208 + $0x70] sm:$0xff] %v237
                %v239 = vld [vmem:[%s207 + $0xf0] sm:$0xff]
                %240 = vst [vmem:[%s208 + $0x78] sm:$0xff] %v239
                %v241 = vld [vmem:[%s207 + $0x100] sm:$0xff]
                %242 = vst [vmem:[%s208 + $0x80] sm:$0xff] %v241
                %v243 = vld [vmem:[%s207 + $0x110] sm:$0xff]
                %244 = vst [vmem:[%s208 + $0x88] sm:$0xff] %v243
                %v245 = vld [vmem:[%s207 + $0x120] sm:$0xff]
                %246 = vst [vmem:[%s208 + $0x90] sm:$0xff] %v245
                %v247 = vld [vmem:[%s207 + $0x130] sm:$0xff]
                %248 = vst [vmem:[%s208 + $0x98] sm:$0xff] %v247
                %v249 = vld [vmem:[%s207 + $0x140] sm:$0xff]
                %250 = vst [vmem:[%s208 + $0xa0] sm:$0xff] %v249
                %v251 = vld [vmem:[%s207 + $0x150] sm:$0xff]
                %252 = vst [vmem:[%s208 + $0xa8] sm:$0xff] %v251
                %v253 = vld [vmem:[%s207 + $0x160] sm:$0xff]
                %254 = vst [vmem:[%s208 + $0xb0] sm:$0xff] %v253
                %v255 = vld [vmem:[%s207 + $0x170] sm:$0xff]
                %256 = vst [vmem:[%s208 + $0xb8] sm:$0xff] %v255
                %v257 = vld [vmem:[%s207 + $0x180] sm:$0xff]
                %258 = vst [vmem:[%s208 + $0xc0] sm:$0xff] %v257
                %v259 = vld [vmem:[%s207 + $0x190] sm:$0xff]
                %260 = vst [vmem:[%s208 + $0xc8] sm:$0xff] %v259
                %v261 = vld [vmem:[%s207 + $0x1a0] sm:$0xff]
                %262 = vst [vmem:[%s208 + $0xd0] sm:$0xff] %v261
                %v263 = vld [vmem:[%s207 + $0x1b0] sm:$0xff]
                %264 = vst [vmem:[%s208 + $0xd8] sm:$0xff] %v263
                %v265 = vld [vmem:[%s207 + $0x1c0] sm:$0xff]
                %266 = vst [vmem:[%s208 + $0xe0] sm:$0xff] %v265
                %v267 = vld [vmem:[%s207 + $0x1d0] sm:$0xff]
                %268 = vst [vmem:[%s208 + $0xe8] sm:$0xff] %v267
                %v269 = vld [vmem:[%s207 + $0x1e0] sm:$0xff]
                %270 = vst [vmem:[%s208 + $0xf0] sm:$0xff] %v269
                %v271 = vld [vmem:[%s207 + $0x1f0] sm:$0xff]
                %272 = vst [vmem:[%s208 + $0xf8] sm:$0xff] %v271
                %v273 = vld [vmem:[%s207 + $0x200] sm:$0xff]
                %274 = vst [vmem:[%s208 + $0x100] sm:$0xff] %v273
                %v275 = vld [vmem:[%s207 + $0x210] sm:$0xff]
                %276 = vst [vmem:[%s208 + $0x108] sm:$0xff] %v275
                %v277 = vld [vmem:[%s207 + $0x220] sm:$0xff]
                %278 = vst [vmem:[%s208 + $0x110] sm:$0xff] %v277
                %v279 = vld [vmem:[%s207 + $0x230] sm:$0xff]
                %280 = vst [vmem:[%s208 + $0x118] sm:$0xff] %v279
                %v281 = vld [vmem:[%s207 + $0x240] sm:$0xff]
                %282 = vst [vmem:[%s208 + $0x120] sm:$0xff] %v281
                %v283 = vld [vmem:[%s207 + $0x250] sm:$0xff]
                %284 = vst [vmem:[%s208 + $0x128] sm:$0xff] %v283
                %v285 = vld [vmem:[%s207 + $0x260] sm:$0xff]
                %286 = vst [vmem:[%s208 + $0x130] sm:$0xff] %v285
                %v287 = vld [vmem:[%s207 + $0x270] sm:$0xff]
                %288 = vst [vmem:[%s208 + $0x138] sm:$0xff] %v287
                %v289 = vld [vmem:[%s207 + $0x280] sm:$0xff]
                %290 = vst [vmem:[%s208 + $0x140] sm:$0xff] %v289
                %v291 = vld [vmem:[%s207 + $0x290] sm:$0xff]
                %292 = vst [vmem:[%s208 + $0x148] sm:$0xff] %v291
                %v293 = vld [vmem:[%s207 + $0x2a0] sm:$0xff]
                %294 = vst [vmem:[%s208 + $0x150] sm:$0xff] %v293
                %v295 = vld [vmem:[%s207 + $0x2b0] sm:$0xff]
                %296 = vst [vmem:[%s208 + $0x158] sm:$0xff] %v295
                %v297 = vld [vmem:[%s207 + $0x2c0] sm:$0xff]
                %298 = vst [vmem:[%s208 + $0x160] sm:$0xff] %v297
                %v299 = vld [vmem:[%s207 + $0x2d0] sm:$0xff]
                %300 = vst [vmem:[%s208 + $0x168] sm:$0xff] %v299
                %v301 = vld [vmem:[%s207 + $0x2e0] sm:$0xff]
                %302 = vst [vmem:[%s208 + $0x170] sm:$0xff] %v301
                %v303 = vld [vmem:[%s207 + $0x2f0] sm:$0xff]
                %304 = vst [vmem:[%s208 + $0x178] sm:$0xff] %v303
                %v305 = vld [vmem:[%s207 + $0x300] sm:$0xff]
                %306 = vst [vmem:[%s208 + $0x180] sm:$0xff] %v305
                %v307 = vld [vmem:[%s207 + $0x310] sm:$0xff]
                %308 = vst [vmem:[%s208 + $0x188] sm:$0xff] %v307
                %v309 = vld [vmem:[%s207 + $0x320] sm:$0xff]
                %310 = vst [vmem:[%s208 + $0x190] sm:$0xff] %v309
                %v311 = vld [vmem:[%s207 + $0x330] sm:$0xff]
                %312 = vst [vmem:[%s208 + $0x198] sm:$0xff] %v311
                %v313 = vld [vmem:[%s207 + $0x340] sm:$0xff]
                %314 = vst [vmem:[%s208 + $0x1a0] sm:$0xff] %v313
                %v315 = vld [vmem:[%s207 + $0x350] sm:$0xff]
                %316 = vst [vmem:[%s208 + $0x1a8] sm:$0xff] %v315
                %v317 = vld [vmem:[%s207 + $0x360] sm:$0xff]
                %318 = vst [vmem:[%s208 + $0x1b0] sm:$0xff] %v317
                %v319 = vld [vmem:[%s207 + $0x370] sm:$0xff]
                %320 = vst [vmem:[%s208 + $0x1b8] sm:$0xff] %v319
                %v321 = vld [vmem:[%s207 + $0x380] sm:$0xff]
                %322 = vst [vmem:[%s208 + $0x1c0] sm:$0xff] %v321
                %v323 = vld [vmem:[%s207 + $0x390] sm:$0xff]
                %324 = vst [vmem:[%s208 + $0x1c8] sm:$0xff] %v323
                %v325 = vld [vmem:[%s207 + $0x3a0] sm:$0xff]
                %326 = vst [vmem:[%s208 + $0x1d0] sm:$0xff] %v325
                %v327 = vld [vmem:[%s207 + $0x3b0] sm:$0xff]
                %328 = vst [vmem:[%s208 + $0x1d8] sm:$0xff] %v327
                %v329 = vld [vmem:[%s207 + $0x3c0] sm:$0xff]
                %330 = vst [vmem:[%s208 + $0x1e0] sm:$0xff] %v329
                %v331 = vld [vmem:[%s207 + $0x3d0] sm:$0xff]
                %332 = vst [vmem:[%s208 + $0x1e8] sm:$0xff] %v331
                %v333 = vld [vmem:[%s207 + $0x3e0] sm:$0xff]
                %334 = vst [vmem:[%s208 + $0x1f0] sm:$0xff] %v333
                %v335 = vld [vmem:[%s207 + $0x3f0] sm:$0xff]
                %336 = vst [vmem:[%s208 + $0x1f8] sm:$0xff] %v335
                %v337 = vld [vmem:[%s207 + $0x400] sm:$0xff]
                %338 = vst [vmem:[%s208 + $0x200] sm:$0xff] %v337
                %v339 = vld [vmem:[%s207 + $0x410] sm:$0xff]
                %340 = vst [vmem:[%s208 + $0x208] sm:$0xff] %v339
                %v341 = vld [vmem:[%s207 + $0x420] sm:$0xff]
                %342 = vst [vmem:[%s208 + $0x210] sm:$0xff] %v341
                %v343 = vld [vmem:[%s207 + $0x430] sm:$0xff]
                %344 = vst [vmem:[%s208 + $0x218] sm:$0xff] %v343
                %v345 = vld [vmem:[%s207 + $0x440] sm:$0xff]
                %346 = vst [vmem:[%s208 + $0x220] sm:$0xff] %v345
                %v347 = vld [vmem:[%s207 + $0x450] sm:$0xff]
                %348 = vst [vmem:[%s208 + $0x228] sm:$0xff] %v347
                %v349 = vld [vmem:[%s207 + $0x460] sm:$0xff]
                %350 = vst [vmem:[%s208 + $0x230] sm:$0xff] %v349
                %v351 = vld [vmem:[%s207 + $0x470] sm:$0xff]
                %352 = vst [vmem:[%s208 + $0x238] sm:$0xff] %v351
                %v353 = vld [vmem:[%s207 + $0x480] sm:$0xff]
                %354 = vst [vmem:[%s208 + $0x240] sm:$0xff] %v353
                %v355 = vld [vmem:[%s207 + $0x490] sm:$0xff]
                %356 = vst [vmem:[%s208 + $0x248] sm:$0xff] %v355
                %v357 = vld [vmem:[%s207 + $0x4a0] sm:$0xff]
                %358 = vst [vmem:[%s208 + $0x250] sm:$0xff] %v357
                %v359 = vld [vmem:[%s207 + $0x4b0] sm:$0xff]
                %360 = vst [vmem:[%s208 + $0x258] sm:$0xff] %v359
                %v361 = vld [vmem:[%s207 + $0x4c0] sm:$0xff]
                %362 = vst [vmem:[%s208 + $0x260] sm:$0xff] %v361
                %v363 = vld [vmem:[%s207 + $0x4d0] sm:$0xff]
                %364 = vst [vmem:[%s208 + $0x268] sm:$0xff] %v363
                %v365 = vld [vmem:[%s207 + $0x4e0] sm:$0xff]
                %366 = vst [vmem:[%s208 + $0x270] sm:$0xff] %v365
                %v367 = vld [vmem:[%s207 + $0x4f0] sm:$0xff]
                %368 = vst [vmem:[%s208 + $0x278] sm:$0xff] %v367
                %v369 = vld [vmem:[%s207 + $0x500] sm:$0xff]
                %370 = vst [vmem:[%s208 + $0x280] sm:$0xff] %v369
                %v371 = vld [vmem:[%s207 + $0x510] sm:$0xff]
                %372 = vst [vmem:[%s208 + $0x288] sm:$0xff] %v371
                %v373 = vld [vmem:[%s207 + $0x520] sm:$0xff]
                %374 = vst [vmem:[%s208 + $0x290] sm:$0xff] %v373
                %v375 = vld [vmem:[%s207 + $0x530] sm:$0xff]
                %376 = vst [vmem:[%s208 + $0x298] sm:$0xff] %v375
                %v377 = vld [vmem:[%s207 + $0x540] sm:$0xff]
                %378 = vst [vmem:[%s208 + $0x2a0] sm:$0xff] %v377
                %v379 = vld [vmem:[%s207 + $0x550] sm:$0xff]
                %380 = vst [vmem:[%s208 + $0x2a8] sm:$0xff] %v379
                %v381 = vld [vmem:[%s207 + $0x560] sm:$0xff]
                %382 = vst [vmem:[%s208 + $0x2b0] sm:$0xff] %v381
                %v383 = vld [vmem:[%s207 + $0x570] sm:$0xff]
                %384 = vst [vmem:[%s208 + $0x2b8] sm:$0xff] %v383
                %v385 = vld [vmem:[%s207 + $0x580] sm:$0xff]
                %386 = vst [vmem:[%s208 + $0x2c0] sm:$0xff] %v385
                %v387 = vld [vmem:[%s207 + $0x590] sm:$0xff]
                %388 = vst [vmem:[%s208 + $0x2c8] sm:$0xff] %v387
                %v389 = vld [vmem:[%s207 + $0x5a0] sm:$0xff]
                %390 = vst [vmem:[%s208 + $0x2d0] sm:$0xff] %v389
                %v391 = vld [vmem:[%s207 + $0x5b0] sm:$0xff]
                %392 = vst [vmem:[%s208 + $0x2d8] sm:$0xff] %v391
                %v393 = vld [vmem:[%s207 + $0x5c0] sm:$0xff]
                %394 = vst [vmem:[%s208 + $0x2e0] sm:$0xff] %v393
                %v395 = vld [vmem:[%s207 + $0x5d0] sm:$0xff]
                %396 = vst [vmem:[%s208 + $0x2e8] sm:$0xff] %v395
                %v397 = vld [vmem:[%s207 + $0x5e0] sm:$0xff]
                %398 = vst [vmem:[%s208 + $0x2f0] sm:$0xff] %v397
                %v399 = vld [vmem:[%s207 + $0x5f0] sm:$0xff]
                %400 = vst [vmem:[%s208 + $0x2f8] sm:$0xff] %v399
                %v401 = vld [vmem:[%s207 + $0x600] sm:$0xff]
                %402 = vst [vmem:[%s208 + $0x300] sm:$0xff] %v401
                %v403 = vld [vmem:[%s207 + $0x610] sm:$0xff]
                %404 = vst [vmem:[%s208 + $0x308] sm:$0xff] %v403
                %v405 = vld [vmem:[%s207 + $0x620] sm:$0xff]
                %406 = vst [vmem:[%s208 + $0x310] sm:$0xff] %v405
                %v407 = vld [vmem:[%s207 + $0x630] sm:$0xff]
                %408 = vst [vmem:[%s208 + $0x318] sm:$0xff] %v407
                %v409 = vld [vmem:[%s207 + $0x640] sm:$0xff]
                %410 = vst [vmem:[%s208 + $0x320] sm:$0xff] %v409
                %v411 = vld [vmem:[%s207 + $0x650] sm:$0xff]
                %412 = vst [vmem:[%s208 + $0x328] sm:$0xff] %v411
                %v413 = vld [vmem:[%s207 + $0x660] sm:$0xff]
                %414 = vst [vmem:[%s208 + $0x330] sm:$0xff] %v413
                %v415 = vld [vmem:[%s207 + $0x670] sm:$0xff]
                %416 = vst [vmem:[%s208 + $0x338] sm:$0xff] %v415
                %v417 = vld [vmem:[%s207 + $0x680] sm:$0xff]
                %418 = vst [vmem:[%s208 + $0x340] sm:$0xff] %v417
                %v419 = vld [vmem:[%s207 + $0x690] sm:$0xff]
                %420 = vst [vmem:[%s208 + $0x348] sm:$0xff] %v419
                %v421 = vld [vmem:[%s207 + $0x6a0] sm:$0xff]
                %422 = vst [vmem:[%s208 + $0x350] sm:$0xff] %v421
                %v423 = vld [vmem:[%s207 + $0x6b0] sm:$0xff]
                %424 = vst [vmem:[%s208 + $0x358] sm:$0xff] %v423
                %v425 = vld [vmem:[%s207 + $0x6c0] sm:$0xff]
                %426 = vst [vmem:[%s208 + $0x360] sm:$0xff] %v425
                %v427 = vld [vmem:[%s207 + $0x6d0] sm:$0xff]
                %428 = vst [vmem:[%s208 + $0x368] sm:$0xff] %v427
                %v429 = vld [vmem:[%s207 + $0x6e0] sm:$0xff]
                %430 = vst [vmem:[%s208 + $0x370] sm:$0xff] %v429
                %v431 = vld [vmem:[%s207 + $0x6f0] sm:$0xff]
                %432 = vst [vmem:[%s208 + $0x378] sm:$0xff] %v431
                %v433 = vld [vmem:[%s207 + $0x700] sm:$0xff]
                %434 = vst [vmem:[%s208 + $0x380] sm:$0xff] %v433
                %v435 = vld [vmem:[%s207 + $0x710] sm:$0xff]
                %436 = vst [vmem:[%s208 + $0x388] sm:$0xff] %v435
                %v437 = vld [vmem:[%s207 + $0x720] sm:$0xff]
                %438 = vst [vmem:[%s208 + $0x390] sm:$0xff] %v437
                %v439 = vld [vmem:[%s207 + $0x730] sm:$0xff]
                %440 = vst [vmem:[%s208 + $0x398] sm:$0xff] %v439
                %v441 = vld [vmem:[%s207 + $0x740] sm:$0xff]
                %442 = vst [vmem:[%s208 + $0x3a0] sm:$0xff] %v441
                %v443 = vld [vmem:[%s207 + $0x750] sm:$0xff]
                %444 = vst [vmem:[%s208 + $0x3a8] sm:$0xff] %v443
                %v445 = vld [vmem:[%s207 + $0x760] sm:$0xff]
                %446 = vst [vmem:[%s208 + $0x3b0] sm:$0xff] %v445
                %v447 = vld [vmem:[%s207 + $0x770] sm:$0xff]
                %448 = vst [vmem:[%s208 + $0x3b8] sm:$0xff] %v447
                %v449 = vld [vmem:[%s207 + $0x780] sm:$0xff]
                %450 = vst [vmem:[%s208 + $0x3c0] sm:$0xff] %v449
                %v451 = vld [vmem:[%s207 + $0x790] sm:$0xff]
                %452 = vst [vmem:[%s208 + $0x3c8] sm:$0xff] %v451
                %v453 = vld [vmem:[%s207 + $0x7a0] sm:$0xff]
                %454 = vst [vmem:[%s208 + $0x3d0] sm:$0xff] %v453
                %v455 = vld [vmem:[%s207 + $0x7b0] sm:$0xff]
                %456 = vst [vmem:[%s208 + $0x3d8] sm:$0xff] %v455
                %v457 = vld [vmem:[%s207 + $0x7c0] sm:$0xff]
                %458 = vst [vmem:[%s208 + $0x3e0] sm:$0xff] %v457
                %v459 = vld [vmem:[%s207 + $0x7d0] sm:$0xff]
                %460 = vst [vmem:[%s208 + $0x3e8] sm:$0xff] %v459
                %v461 = vld [vmem:[%s207 + $0x7e0] sm:$0xff]
                %462 = vst [vmem:[%s208 + $0x3f0] sm:$0xff] %v461
                %v463 = vld [vmem:[%s207 + $0x7f0] sm:$0xff]
                %464 = vst [vmem:[%s208 + $0x3f8] sm:$0xff] %v463
                %v465 = vld [vmem:[%s207 + $0x800] sm:$0xff]
                %466 = vst [vmem:[%s208 + $0x400] sm:$0xff] %v465
                %v467 = vld [vmem:[%s207 + $0x810] sm:$0xff]
                %468 = vst [vmem:[%s208 + $0x408] sm:$0xff] %v467
                %v469 = vld [vmem:[%s207 + $0x820] sm:$0xff]
                %470 = vst [vmem:[%s208 + $0x410] sm:$0xff] %v469
                %v471 = vld [vmem:[%s207 + $0x830] sm:$0xff]
                %472 = vst [vmem:[%s208 + $0x418] sm:$0xff] %v471
                %v473 = vld [vmem:[%s207 + $0x840] sm:$0xff]
                %474 = vst [vmem:[%s208 + $0x420] sm:$0xff] %v473
                %v475 = vld [vmem:[%s207 + $0x850] sm:$0xff]
                %476 = vst [vmem:[%s208 + $0x428] sm:$0xff] %v475
                %v477 = vld [vmem:[%s207 + $0x860] sm:$0xff]
                %478 = vst [vmem:[%s208 + $0x430] sm:$0xff] %v477
                %v479 = vld [vmem:[%s207 + $0x870] sm:$0xff]
                %480 = vst [vmem:[%s208 + $0x438] sm:$0xff] %v479
                %v481 = vld [vmem:[%s207 + $0x880] sm:$0xff]
                %482 = vst [vmem:[%s208 + $0x440] sm:$0xff] %v481
                %v483 = vld [vmem:[%s207 + $0x890] sm:$0xff]
                %484 = vst [vmem:[%s208 + $0x448] sm:$0xff] %v483
                %v485 = vld [vmem:[%s207 + $0x8a0] sm:$0xff]
                %486 = vst [vmem:[%s208 + $0x450] sm:$0xff] %v485
                %v487 = vld [vmem:[%s207 + $0x8b0] sm:$0xff]
                %488 = vst [vmem:[%s208 + $0x458] sm:$0xff] %v487
                %v489 = vld [vmem:[%s207 + $0x8c0] sm:$0xff]
                %490 = vst [vmem:[%s208 + $0x460] sm:$0xff] %v489
                %v491 = vld [vmem:[%s207 + $0x8d0] sm:$0xff]
                %492 = vst [vmem:[%s208 + $0x468] sm:$0xff] %v491
                %v493 = vld [vmem:[%s207 + $0x8e0] sm:$0xff]
                %494 = vst [vmem:[%s208 + $0x470] sm:$0xff] %v493
                %v495 = vld [vmem:[%s207 + $0x8f0] sm:$0xff]
                %496 = vst [vmem:[%s208 + $0x478] sm:$0xff] %v495
                %v497 = vld [vmem:[%s207 + $0x900] sm:$0xff]
                %498 = vst [vmem:[%s208 + $0x480] sm:$0xff] %v497
                %v499 = vld [vmem:[%s207 + $0x910] sm:$0xff]
                %500 = vst [vmem:[%s208 + $0x488] sm:$0xff] %v499
                %v501 = vld [vmem:[%s207 + $0x920] sm:$0xff]
                %502 = vst [vmem:[%s208 + $0x490] sm:$0xff] %v501
                %v503 = vld [vmem:[%s207 + $0x930] sm:$0xff]
                %504 = vst [vmem:[%s208 + $0x498] sm:$0xff] %v503
                %v505 = vld [vmem:[%s207 + $0x940] sm:$0xff]
                %506 = vst [vmem:[%s208 + $0x4a0] sm:$0xff] %v505
                %v507 = vld [vmem:[%s207 + $0x950] sm:$0xff]
                %508 = vst [vmem:[%s208 + $0x4a8] sm:$0xff] %v507
                %v509 = vld [vmem:[%s207 + $0x960] sm:$0xff]
                %510 = vst [vmem:[%s208 + $0x4b0] sm:$0xff] %v509
                %v511 = vld [vmem:[%s207 + $0x970] sm:$0xff]
                %512 = vst [vmem:[%s208 + $0x4b8] sm:$0xff] %v511
                %v513 = vld [vmem:[%s207 + $0x980] sm:$0xff]
                %514 = vst [vmem:[%s208 + $0x4c0] sm:$0xff] %v513
                %v515 = vld [vmem:[%s207 + $0x990] sm:$0xff]
                %516 = vst [vmem:[%s208 + $0x4c8] sm:$0xff] %v515
                %v517 = vld [vmem:[%s207 + $0x9a0] sm:$0xff]
                %518 = vst [vmem:[%s208 + $0x4d0] sm:$0xff] %v517
                %v519 = vld [vmem:[%s207 + $0x9b0] sm:$0xff]
                %520 = vst [vmem:[%s208 + $0x4d8] sm:$0xff] %v519
                %v521 = vld [vmem:[%s207 + $0x9c0] sm:$0xff]
                %522 = vst [vmem:[%s208 + $0x4e0] sm:$0xff] %v521
                %v523 = vld [vmem:[%s207 + $0x9d0] sm:$0xff]
                %524 = vst [vmem:[%s208 + $0x4e8] sm:$0xff] %v523
                %v525 = vld [vmem:[%s207 + $0x9e0] sm:$0xff]
                %526 = vst [vmem:[%s208 + $0x4f0] sm:$0xff] %v525
                %v527 = vld [vmem:[%s207 + $0x9f0] sm:$0xff]
                %528 = vst [vmem:[%s208 + $0x4f8] sm:$0xff] %v527
                %v529 = vld [vmem:[%s207 + $0xa00] sm:$0xff]
                %530 = vst [vmem:[%s208 + $0x500] sm:$0xff] %v529
                %v531 = vld [vmem:[%s207 + $0xa10] sm:$0xff]
                %532 = vst [vmem:[%s208 + $0x508] sm:$0xff] %v531
                %v533 = vld [vmem:[%s207 + $0xa20] sm:$0xff]
                %534 = vst [vmem:[%s208 + $0x510] sm:$0xff] %v533
                %v535 = vld [vmem:[%s207 + $0xa30] sm:$0xff]
                %536 = vst [vmem:[%s208 + $0x518] sm:$0xff] %v535
                %v537 = vld [vmem:[%s207 + $0xa40] sm:$0xff]
                %538 = vst [vmem:[%s208 + $0x520] sm:$0xff] %v537
                %v539 = vld [vmem:[%s207 + $0xa50] sm:$0xff]
                %540 = vst [vmem:[%s208 + $0x528] sm:$0xff] %v539
                %v541 = vld [vmem:[%s207 + $0xa60] sm:$0xff]
                %542 = vst [vmem:[%s208 + $0x530] sm:$0xff] %v541
                %v543 = vld [vmem:[%s207 + $0xa70] sm:$0xff]
                %544 = vst [vmem:[%s208 + $0x538] sm:$0xff] %v543
                %v545 = vld [vmem:[%s207 + $0xa80] sm:$0xff]
                %546 = vst [vmem:[%s208 + $0x540] sm:$0xff] %v545
                %v547 = vld [vmem:[%s207 + $0xa90] sm:$0xff]
                %548 = vst [vmem:[%s208 + $0x548] sm:$0xff] %v547
                %v549 = vld [vmem:[%s207 + $0xaa0] sm:$0xff]
                %550 = vst [vmem:[%s208 + $0x550] sm:$0xff] %v549
                %v551 = vld [vmem:[%s207 + $0xab0] sm:$0xff]
                %552 = vst [vmem:[%s208 + $0x558] sm:$0xff] %v551
                %v553 = vld [vmem:[%s207 + $0xac0] sm:$0xff]
                %554 = vst [vmem:[%s208 + $0x560] sm:$0xff] %v553
                %v555 = vld [vmem:[%s207 + $0xad0] sm:$0xff]
                %556 = vst [vmem:[%s208 + $0x568] sm:$0xff] %v555
                %v557 = vld [vmem:[%s207 + $0xae0] sm:$0xff]
                %558 = vst [vmem:[%s208 + $0x570] sm:$0xff] %v557
                %v559 = vld [vmem:[%s207 + $0xaf0] sm:$0xff]
                %560 = vst [vmem:[%s208 + $0x578] sm:$0xff] %v559
              $region41: #{v_net_forward.3} parent=35 // loop_footer
                %s206 = sadd.s32 1, %s202
              $region42: #{v_net_forward.3} parent=35 // loop_footer_branch
                %201 = sbr.rel target = $region38
              $region43: #{v_net_forward.3} parent=35 // loop_exit
                _
            $region36: #{v_net_forward.3} parent=27 // pred_fallthru
              _
          $region28: #{v_net_forward.3} parent=23 // pred_fallthru
            _
          %925 = vnop
        $region24: #{v_net_forward.3} parent=15 // pred_fallthru
          _
        // Predicated region
        $region59: #{v_net_forward.3} parent=15 // pred_check
          %p926 = pneg %p96
        $region60: #{v_net_forward.3} parent=15 // pred_check_branch
          %928 = sbr.rel (%p926) target = $region62
        $region61: #{v_net_forward.3} parent=15 // pred_region
          %s929 = smul.u32 2, %s17
          %p930 = scmp.lt.s32.totalorder %s929, 3
          %s931 = scalar_select %p930, %s929, 3
          %s932 = scalar_lea.vmem %s2, %s931
          %s933 = smul.u32 2, %s17
        $region62: #{v_net_forward.3} parent=15 // pred_fallthru
          _
        // Predicated region
        $region63: #{v_net_forward.3} parent=15 // pred_check
          %p934 = pneg %p122
        $region64: #{v_net_forward.3} parent=15 // pred_check_branch
          %936 = sbr.rel (%p934) target = $region66
        $region65: #{v_net_forward.3} parent=15 // pred_region
          %s937 = smul.u32 2, %s17
          %p938 = scmp.lt.s32.totalorder %s937, 3
          %s939 = scalar_select %p938, %s937, 3
          %s940 = scalar_lea.vmem %s3, %s939
          %s941 = smul.u32 2, %s17
        $region66: #{v_net_forward.3} parent=15 // pred_fallthru
          _
      $region16: #{v_net_forward.3} parent=5 // pred_fallthru
        _
      %p942 = scmp.le.s32.totalorder 1, %s10
      %p943 = scmp.lt.s32.totalorder %s10, 9
      %p944 = pnand %p942, %p943
      %p945 = pneg %p944
      // Predicated region
      $region67: #{v_net_forward.3} parent=5 // pred_check
        _
      $region68: #{v_net_forward.3} parent=5 // pred_check_branch
        %947 = sbr.rel (%p944) target = $region70
      $region69: #{v_net_forward.3} parent=5 // pred_region
        %s948 = ssub.s32 %s10, 1
        %s949 = sand.u32 %s63, 1
        %s950 = sand.u32 %s63, 1
        %s951 = smul.addr %s950, 1408
        %s952 = scalar_lea.vmem [#allocation3], %s951
        // Predicated region
        $region71: #{v_net_forward.3} parent=69 // pred_check
          %p953 = pneg %p76
        $region72: #{v_net_forward.3} parent=69 // pred_check_branch
          %955 = sbr.rel (%p953) target = $region74
        $region73: #{v_net_forward.3} parent=69 // pred_region
          _
        $region74: #{v_net_forward.3} parent=69 // pred_fallthru
          _
        %s956 = smul.u32 11, %s20
        %p957 = scmp.lt.s32.totalorder %s956, 43
        %s958 = scalar_select %p957, %s956, 43
        %s959 = scalar_lea.vmem %s0, %s958
        %p960 = pneg %p48
        %p961 = pneg %p45
        %s962 = sand.u32 %s63, 1
        %s963 = sand.u32 %s63, 1
        %s964 = smul.addr %s963, 1408
        %s965 = scalar_lea.vmem [#allocation3], %s964
        %p966 = pneg %p76
        %p967 = pneg %p73
        %s968 = smul.u32 2, %s19
        %p969 = scmp.lt.s32.totalorder %s968, 3
        %s970 = scalar_select %p969, %s968, 3
        %s971 = scalar_lea.vmem %s2, %s970
        %p972 = pneg %p102
        %p973 = pneg %p99
        %s974 = smul.u32 2, %s19
        %p975 = scmp.lt.s32.totalorder %s974, 3
        %s976 = scalar_select %p975, %s974, 3
        %s977 = scalar_lea.vmem %s3, %s976
        %p978 = pneg %p128
        %p979 = pneg %p125
        %p980 = pneg %p154
        %p981 = pneg %p151
        %p982 = scmp.lt.s32.totalorder %s19, 1
        %s983 = scalar_select %p982, %s19, 1
        %s984 = smul.addr %s983, 2
        %s985 = scalar_lea.vmem %s4, %s984
        %s986 = smul.u32 11, %s20
        %p987 = scmp.lt.s32.totalorder %s986, 43
        %s988 = scalar_select %p987, %s986, 43
        %s989 = scalar_lea.vmem %s0, %s988
        %s990 = smul.u32 11, %s20
        %s991 = smul.u32 176, %s20
        %s992 = smul.u32 2, %s19
        %s993 = smul.u32 2, %s19
        %p994 = scmp.lt.s32.totalorder %s993, 3
        %s995 = scalar_select %p994, %s993, 3
        %s996 = scalar_lea.vmem %s2, %s995
        %s997 = smul.u32 2, %s19
        %s998 = smul.u32 2, %s19
        %p999 = scmp.lt.s32.totalorder %s998, 3
        %s1000 = scalar_select %p999, %s998, 3
        %s1001 = scalar_lea.vmem %s3, %s1000
        %s1002 = smul.u32 2, %s19
        %p1003 = scmp.lt.s32.totalorder %s19, 1
        %s1004 = scalar_select %p1003, %s19, 1
        %s1005 = smul.addr %s1004, 2
        %s1006 = scalar_lea.vmem %s4, %s1005
        %p1008 = scmp.eq.s32.totalorder %s20, 0
        // Predicated region
        $region75: #{v_net_forward.3} parent=69 // pred_check
          %p1009 = pneg %p1008
        $region76: #{v_net_forward.3} parent=69 // pred_check_branch
          %1011 = sbr.rel (%p1009) target = $region78
        $region77: #{v_net_forward.3} parent=69 // pred_region
          %1012 = vst [vmem:[#allocation2] sm:$0xf] 0.0
        $region78: #{v_net_forward.3} parent=69 // pred_fallthru
          _
        %v1013 = vld [vmem:[#allocation2] sm:$0xf]
        %v1014 = vld [vmem:[%s989] sm:$0xff]
        %v1015 = vld [vmem:[%s989 + $0x8] sm:$0x7]
        %v1016 = vld [vmem:[%s952] sm:$0xff]
        %v1017 = vld [vmem:[%s952 + $0x8] sm:$0xff]
        %v1018 = vld [vmem:[%s952 + $0x10] sm:$0xff]
        %v1019 = vld [vmem:[%s952 + $0x18] sm:$0xff]
        %v1020 = vld [vmem:[%s952 + $0x20] sm:$0xff]
        %v1021 = vld [vmem:[%s952 + $0x28] sm:$0xff]
        %v1022 = vld [vmem:[%s952 + $0x30] sm:$0xff]
        %v1023 = vld [vmem:[%s952 + $0x38] sm:$0xff]
        %v1024 = vld [vmem:[%s952 + $0x40] sm:$0xff]
        %v1025 = vld [vmem:[%s952 + $0x48] sm:$0xff]
        %v1026 = vld [vmem:[%s952 + $0x50] sm:$0xff]
        %v1027 = vld [vmem:[%s952 + $0x58] sm:$0xff]
        %v1028 = vld [vmem:[%s952 + $0x60] sm:$0xff]
        %v1029 = vld [vmem:[%s952 + $0x68] sm:$0xff]
        %v1030 = vld [vmem:[%s952 + $0x70] sm:$0xff]
        %v1031 = vld [vmem:[%s952 + $0x78] sm:$0xff]
        %v1032 = vld [vmem:[%s952 + $0x80] sm:$0xff]
        %v1033 = vld [vmem:[%s952 + $0x88] sm:$0xff]
        %v1034 = vld [vmem:[%s952 + $0x90] sm:$0xff]
        %v1035 = vld [vmem:[%s952 + $0x98] sm:$0xff]
        %v1036 = vld [vmem:[%s952 + $0xa0] sm:$0xff]
        %v1037 = vld [vmem:[%s952 + $0xa8] sm:$0xff]
        %v1038 = vld [vmem:[%s952 + $0xb0] sm:$0xff]
        %v1039 = vld [vmem:[%s952 + $0xb8] sm:$0xff]
        %v1040 = vld [vmem:[%s952 + $0xc0] sm:$0xff]
        %v1041 = vld [vmem:[%s952 + $0xc8] sm:$0xff]
        %v1042 = vld [vmem:[%s952 + $0xd0] sm:$0xff]
        %v1043 = vld [vmem:[%s952 + $0xd8] sm:$0xff]
        %v1044 = vld [vmem:[%s952 + $0xe0] sm:$0xff]
        %v1045 = vld [vmem:[%s952 + $0xe8] sm:$0xff]
        %v1046 = vld [vmem:[%s952 + $0xf0] sm:$0xff]
        %v1047 = vld [vmem:[%s952 + $0xf8] sm:$0xff]
        %v1048 = vld [vmem:[%s952 + $0x100] sm:$0xff]
        %v1049 = vld [vmem:[%s952 + $0x108] sm:$0xff]
        %v1050 = vld [vmem:[%s952 + $0x110] sm:$0xff]
        %v1051 = vld [vmem:[%s952 + $0x118] sm:$0xff]
        %v1052 = vld [vmem:[%s952 + $0x120] sm:$0xff]
        %v1053 = vld [vmem:[%s952 + $0x128] sm:$0xff]
        %v1054 = vld [vmem:[%s952 + $0x130] sm:$0xff]
        %v1055 = vld [vmem:[%s952 + $0x138] sm:$0xff]
        %v1056 = vld [vmem:[%s952 + $0x140] sm:$0xff]
        %v1057 = vld [vmem:[%s952 + $0x148] sm:$0xff]
        %v1058 = vld [vmem:[%s952 + $0x150] sm:$0xff]
        %v1059 = vld [vmem:[%s952 + $0x158] sm:$0xff]
        %v1060 = vld [vmem:[%s952 + $0x160] sm:$0xff]
        %v1061 = vld [vmem:[%s952 + $0x168] sm:$0xff]
        %v1062 = vld [vmem:[%s952 + $0x170] sm:$0xff]
        %v1063 = vld [vmem:[%s952 + $0x178] sm:$0xff]
        %v1064 = vld [vmem:[%s952 + $0x180] sm:$0xff]
        %v1065 = vld [vmem:[%s952 + $0x188] sm:$0xff]
        %v1066 = vld [vmem:[%s952 + $0x190] sm:$0xff]
        %v1067 = vld [vmem:[%s952 + $0x198] sm:$0xff]
        %v1068 = vld [vmem:[%s952 + $0x1a0] sm:$0xff]
        %v1069 = vld [vmem:[%s952 + $0x1a8] sm:$0xff]
        %v1070 = vld [vmem:[%s952 + $0x1b0] sm:$0xff]
        %v1071 = vld [vmem:[%s952 + $0x1b8] sm:$0xff]
        %v1072 = vld [vmem:[%s952 + $0x1c0] sm:$0xff]
        %v1073 = vld [vmem:[%s952 + $0x1c8] sm:$0xff]
        %v1074 = vld [vmem:[%s952 + $0x1d0] sm:$0xff]
        %v1075 = vld [vmem:[%s952 + $0x1d8] sm:$0xff]
        %v1076 = vld [vmem:[%s952 + $0x1e0] sm:$0xff]
        %v1077 = vld [vmem:[%s952 + $0x1e8] sm:$0xff]
        %v1078 = vld [vmem:[%s952 + $0x1f0] sm:$0xff]
        %v1079 = vld [vmem:[%s952 + $0x1f8] sm:$0xff]
        %v1080 = vld [vmem:[%s952 + $0x200] sm:$0xff]
        %v1081 = vld [vmem:[%s952 + $0x208] sm:$0xff]
        %v1082 = vld [vmem:[%s952 + $0x210] sm:$0xff]
        %v1083 = vld [vmem:[%s952 + $0x218] sm:$0xff]
        %v1084 = vld [vmem:[%s952 + $0x220] sm:$0xff]
        %v1085 = vld [vmem:[%s952 + $0x228] sm:$0xff]
        %v1086 = vld [vmem:[%s952 + $0x230] sm:$0xff]
        %v1087 = vld [vmem:[%s952 + $0x238] sm:$0xff]
        %v1088 = vld [vmem:[%s952 + $0x240] sm:$0xff]
        %v1089 = vld [vmem:[%s952 + $0x248] sm:$0xff]
        %v1090 = vld [vmem:[%s952 + $0x250] sm:$0xff]
        %v1091 = vld [vmem:[%s952 + $0x258] sm:$0xff]
        %v1092 = vld [vmem:[%s952 + $0x260] sm:$0xff]
        %v1093 = vld [vmem:[%s952 + $0x268] sm:$0xff]
        %v1094 = vld [vmem:[%s952 + $0x270] sm:$0xff]
        %v1095 = vld [vmem:[%s952 + $0x278] sm:$0xff]
        %v1096 = vld [vmem:[%s952 + $0x280] sm:$0xff]
        %v1097 = vld [vmem:[%s952 + $0x288] sm:$0xff]
        %v1098 = vld [vmem:[%s952 + $0x290] sm:$0xff]
        %v1099 = vld [vmem:[%s952 + $0x298] sm:$0xff]
        %v1100 = vld [vmem:[%s952 + $0x2a0] sm:$0xff]
        %v1101 = vld [vmem:[%s952 + $0x2a8] sm:$0xff]
        %v1102 = vld [vmem:[%s952 + $0x2b0] sm:$0xff]
        %v1103 = vld [vmem:[%s952 + $0x2b8] sm:$0xff]
        %v1104 = vld [vmem:[%s952 + $0x2c0] sm:$0xff]
        %v1105 = vld [vmem:[%s952 + $0x2c8] sm:$0xff]
        %v1106 = vld [vmem:[%s952 + $0x2d0] sm:$0xff]
        %v1107 = vld [vmem:[%s952 + $0x2d8] sm:$0xff]
        %v1108 = vld [vmem:[%s952 + $0x2e0] sm:$0xff]
        %v1109 = vld [vmem:[%s952 + $0x2e8] sm:$0xff]
        %v1110 = vld [vmem:[%s952 + $0x2f0] sm:$0xff]
        %v1111 = vld [vmem:[%s952 + $0x2f8] sm:$0xff]
        %v1112 = vld [vmem:[%s952 + $0x300] sm:$0xff]
        %v1113 = vld [vmem:[%s952 + $0x308] sm:$0xff]
        %v1114 = vld [vmem:[%s952 + $0x310] sm:$0xff]
        %v1115 = vld [vmem:[%s952 + $0x318] sm:$0xff]
        %v1116 = vld [vmem:[%s952 + $0x320] sm:$0xff]
        %v1117 = vld [vmem:[%s952 + $0x328] sm:$0xff]
        %v1118 = vld [vmem:[%s952 + $0x330] sm:$0xff]
        %v1119 = vld [vmem:[%s952 + $0x338] sm:$0xff]
        %v1120 = vld [vmem:[%s952 + $0x340] sm:$0xff]
        %v1121 = vld [vmem:[%s952 + $0x348] sm:$0xff]
        %v1122 = vld [vmem:[%s952 + $0x350] sm:$0xff]
        %v1123 = vld [vmem:[%s952 + $0x358] sm:$0xff]
        %v1124 = vld [vmem:[%s952 + $0x360] sm:$0xff]
        %v1125 = vld [vmem:[%s952 + $0x368] sm:$0xff]
        %v1126 = vld [vmem:[%s952 + $0x370] sm:$0xff]
        %v1127 = vld [vmem:[%s952 + $0x378] sm:$0xff]
        %v1128 = vld [vmem:[%s952 + $0x380] sm:$0xff]
        %v1129 = vld [vmem:[%s952 + $0x388] sm:$0xff]
        %v1130 = vld [vmem:[%s952 + $0x390] sm:$0xff]
        %v1131 = vld [vmem:[%s952 + $0x398] sm:$0xff]
        %v1132 = vld [vmem:[%s952 + $0x3a0] sm:$0xff]
        %v1133 = vld [vmem:[%s952 + $0x3a8] sm:$0xff]
        %v1134 = vld [vmem:[%s952 + $0x3b0] sm:$0xff]
        %v1135 = vld [vmem:[%s952 + $0x3b8] sm:$0xff]
        %v1136 = vld [vmem:[%s952 + $0x3c0] sm:$0xff]
        %v1137 = vld [vmem:[%s952 + $0x3c8] sm:$0xff]
        %v1138 = vld [vmem:[%s952 + $0x3d0] sm:$0xff]
        %v1139 = vld [vmem:[%s952 + $0x3d8] sm:$0xff]
        %v1140 = vld [vmem:[%s952 + $0x3e0] sm:$0xff]
        %v1141 = vld [vmem:[%s952 + $0x3e8] sm:$0xff]
        %v1142 = vld [vmem:[%s952 + $0x3f0] sm:$0xff]
        %v1143 = vld [vmem:[%s952 + $0x3f8] sm:$0xff]
        %v1144 = vld [vmem:[%s952 + $0x400] sm:$0xff]
        %v1145 = vld [vmem:[%s952 + $0x408] sm:$0xff]
        %v1146 = vld [vmem:[%s952 + $0x410] sm:$0xff]
        %v1147 = vld [vmem:[%s952 + $0x418] sm:$0xff]
        %v1148 = vld [vmem:[%s952 + $0x420] sm:$0xff]
        %v1149 = vld [vmem:[%s952 + $0x428] sm:$0xff]
        %v1150 = vld [vmem:[%s952 + $0x430] sm:$0xff]
        %v1151 = vld [vmem:[%s952 + $0x438] sm:$0xff]
        %v1152 = vld [vmem:[%s952 + $0x440] sm:$0xff]
        %v1153 = vld [vmem:[%s952 + $0x448] sm:$0xff]
        %v1154 = vld [vmem:[%s952 + $0x450] sm:$0xff]
        %v1155 = vld [vmem:[%s952 + $0x458] sm:$0xff]
        %v1156 = vld [vmem:[%s952 + $0x460] sm:$0xff]
        %v1157 = vld [vmem:[%s952 + $0x468] sm:$0xff]
        %v1158 = vld [vmem:[%s952 + $0x470] sm:$0xff]
        %v1159 = vld [vmem:[%s952 + $0x478] sm:$0xff]
        %v1160 = vld [vmem:[%s952 + $0x480] sm:$0xff]
        %v1161 = vld [vmem:[%s952 + $0x488] sm:$0xff]
        %v1162 = vld [vmem:[%s952 + $0x490] sm:$0xff]
        %v1163 = vld [vmem:[%s952 + $0x498] sm:$0xff]
        %v1164 = vld [vmem:[%s952 + $0x4a0] sm:$0xff]
        %v1165 = vld [vmem:[%s952 + $0x4a8] sm:$0xff]
        %v1166 = vld [vmem:[%s952 + $0x4b0] sm:$0xff]
        %v1167 = vld [vmem:[%s952 + $0x4b8] sm:$0xff]
        %v1168 = vld [vmem:[%s952 + $0x4c0] sm:$0xff]
        %v1169 = vld [vmem:[%s952 + $0x4c8] sm:$0xff]
        %v1170 = vld [vmem:[%s952 + $0x4d0] sm:$0xff]
        %v1171 = vld [vmem:[%s952 + $0x4d8] sm:$0xff]
        %v1172 = vld [vmem:[%s952 + $0x4e0] sm:$0xff]
        %v1173 = vld [vmem:[%s952 + $0x4e8] sm:$0xff]
        %v1174 = vld [vmem:[%s952 + $0x4f0] sm:$0xff]
        %v1175 = vld [vmem:[%s952 + $0x4f8] sm:$0xff]
        %v1176 = vld [vmem:[%s952 + $0x500] sm:$0xff]
        %v1177 = vld [vmem:[%s952 + $0x508] sm:$0xff]
        %v1178 = vld [vmem:[%s952 + $0x510] sm:$0xff]
        %v1179 = vld [vmem:[%s952 + $0x518] sm:$0xff]
        %v1180 = vld [vmem:[%s952 + $0x520] sm:$0xff]
        %v1181 = vld [vmem:[%s952 + $0x528] sm:$0xff]
        %v1182 = vld [vmem:[%s952 + $0x530] sm:$0xff]
        %v1183 = vld [vmem:[%s952 + $0x538] sm:$0xff]
        %v1184 = vld [vmem:[%s952 + $0x540] sm:$0xff]
        %v1185 = vld [vmem:[%s952 + $0x548] sm:$0xff]
        %v1186 = vld [vmem:[%s952 + $0x550] sm:$0xff]
        %v1187 = vld [vmem:[%s952 + $0x558] sm:$0xff]
        %v1188 = vld [vmem:[%s952 + $0x560] sm:$0xff]
        %v1189 = vld [vmem:[%s952 + $0x568] sm:$0xff]
        %v1190 = vld [vmem:[%s952 + $0x570] sm:$0xff]
        %v1191 = vld [vmem:[%s952 + $0x578] sm:$0xff]
        %v1194 = vcombine.high %v1014, %v1014
        %v1196 = vunpack.c.l.s4 1966171168
        %v1197 = vunpack.c.0.s8 %v1196
        %v1198 = vlaneseq
        %v1199 = vshrl.u32 %v1198, 7
        %v1200 = vsub.s32 %v1197, %v1199
        %v1201 = vrot.slane %v1014, %v1200
        %v1203 = vunpack.c.l.s4 1966171168
        %v1204 = vunpack.c.0.s8 %v1203
        %v1205 = vlaneseq
        %v1206 = vshrl.u32 %v1205, 7
        %v1207 = vsub.s32 %v1204, %v1206
        %v1208 = vrot.slane %v1194, %v1207
        %v1209 = vcombine.high %v1201, %v1201
        %v1210 = vcombine.high %v1208, %v1208
        %v1212 = vunpack.c.l.s4 1966171168
        %v1213 = vunpack.c.0.s8 %v1212
        %v1214 = vlaneseq
        %v1215 = vshrl.u32 %v1214, 7
        %v1216 = vsub.s32 %v1213, %v1215
        %v1217 = vrot.slane %v1201, %v1216
        %v1219 = vunpack.c.l.s4 1966171168
        %v1220 = vunpack.c.0.s8 %v1219
        %v1221 = vlaneseq
        %v1222 = vshrl.u32 %v1221, 7
        %v1223 = vsub.s32 %v1220, %v1222
        %v1224 = vrot.slane %v1208, %v1223
        %v1226 = vunpack.c.l.s4 1966171168
        %v1227 = vunpack.c.0.s8 %v1226
        %v1228 = vlaneseq
        %v1229 = vshrl.u32 %v1228, 7
        %v1230 = vsub.s32 %v1227, %v1229
        %v1231 = vrot.slane %v1209, %v1230
        %v1233 = vunpack.c.l.s4 1966171168
        %v1234 = vunpack.c.0.s8 %v1233
        %v1235 = vlaneseq
        %v1236 = vshrl.u32 %v1235, 7
        %v1237 = vsub.s32 %v1234, %v1236
        %v1238 = vrot.slane %v1210, %v1237
        %v1239 = vcombine.high %v1217, %v1217
        %v1240 = vcombine.high %v1224, %v1224
        %v1241 = vcombine.high %v1231, %v1231
        %v1242 = vcombine.high %v1238, %v1238
        %v1244 = vunpack.c.l.s4 1966171168
        %v1245 = vunpack.c.0.s8 %v1244
        %v1246 = vlaneseq
        %v1247 = vshrl.u32 %v1246, 7
        %v1248 = vsub.s32 %v1245, %v1247
        %v1249 = vrot.slane %v1015, %v1248
        %v1250 = vcombine.high %v1249, %v1249
        %v1252 = vunpack.c.l.s4 1966171168
        %v1253 = vunpack.c.0.s8 %v1252
        %v1254 = vlaneseq
        %v1255 = vshrl.u32 %v1254, 7
        %v1256 = vsub.s32 %v1253, %v1255
        %v1257 = vrot.slane %v1249, %v1256
        %v1259 = vunpack.c.l.s4 1966171168
        %v1260 = vunpack.c.0.s8 %v1259
        %v1261 = vlaneseq
        %v1262 = vshrl.u32 %v1261, 7
        %v1263 = vsub.s32 %v1260, %v1262
        %v1264 = vrot.slane %v1250, %v1263
        %v1265 = vcombine.high %v1257, %v1257
        %v1453 = vunpack.c.l.b16 %v1016
        %v1454 = vunpack.c.h.b16 %v1016
        %v1455 = vunpack.c.l.b16 %v1017
        %v1456 = vunpack.c.h.b16 %v1017
        %v1457 = vunpack.c.l.b16 %v1018
        %v1458 = vunpack.c.h.b16 %v1018
        %v1459 = vunpack.c.l.b16 %v1019
        %v1460 = vunpack.c.h.b16 %v1019
        %v1461 = vunpack.c.l.b16 %v1020
        %v1462 = vunpack.c.h.b16 %v1020
        %v1463 = vunpack.c.l.b16 %v1021
        %v1464 = vunpack.c.h.b16 %v1021
        %v1465 = vunpack.c.l.b16 %v1022
        %v1466 = vunpack.c.h.b16 %v1022
        %v1467 = vunpack.c.l.b16 %v1023
        %v1468 = vunpack.c.h.b16 %v1023
        %v1469 = vunpack.c.l.b16 %v1024
        %v1470 = vunpack.c.h.b16 %v1024
        %v1471 = vunpack.c.l.b16 %v1025
        %v1472 = vunpack.c.h.b16 %v1025
        %v1473 = vunpack.c.l.b16 %v1026
        %v1474 = vunpack.c.h.b16 %v1026
        %v1475 = vunpack.c.l.b16 %v1027
        %v1476 = vunpack.c.h.b16 %v1027
        %v1477 = vunpack.c.l.b16 %v1028
        %v1478 = vunpack.c.h.b16 %v1028
        %v1479 = vunpack.c.l.b16 %v1029
        %v1480 = vunpack.c.h.b16 %v1029
        %v1481 = vunpack.c.l.b16 %v1030
        %v1482 = vunpack.c.h.b16 %v1030
        %v1483 = vunpack.c.l.b16 %v1031
        %v1484 = vunpack.c.h.b16 %v1031
        %v1485 = vunpack.c.l.b16 %v1032
        %v1486 = vunpack.c.h.b16 %v1032
        %v1487 = vunpack.c.l.b16 %v1033
        %v1488 = vunpack.c.h.b16 %v1033
        %v1489 = vunpack.c.l.b16 %v1034
        %v1490 = vunpack.c.h.b16 %v1034
        %v1491 = vunpack.c.l.b16 %v1035
        %v1492 = vunpack.c.h.b16 %v1035
        %v1493 = vunpack.c.l.b16 %v1036
        %v1494 = vunpack.c.h.b16 %v1036
        %v1495 = vunpack.c.l.b16 %v1037
        %v1496 = vunpack.c.h.b16 %v1037
        %v1497 = vunpack.c.l.b16 %v1038
        %v1498 = vunpack.c.h.b16 %v1038
        %v1499 = vunpack.c.l.b16 %v1039
        %v1500 = vunpack.c.h.b16 %v1039
        %v1501 = vunpack.c.l.b16 %v1040
        %v1502 = vunpack.c.h.b16 %v1040
        %v1503 = vunpack.c.l.b16 %v1041
        %v1504 = vunpack.c.h.b16 %v1041
        %v1505 = vunpack.c.l.b16 %v1042
        %v1506 = vunpack.c.h.b16 %v1042
        %v1507 = vunpack.c.l.b16 %v1043
        %v1508 = vunpack.c.h.b16 %v1043
        %v1509 = vunpack.c.l.b16 %v1044
        %v1510 = vunpack.c.h.b16 %v1044
        %v1511 = vunpack.c.l.b16 %v1045
        %v1512 = vunpack.c.h.b16 %v1045
        %v1513 = vunpack.c.l.b16 %v1046
        %v1514 = vunpack.c.h.b16 %v1046
        %v1515 = vunpack.c.l.b16 %v1047
        %v1516 = vunpack.c.h.b16 %v1047
        %v1517 = vunpack.c.l.b16 %v1048
        %v1518 = vunpack.c.h.b16 %v1048
        %v1519 = vunpack.c.l.b16 %v1049
        %v1520 = vunpack.c.h.b16 %v1049
        %v1521 = vunpack.c.l.b16 %v1050
        %v1522 = vunpack.c.h.b16 %v1050
        %v1523 = vunpack.c.l.b16 %v1051
        %v1524 = vunpack.c.h.b16 %v1051
        %v1525 = vunpack.c.l.b16 %v1052
        %v1526 = vunpack.c.h.b16 %v1052
        %v1527 = vunpack.c.l.b16 %v1053
        %v1528 = vunpack.c.h.b16 %v1053
        %v1529 = vunpack.c.l.b16 %v1054
        %v1530 = vunpack.c.h.b16 %v1054
        %v1531 = vunpack.c.l.b16 %v1055
        %v1532 = vunpack.c.h.b16 %v1055
        %v1533 = vunpack.c.l.b16 %v1056
        %v1534 = vunpack.c.h.b16 %v1056
        %v1535 = vunpack.c.l.b16 %v1057
        %v1536 = vunpack.c.h.b16 %v1057
        %v1537 = vunpack.c.l.b16 %v1058
        %v1538 = vunpack.c.h.b16 %v1058
        %v1539 = vunpack.c.l.b16 %v1059
        %v1540 = vunpack.c.h.b16 %v1059
        %v1541 = vunpack.c.l.b16 %v1060
        %v1542 = vunpack.c.h.b16 %v1060
        %v1543 = vunpack.c.l.b16 %v1061
        %v1544 = vunpack.c.h.b16 %v1061
        %v1545 = vunpack.c.l.b16 %v1062
        %v1546 = vunpack.c.h.b16 %v1062
        %v1547 = vunpack.c.l.b16 %v1063
        %v1548 = vunpack.c.h.b16 %v1063
        %v1549 = vunpack.c.l.b16 %v1064
        %v1550 = vunpack.c.h.b16 %v1064
        %v1551 = vunpack.c.l.b16 %v1065
        %v1552 = vunpack.c.h.b16 %v1065
        %v1553 = vunpack.c.l.b16 %v1066
        %v1554 = vunpack.c.h.b16 %v1066
        %v1555 = vunpack.c.l.b16 %v1067
        %v1556 = vunpack.c.h.b16 %v1067
        %v1557 = vunpack.c.l.b16 %v1068
        %v1558 = vunpack.c.h.b16 %v1068
        %v1559 = vunpack.c.l.b16 %v1069
        %v1560 = vunpack.c.h.b16 %v1069
        %v1561 = vunpack.c.l.b16 %v1070
        %v1562 = vunpack.c.h.b16 %v1070
        %v1563 = vunpack.c.l.b16 %v1071
        %v1564 = vunpack.c.h.b16 %v1071
        %v1565 = vunpack.c.l.b16 %v1072
        %v1566 = vunpack.c.h.b16 %v1072
        %v1567 = vunpack.c.l.b16 %v1073
        %v1568 = vunpack.c.h.b16 %v1073
        %v1569 = vunpack.c.l.b16 %v1074
        %v1570 = vunpack.c.h.b16 %v1074
        %v1571 = vunpack.c.l.b16 %v1075
        %v1572 = vunpack.c.h.b16 %v1075
        %v1573 = vunpack.c.l.b16 %v1076
        %v1574 = vunpack.c.h.b16 %v1076
        %v1575 = vunpack.c.l.b16 %v1077
        %v1576 = vunpack.c.h.b16 %v1077
        %v1577 = vunpack.c.l.b16 %v1078
        %v1578 = vunpack.c.h.b16 %v1078
        %v1579 = vunpack.c.l.b16 %v1079
        %v1580 = vunpack.c.h.b16 %v1079
        %v1581 = vunpack.c.l.b16 %v1080
        %v1582 = vunpack.c.h.b16 %v1080
        %v1583 = vunpack.c.l.b16 %v1081
        %v1584 = vunpack.c.h.b16 %v1081
        %v1585 = vunpack.c.l.b16 %v1082
        %v1586 = vunpack.c.h.b16 %v1082
        %v1587 = vunpack.c.l.b16 %v1083
        %v1588 = vunpack.c.h.b16 %v1083
        %v1589 = vunpack.c.l.b16 %v1084
        %v1590 = vunpack.c.h.b16 %v1084
        %v1591 = vunpack.c.l.b16 %v1085
        %v1592 = vunpack.c.h.b16 %v1085
        %v1593 = vunpack.c.l.b16 %v1086
        %v1594 = vunpack.c.h.b16 %v1086
        %v1595 = vunpack.c.l.b16 %v1087
        %v1596 = vunpack.c.h.b16 %v1087
        %v1597 = vunpack.c.l.b16 %v1088
        %v1598 = vunpack.c.h.b16 %v1088
        %v1599 = vunpack.c.l.b16 %v1089
        %v1600 = vunpack.c.h.b16 %v1089
        %v1601 = vunpack.c.l.b16 %v1090
        %v1602 = vunpack.c.h.b16 %v1090
        %v1603 = vunpack.c.l.b16 %v1091
        %v1604 = vunpack.c.h.b16 %v1091
        %v1605 = vunpack.c.l.b16 %v1092
        %v1606 = vunpack.c.h.b16 %v1092
        %v1607 = vunpack.c.l.b16 %v1093
        %v1608 = vunpack.c.h.b16 %v1093
        %v1609 = vunpack.c.l.b16 %v1094
        %v1610 = vunpack.c.h.b16 %v1094
        %v1611 = vunpack.c.l.b16 %v1095
        %v1612 = vunpack.c.h.b16 %v1095
        %v1613 = vunpack.c.l.b16 %v1096
        %v1614 = vunpack.c.h.b16 %v1096
        %v1615 = vunpack.c.l.b16 %v1097
        %v1616 = vunpack.c.h.b16 %v1097
        %v1617 = vunpack.c.l.b16 %v1098
        %v1618 = vunpack.c.h.b16 %v1098
        %v1619 = vunpack.c.l.b16 %v1099
        %v1620 = vunpack.c.h.b16 %v1099
        %v1621 = vunpack.c.l.b16 %v1100
        %v1622 = vunpack.c.h.b16 %v1100
        %v1623 = vunpack.c.l.b16 %v1101
        %v1624 = vunpack.c.h.b16 %v1101
        %v1625 = vunpack.c.l.b16 %v1102
        %v1626 = vunpack.c.h.b16 %v1102
        %v1627 = vunpack.c.l.b16 %v1103
        %v1628 = vunpack.c.h.b16 %v1103
        %v1629 = vunpack.c.l.b16 %v1104
        %v1630 = vunpack.c.h.b16 %v1104
        %v1631 = vunpack.c.l.b16 %v1105
        %v1632 = vunpack.c.h.b16 %v1105
        %v1633 = vunpack.c.l.b16 %v1106
        %v1634 = vunpack.c.h.b16 %v1106
        %v1635 = vunpack.c.l.b16 %v1107
        %v1636 = vunpack.c.h.b16 %v1107
        %v1637 = vunpack.c.l.b16 %v1108
        %v1638 = vunpack.c.h.b16 %v1108
        %v1639 = vunpack.c.l.b16 %v1109
        %v1640 = vunpack.c.h.b16 %v1109
        %v1641 = vunpack.c.l.b16 %v1110
        %v1642 = vunpack.c.h.b16 %v1110
        %v1643 = vunpack.c.l.b16 %v1111
        %v1644 = vunpack.c.h.b16 %v1111
        %v1645 = vunpack.c.l.b16 %v1112
        %v1646 = vunpack.c.h.b16 %v1112
        %v1647 = vunpack.c.l.b16 %v1113
        %v1648 = vunpack.c.h.b16 %v1113
        %v1649 = vunpack.c.l.b16 %v1114
        %v1650 = vunpack.c.h.b16 %v1114
        %v1651 = vunpack.c.l.b16 %v1115
        %v1652 = vunpack.c.h.b16 %v1115
        %v1653 = vunpack.c.l.b16 %v1116
        %v1654 = vunpack.c.h.b16 %v1116
        %v1655 = vunpack.c.l.b16 %v1117
        %v1656 = vunpack.c.h.b16 %v1117
        %v1657 = vunpack.c.l.b16 %v1118
        %v1658 = vunpack.c.h.b16 %v1118
        %v1659 = vunpack.c.l.b16 %v1119
        %v1660 = vunpack.c.h.b16 %v1119
        %v1661 = vunpack.c.l.b16 %v1120
        %v1662 = vunpack.c.h.b16 %v1120
        %v1663 = vunpack.c.l.b16 %v1121
        %v1664 = vunpack.c.h.b16 %v1121
        %v1665 = vunpack.c.l.b16 %v1122
        %v1666 = vunpack.c.h.b16 %v1122
        %v1667 = vunpack.c.l.b16 %v1123
        %v1668 = vunpack.c.h.b16 %v1123
        %v1669 = vunpack.c.l.b16 %v1124
        %v1670 = vunpack.c.h.b16 %v1124
        %v1671 = vunpack.c.l.b16 %v1125
        %v1672 = vunpack.c.h.b16 %v1125
        %v1673 = vunpack.c.l.b16 %v1126
        %v1674 = vunpack.c.h.b16 %v1126
        %v1675 = vunpack.c.l.b16 %v1127
        %v1676 = vunpack.c.h.b16 %v1127
        %v1677 = vunpack.c.l.b16 %v1128
        %v1678 = vunpack.c.h.b16 %v1128
        %v1679 = vunpack.c.l.b16 %v1129
        %v1680 = vunpack.c.h.b16 %v1129
        %v1681 = vunpack.c.l.b16 %v1130
        %v1682 = vunpack.c.h.b16 %v1130
        %v1683 = vunpack.c.l.b16 %v1131
        %v1684 = vunpack.c.h.b16 %v1131
        %v1685 = vunpack.c.l.b16 %v1132
        %v1686 = vunpack.c.h.b16 %v1132
        %v1687 = vunpack.c.l.b16 %v1133
        %v1688 = vunpack.c.h.b16 %v1133
        %v1689 = vunpack.c.l.b16 %v1134
        %v1690 = vunpack.c.h.b16 %v1134
        %v1691 = vunpack.c.l.b16 %v1135
        %v1692 = vunpack.c.h.b16 %v1135
        %v1693 = vunpack.c.l.b16 %v1136
        %v1694 = vunpack.c.h.b16 %v1136
        %v1695 = vunpack.c.l.b16 %v1137
        %v1696 = vunpack.c.h.b16 %v1137
        %v1697 = vunpack.c.l.b16 %v1138
        %v1698 = vunpack.c.h.b16 %v1138
        %v1699 = vunpack.c.l.b16 %v1139
        %v1700 = vunpack.c.h.b16 %v1139
        %v1701 = vunpack.c.l.b16 %v1140
        %v1702 = vunpack.c.h.b16 %v1140
        %v1703 = vunpack.c.l.b16 %v1141
        %v1704 = vunpack.c.h.b16 %v1141
        %v1705 = vunpack.c.l.b16 %v1142
        %v1706 = vunpack.c.h.b16 %v1142
        %v1707 = vunpack.c.l.b16 %v1143
        %v1708 = vunpack.c.h.b16 %v1143
        %v1709 = vunpack.c.l.b16 %v1144
        %v1710 = vunpack.c.h.b16 %v1144
        %v1711 = vunpack.c.l.b16 %v1145
        %v1712 = vunpack.c.h.b16 %v1145
        %v1713 = vunpack.c.l.b16 %v1146
        %v1714 = vunpack.c.h.b16 %v1146
        %v1715 = vunpack.c.l.b16 %v1147
        %v1716 = vunpack.c.h.b16 %v1147
        %v1717 = vunpack.c.l.b16 %v1148
        %v1718 = vunpack.c.h.b16 %v1148
        %v1719 = vunpack.c.l.b16 %v1149
        %v1720 = vunpack.c.h.b16 %v1149
        %v1721 = vunpack.c.l.b16 %v1150
        %v1722 = vunpack.c.h.b16 %v1150
        %v1723 = vunpack.c.l.b16 %v1151
        %v1724 = vunpack.c.h.b16 %v1151
        %v1725 = vunpack.c.l.b16 %v1152
        %v1726 = vunpack.c.h.b16 %v1152
        %v1727 = vunpack.c.l.b16 %v1153
        %v1728 = vunpack.c.h.b16 %v1153
        %v1729 = vunpack.c.l.b16 %v1154
        %v1730 = vunpack.c.h.b16 %v1154
        %v1731 = vunpack.c.l.b16 %v1155
        %v1732 = vunpack.c.h.b16 %v1155
        %v1733 = vunpack.c.l.b16 %v1156
        %v1734 = vunpack.c.h.b16 %v1156
        %v1735 = vunpack.c.l.b16 %v1157
        %v1736 = vunpack.c.h.b16 %v1157
        %v1737 = vunpack.c.l.b16 %v1158
        %v1738 = vunpack.c.h.b16 %v1158
        %v1739 = vunpack.c.l.b16 %v1159
        %v1740 = vunpack.c.h.b16 %v1159
        %v1741 = vunpack.c.l.b16 %v1160
        %v1742 = vunpack.c.h.b16 %v1160
        %v1743 = vunpack.c.l.b16 %v1161
        %v1744 = vunpack.c.h.b16 %v1161
        %v1745 = vunpack.c.l.b16 %v1162
        %v1746 = vunpack.c.h.b16 %v1162
        %v1747 = vunpack.c.l.b16 %v1163
        %v1748 = vunpack.c.h.b16 %v1163
        %v1749 = vunpack.c.l.b16 %v1164
        %v1750 = vunpack.c.h.b16 %v1164
        %v1751 = vunpack.c.l.b16 %v1165
        %v1752 = vunpack.c.h.b16 %v1165
        %v1753 = vunpack.c.l.b16 %v1166
        %v1754 = vunpack.c.h.b16 %v1166
        %v1755 = vunpack.c.l.b16 %v1167
        %v1756 = vunpack.c.h.b16 %v1167
        %v1757 = vunpack.c.l.b16 %v1168
        %v1758 = vunpack.c.h.b16 %v1168
        %v1759 = vunpack.c.l.b16 %v1169
        %v1760 = vunpack.c.h.b16 %v1169
        %v1761 = vunpack.c.l.b16 %v1170
        %v1762 = vunpack.c.h.b16 %v1170
        %v1763 = vunpack.c.l.b16 %v1171
        %v1764 = vunpack.c.h.b16 %v1171
        %v1765 = vunpack.c.l.b16 %v1172
        %v1766 = vunpack.c.h.b16 %v1172
        %v1767 = vunpack.c.l.b16 %v1173
        %v1768 = vunpack.c.h.b16 %v1173
        %v1769 = vunpack.c.l.b16 %v1174
        %v1770 = vunpack.c.h.b16 %v1174
        %v1771 = vunpack.c.l.b16 %v1175
        %v1772 = vunpack.c.h.b16 %v1175
        %v1773 = vunpack.c.l.b16 %v1176
        %v1774 = vunpack.c.h.b16 %v1176
        %v1775 = vunpack.c.l.b16 %v1177
        %v1776 = vunpack.c.h.b16 %v1177
        %v1777 = vunpack.c.l.b16 %v1178
        %v1778 = vunpack.c.h.b16 %v1178
        %v1779 = vunpack.c.l.b16 %v1179
        %v1780 = vunpack.c.h.b16 %v1179
        %v1781 = vunpack.c.l.b16 %v1180
        %v1782 = vunpack.c.h.b16 %v1180
        %v1783 = vunpack.c.l.b16 %v1181
        %v1784 = vunpack.c.h.b16 %v1181
        %v1785 = vunpack.c.l.b16 %v1182
        %v1786 = vunpack.c.h.b16 %v1182
        %v1787 = vunpack.c.l.b16 %v1183
        %v1788 = vunpack.c.h.b16 %v1183
        %v1789 = vunpack.c.l.b16 %v1184
        %v1790 = vunpack.c.h.b16 %v1184
        %v1791 = vunpack.c.l.b16 %v1185
        %v1792 = vunpack.c.h.b16 %v1185
        %v1793 = vunpack.c.l.b16 %v1186
        %v1794 = vunpack.c.h.b16 %v1186
        %v1795 = vunpack.c.l.b16 %v1187
        %v1796 = vunpack.c.h.b16 %v1187
        %v1797 = vunpack.c.l.b16 %v1188
        %v1798 = vunpack.c.h.b16 %v1188
        %v1799 = vunpack.c.l.b16 %v1189
        %v1800 = vunpack.c.h.b16 %v1189
        %v1801 = vunpack.c.l.b16 %v1190
        %v1802 = vunpack.c.h.b16 %v1190
        %v1803 = vunpack.c.l.b16 %v1191
        %v1804 = vunpack.c.h.b16 %v1191
        %v1805 = vpack.c.b16 %v1455, %v1453
        %v1806 = vpack.c.b16 %v1456, %v1454
        %v1807 = vpack.c.b16 %v1459, %v1457
        %v1808 = vpack.c.b16 %v1460, %v1458
        %v1809 = vpack.c.b16 %v1463, %v1461
        %v1810 = vpack.c.b16 %v1464, %v1462
        %v1811 = vpack.c.b16 %v1467, %v1465
        %v1812 = vpack.c.b16 %v1468, %v1466
        %v1813 = vpack.c.b16 %v1471, %v1469
        %v1814 = vpack.c.b16 %v1472, %v1470
        %v1815 = vpack.c.b16 %v1475, %v1473
        %v1816 = vpack.c.b16 %v1476, %v1474
        %v1817 = vpack.c.b16 %v1479, %v1477
        %v1818 = vpack.c.b16 %v1480, %v1478
        %v1819 = vpack.c.b16 %v1483, %v1481
        %v1820 = vpack.c.b16 %v1484, %v1482
        %v1821 = vpack.c.b16 %v1487, %v1485
        %v1822 = vpack.c.b16 %v1488, %v1486
        %v1823 = vpack.c.b16 %v1491, %v1489
        %v1824 = vpack.c.b16 %v1492, %v1490
        %v1825 = vpack.c.b16 %v1495, %v1493
        %v1826 = vpack.c.b16 %v1496, %v1494
        %v1827 = vpack.c.b16 %v1499, %v1497
        %v1828 = vpack.c.b16 %v1500, %v1498
        %v1829 = vpack.c.b16 %v1503, %v1501
        %v1830 = vpack.c.b16 %v1504, %v1502
        %v1831 = vpack.c.b16 %v1507, %v1505
        %v1832 = vpack.c.b16 %v1508, %v1506
        %v1833 = vpack.c.b16 %v1511, %v1509
        %v1834 = vpack.c.b16 %v1512, %v1510
        %v1835 = vpack.c.b16 %v1515, %v1513
        %v1836 = vpack.c.b16 %v1516, %v1514
        %v1837 = vpack.c.b16 %v1519, %v1517
        %v1838 = vpack.c.b16 %v1520, %v1518
        %v1839 = vpack.c.b16 %v1523, %v1521
        %v1840 = vpack.c.b16 %v1524, %v1522
        %v1841 = vpack.c.b16 %v1527, %v1525
        %v1842 = vpack.c.b16 %v1528, %v1526
        %v1843 = vpack.c.b16 %v1531, %v1529
        %v1844 = vpack.c.b16 %v1532, %v1530
        %v1845 = vpack.c.b16 %v1535, %v1533
        %v1846 = vpack.c.b16 %v1536, %v1534
        %v1847 = vpack.c.b16 %v1539, %v1537
        %v1848 = vpack.c.b16 %v1540, %v1538
        %v1849 = vpack.c.b16 %v1543, %v1541
        %v1850 = vpack.c.b16 %v1544, %v1542
        %v1851 = vpack.c.b16 %v1547, %v1545
        %v1852 = vpack.c.b16 %v1548, %v1546
        %v1853 = vpack.c.b16 %v1551, %v1549
        %v1854 = vpack.c.b16 %v1552, %v1550
        %v1855 = vpack.c.b16 %v1555, %v1553
        %v1856 = vpack.c.b16 %v1556, %v1554
        %v1857 = vpack.c.b16 %v1559, %v1557
        %v1858 = vpack.c.b16 %v1560, %v1558
        %v1859 = vpack.c.b16 %v1563, %v1561
        %v1860 = vpack.c.b16 %v1564, %v1562
        %v1861 = vpack.c.b16 %v1567, %v1565
        %v1862 = vpack.c.b16 %v1568, %v1566
        %v1863 = vpack.c.b16 %v1571, %v1569
        %v1864 = vpack.c.b16 %v1572, %v1570
        %v1865 = vpack.c.b16 %v1575, %v1573
        %v1866 = vpack.c.b16 %v1576, %v1574
        %v1867 = vpack.c.b16 %v1579, %v1577
        %v1868 = vpack.c.b16 %v1580, %v1578
        %v1869 = vpack.c.b16 %v1583, %v1581
        %v1870 = vpack.c.b16 %v1584, %v1582
        %v1871 = vpack.c.b16 %v1587, %v1585
        %v1872 = vpack.c.b16 %v1588, %v1586
        %v1873 = vpack.c.b16 %v1591, %v1589
        %v1874 = vpack.c.b16 %v1592, %v1590
        %v1875 = vpack.c.b16 %v1595, %v1593
        %v1876 = vpack.c.b16 %v1596, %v1594
        %v1877 = vpack.c.b16 %v1599, %v1597
        %v1878 = vpack.c.b16 %v1600, %v1598
        %v1879 = vpack.c.b16 %v1603, %v1601
        %v1880 = vpack.c.b16 %v1604, %v1602
        %v1881 = vpack.c.b16 %v1607, %v1605
        %v1882 = vpack.c.b16 %v1608, %v1606
        %v1883 = vpack.c.b16 %v1611, %v1609
        %v1884 = vpack.c.b16 %v1612, %v1610
        %v1885 = vpack.c.b16 %v1615, %v1613
        %v1886 = vpack.c.b16 %v1616, %v1614
        %v1887 = vpack.c.b16 %v1619, %v1617
        %v1888 = vpack.c.b16 %v1620, %v1618
        %v1889 = vpack.c.b16 %v1623, %v1621
        %v1890 = vpack.c.b16 %v1624, %v1622
        %v1891 = vpack.c.b16 %v1627, %v1625
        %v1892 = vpack.c.b16 %v1628, %v1626
        %v1893 = vpack.c.b16 %v1631, %v1629
        %v1894 = vpack.c.b16 %v1632, %v1630
        %v1895 = vpack.c.b16 %v1635, %v1633
        %v1896 = vpack.c.b16 %v1636, %v1634
        %v1897 = vpack.c.b16 %v1639, %v1637
        %v1898 = vpack.c.b16 %v1640, %v1638
        %v1899 = vpack.c.b16 %v1643, %v1641
        %v1900 = vpack.c.b16 %v1644, %v1642
        %v1901 = vpack.c.b16 %v1647, %v1645
        %v1902 = vpack.c.b16 %v1648, %v1646
        %v1903 = vpack.c.b16 %v1651, %v1649
        %v1904 = vpack.c.b16 %v1652, %v1650
        %v1905 = vpack.c.b16 %v1655, %v1653
        %v1906 = vpack.c.b16 %v1656, %v1654
        %v1907 = vpack.c.b16 %v1659, %v1657
        %v1908 = vpack.c.b16 %v1660, %v1658
        %v1909 = vpack.c.b16 %v1663, %v1661
        %v1910 = vpack.c.b16 %v1664, %v1662
        %v1911 = vpack.c.b16 %v1667, %v1665
        %v1912 = vpack.c.b16 %v1668, %v1666
        %v1913 = vpack.c.b16 %v1671, %v1669
        %v1914 = vpack.c.b16 %v1672, %v1670
        %v1915 = vpack.c.b16 %v1675, %v1673
        %v1916 = vpack.c.b16 %v1676, %v1674
        %v1917 = vpack.c.b16 %v1679, %v1677
        %v1918 = vpack.c.b16 %v1680, %v1678
        %v1919 = vpack.c.b16 %v1683, %v1681
        %v1920 = vpack.c.b16 %v1684, %v1682
        %v1921 = vpack.c.b16 %v1687, %v1685
        %v1922 = vpack.c.b16 %v1688, %v1686
        %v1923 = vpack.c.b16 %v1691, %v1689
        %v1924 = vpack.c.b16 %v1692, %v1690
        %v1925 = vpack.c.b16 %v1695, %v1693
        %v1926 = vpack.c.b16 %v1696, %v1694
        %v1927 = vpack.c.b16 %v1699, %v1697
        %v1928 = vpack.c.b16 %v1700, %v1698
        %v1929 = vpack.c.b16 %v1703, %v1701
        %v1930 = vpack.c.b16 %v1704, %v1702
        %v1931 = vpack.c.b16 %v1707, %v1705
        %v1932 = vpack.c.b16 %v1708, %v1706
        %v1933 = vpack.c.b16 %v1711, %v1709
        %v1934 = vpack.c.b16 %v1712, %v1710
        %v1935 = vpack.c.b16 %v1715, %v1713
        %v1936 = vpack.c.b16 %v1716, %v1714
        %v1937 = vpack.c.b16 %v1719, %v1717
        %v1938 = vpack.c.b16 %v1720, %v1718
        %v1939 = vpack.c.b16 %v1723, %v1721
        %v1940 = vpack.c.b16 %v1724, %v1722
        %v1941 = vpack.c.b16 %v1727, %v1725
        %v1942 = vpack.c.b16 %v1728, %v1726
        %v1943 = vpack.c.b16 %v1731, %v1729
        %v1944 = vpack.c.b16 %v1732, %v1730
        %v1945 = vpack.c.b16 %v1735, %v1733
        %v1946 = vpack.c.b16 %v1736, %v1734
        %v1947 = vpack.c.b16 %v1739, %v1737
        %v1948 = vpack.c.b16 %v1740, %v1738
        %v1949 = vpack.c.b16 %v1743, %v1741
        %v1950 = vpack.c.b16 %v1744, %v1742
        %v1951 = vpack.c.b16 %v1747, %v1745
        %v1952 = vpack.c.b16 %v1748, %v1746
        %v1953 = vpack.c.b16 %v1751, %v1749
        %v1954 = vpack.c.b16 %v1752, %v1750
        %v1955 = vpack.c.b16 %v1755, %v1753
        %v1956 = vpack.c.b16 %v1756, %v1754
        %v1957 = vpack.c.b16 %v1759, %v1757
        %v1958 = vpack.c.b16 %v1760, %v1758
        %v1959 = vpack.c.b16 %v1763, %v1761
        %v1960 = vpack.c.b16 %v1764, %v1762
        %v1961 = vpack.c.b16 %v1767, %v1765
        %v1962 = vpack.c.b16 %v1768, %v1766
        %v1963 = vpack.c.b16 %v1771, %v1769
        %v1964 = vpack.c.b16 %v1772, %v1770
        %v1965 = vpack.c.b16 %v1775, %v1773
        %v1966 = vpack.c.b16 %v1776, %v1774
        %v1967 = vpack.c.b16 %v1779, %v1777
        %v1968 = vpack.c.b16 %v1780, %v1778
        %v1969 = vpack.c.b16 %v1783, %v1781
        %v1970 = vpack.c.b16 %v1784, %v1782
        %v1971 = vpack.c.b16 %v1787, %v1785
        %v1972 = vpack.c.b16 %v1788, %v1786
        %v1973 = vpack.c.b16 %v1791, %v1789
        %v1974 = vpack.c.b16 %v1792, %v1790
        %v1975 = vpack.c.b16 %v1795, %v1793
        %v1976 = vpack.c.b16 %v1796, %v1794
        %v1977 = vpack.c.b16 %v1799, %v1797
        %v1978 = vpack.c.b16 %v1800, %v1798
        %v1979 = vpack.c.b16 %v1803, %v1801
        %v1980 = vpack.c.b16 %v1804, %v1802
        %2157 = vmatprep.subr.bf16.mxu0 %v1806
        %2158 = vmatpush1.bf16.msra.mxu0 %v1805
        %2159 = vmatprep.subr.bf16.mxu0 %v1808
        %2160 = vmatpush1.bf16.msra.mxu0 %v1807
        %2161 = vmatprep.subr.bf16.mxu0 %v1810
        %2162 = vmatpush1.bf16.msra.mxu0 %v1809
        %2163 = vmatprep.subr.bf16.mxu0 %v1812
        %2164 = vmatpush1.bf16.msra.mxu0 %v1811
        %2165 = vmatprep.subr.bf16.mxu0 %v1814
        %2166 = vmatpush1.bf16.msra.mxu0 %v1813
        %2167 = vmatprep.subr.bf16.mxu0 %v1816
        %2168 = vmatpush1.bf16.msra.mxu0 %v1815
        %2169 = vmatprep.subr.bf16.mxu0 %v1818
        %2170 = vmatpush1.bf16.msra.mxu0 %v1817
        %2171 = vmatprep.subr.bf16.mxu0 %v1820
        %2172 = vmatpush1.bf16.msra.mxu0 %v1819
        %2173 = vmatprep.subr.bf16.mxu0 %v1822
        %2174 = vmatpush1.bf16.msra.mxu0 %v1821
        %2175 = vmatprep.subr.bf16.mxu0 %v1824
        %2176 = vmatpush1.bf16.msra.mxu0 %v1823
        %2177 = vmatprep.subr.bf16.mxu0 %v1826
        %2178 = vmatpush1.bf16.msra.mxu0 %v1825
        %2179 = vmatprep.subr.bf16.mxu0 %v1828
        %2180 = vmatpush1.bf16.msra.mxu0 %v1827
        %2181 = vmatprep.subr.bf16.mxu0 %v1830
        %2182 = vmatpush1.bf16.msra.mxu0 %v1829
        %2183 = vmatprep.subr.bf16.mxu0 %v1832
        %2184 = vmatpush1.bf16.msra.mxu0 %v1831
        %2185 = vmatprep.subr.bf16.mxu0 %v1834
        %2186 = vmatpush1.bf16.msra.mxu0 %v1833
        %2187 = vmatprep.subr.bf16.mxu0 %v1836
        %2188 = vmatpush1.bf16.msra.mxu0 %v1835
        %2189 = vmatprep.mubr.bf16.mxu0 %v1231
        %2190 = vmatmul.mubr.bf16.gmra.mrb[0].mxu0 %v1217
        %v2191 = vpop.f32.mrb[0].mxu0
        %v2192 = vadd.f32 0.0, %v2191
        %v2193 = vpop.f32.mrb[0].mxu0
        %v2194 = vadd.f32 0.0, %v2193
        %v2195 = vpop.f32.mrb[0].mxu0
        %v2196 = vpop.f32.mrb[0].mxu0
        %2197 = vdwg.mxu0
        %2198 = vmatprep.subr.bf16.mxu0 %v1838
        %2199 = vmatpush1.bf16.msra.mxu0 %v1837
        %2200 = vmatprep.subr.bf16.mxu0 %v1840
        %2201 = vmatpush1.bf16.msra.mxu0 %v1839
        %2202 = vmatprep.subr.bf16.mxu0 %v1842
        %2203 = vmatpush1.bf16.msra.mxu0 %v1841
        %2204 = vmatprep.subr.bf16.mxu0 %v1844
        %2205 = vmatpush1.bf16.msra.mxu0 %v1843
        %2206 = vmatprep.subr.bf16.mxu0 %v1846
        %2207 = vmatpush1.bf16.msra.mxu0 %v1845
        %2208 = vmatprep.subr.bf16.mxu0 %v1848
        %2209 = vmatpush1.bf16.msra.mxu0 %v1847
        %2210 = vmatprep.subr.bf16.mxu0 %v1850
        %2211 = vmatpush1.bf16.msra.mxu0 %v1849
        %2212 = vmatprep.subr.bf16.mxu0 %v1852
        %2213 = vmatpush1.bf16.msra.mxu0 %v1851
        %2214 = vmatprep.subr.bf16.mxu0 %v1854
        %2215 = vmatpush1.bf16.msra.mxu0 %v1853
        %2216 = vmatprep.subr.bf16.mxu0 %v1856
        %2217 = vmatpush1.bf16.msra.mxu0 %v1855
        %2218 = vmatprep.subr.bf16.mxu0 %v1858
        %2219 = vmatpush1.bf16.msra.mxu0 %v1857
        %2220 = vmatprep.subr.bf16.mxu0 %v1860
        %2221 = vmatpush1.bf16.msra.mxu0 %v1859
        %2222 = vmatprep.subr.bf16.mxu0 %v1862
        %2223 = vmatpush1.bf16.msra.mxu0 %v1861
        %2224 = vmatprep.subr.bf16.mxu0 %v1864
        %2225 = vmatpush1.bf16.msra.mxu0 %v1863
        %2226 = vmatprep.subr.bf16.mxu0 %v1866
        %2227 = vmatpush1.bf16.msra.mxu0 %v1865
        %2228 = vmatprep.subr.bf16.mxu0 %v1868
        %2229 = vmatpush1.bf16.msra.mxu0 %v1867
        %2230 = vmatprep.mubr.bf16.mxu0 %v1241
        %2231 = vmatmul.mubr.bf16.gmra.mrb[0].mxu0 %v1239
        %v2232 = vpop.f32.mrb[0].mxu0
        %v2233 = vadd.f32 %v2192, %v2232
        %v2234 = vpop.f32.mrb[0].mxu0
        %v2235 = vadd.f32 %v2194, %v2234
        %v2236 = vpop.f32.mrb[0].mxu0
        %v2237 = vpop.f32.mrb[0].mxu0
        %2238 = vdwg.mxu0
        %2239 = vmatprep.subr.bf16.mxu0 %v1870
        %2240 = vmatpush1.bf16.msra.mxu0 %v1869
        %2241 = vmatprep.subr.bf16.mxu0 %v1872
        %2242 = vmatpush1.bf16.msra.mxu0 %v1871
        %2243 = vmatprep.subr.bf16.mxu0 %v1874
        %2244 = vmatpush1.bf16.msra.mxu0 %v1873
        %2245 = vmatprep.subr.bf16.mxu0 %v1876
        %2246 = vmatpush1.bf16.msra.mxu0 %v1875
        %2247 = vmatprep.subr.bf16.mxu0 %v1878
        %2248 = vmatpush1.bf16.msra.mxu0 %v1877
        %2249 = vmatprep.subr.bf16.mxu0 %v1880
        %2250 = vmatpush1.bf16.msra.mxu0 %v1879
        %2251 = vmatprep.subr.bf16.mxu0 %v1882
        %2252 = vmatpush1.bf16.msra.mxu0 %v1881
        %2253 = vmatprep.subr.bf16.mxu0 %v1884
        %2254 = vmatpush1.bf16.msra.mxu0 %v1883
        %2255 = vmatprep.subr.bf16.mxu0 %v1886
        %2256 = vmatpush1.bf16.msra.mxu0 %v1885
        %2257 = vmatprep.subr.bf16.mxu0 %v1888
        %2258 = vmatpush1.bf16.msra.mxu0 %v1887
        %2259 = vmatprep.subr.bf16.mxu0 %v1890
        %2260 = vmatpush1.bf16.msra.mxu0 %v1889
        %2261 = vmatprep.subr.bf16.mxu0 %v1892
        %2262 = vmatpush1.bf16.msra.mxu0 %v1891
        %2263 = vmatprep.subr.bf16.mxu0 %v1894
        %2264 = vmatpush1.bf16.msra.mxu0 %v1893
        %2265 = vmatprep.subr.bf16.mxu0 %v1896
        %2266 = vmatpush1.bf16.msra.mxu0 %v1895
        %2267 = vmatprep.subr.bf16.mxu0 %v1898
        %2268 = vmatpush1.bf16.msra.mxu0 %v1897
        %2269 = vmatprep.subr.bf16.mxu0 %v1900
        %2270 = vmatpush1.bf16.msra.mxu0 %v1899
        %2271 = vmatprep.mubr.bf16.mxu0 %v1238
        %2272 = vmatmul.mubr.bf16.gmra.mrb[0].mxu0 %v1224
        %v2273 = vpop.f32.mrb[0].mxu0
        %v2274 = vadd.f32 %v2233, %v2273
        %v2275 = vpop.f32.mrb[0].mxu0
        %v2276 = vadd.f32 %v2235, %v2275
        %v2277 = vpop.f32.mrb[0].mxu0
        %v2278 = vpop.f32.mrb[0].mxu0
        %2279 = vdwg.mxu0
        %2280 = vmatprep.subr.bf16.mxu0 %v1902
        %2281 = vmatpush1.bf16.msra.mxu0 %v1901
        %2282 = vmatprep.subr.bf16.mxu0 %v1904
        %2283 = vmatpush1.bf16.msra.mxu0 %v1903
        %2284 = vmatprep.subr.bf16.mxu0 %v1906
        %2285 = vmatpush1.bf16.msra.mxu0 %v1905
        %2286 = vmatprep.subr.bf16.mxu0 %v1908
        %2287 = vmatpush1.bf16.msra.mxu0 %v1907
        %2288 = vmatprep.subr.bf16.mxu0 %v1910
        %2289 = vmatpush1.bf16.msra.mxu0 %v1909
        %2290 = vmatprep.subr.bf16.mxu0 %v1912
        %2291 = vmatpush1.bf16.msra.mxu0 %v1911
        %2292 = vmatprep.subr.bf16.mxu0 %v1914
        %2293 = vmatpush1.bf16.msra.mxu0 %v1913
        %2294 = vmatprep.subr.bf16.mxu0 %v1916
        %2295 = vmatpush1.bf16.msra.mxu0 %v1915
        %2296 = vmatprep.subr.bf16.mxu0 %v1918
        %2297 = vmatpush1.bf16.msra.mxu0 %v1917
        %2298 = vmatprep.subr.bf16.mxu0 %v1920
        %2299 = vmatpush1.bf16.msra.mxu0 %v1919
        %2300 = vmatprep.subr.bf16.mxu0 %v1922
        %2301 = vmatpush1.bf16.msra.mxu0 %v1921
        %2302 = vmatprep.subr.bf16.mxu0 %v1924
        %2303 = vmatpush1.bf16.msra.mxu0 %v1923
        %2304 = vmatprep.subr.bf16.mxu0 %v1926
        %2305 = vmatpush1.bf16.msra.mxu0 %v1925
        %2306 = vmatprep.subr.bf16.mxu0 %v1928
        %2307 = vmatpush1.bf16.msra.mxu0 %v1927
        %2308 = vmatprep.subr.bf16.mxu0 %v1930
        %2309 = vmatpush1.bf16.msra.mxu0 %v1929
        %2310 = vmatprep.subr.bf16.mxu0 %v1932
        %2311 = vmatpush1.bf16.msra.mxu0 %v1931
        %2312 = vmatprep.mubr.bf16.mxu0 %v1242
        %2313 = vmatmul.mubr.bf16.gmra.mrb[0].mxu0 %v1240
        %v2314 = vpop.f32.mrb[0].mxu0
        %v2315 = vadd.f32 %v2274, %v2314
        %v2316 = vpop.f32.mrb[0].mxu0
        %v2317 = vadd.f32 %v2276, %v2316
        %v2318 = vpop.f32.mrb[0].mxu0
        %v2319 = vpop.f32.mrb[0].mxu0
        %2320 = vdwg.mxu0
        %2321 = vmatprep.subr.bf16.mxu0 %v1934
        %2322 = vmatpush1.bf16.msra.mxu0 %v1933
        %2323 = vmatprep.subr.bf16.mxu0 %v1936
        %2324 = vmatpush1.bf16.msra.mxu0 %v1935
        %2325 = vmatprep.subr.bf16.mxu0 %v1938
        %2326 = vmatpush1.bf16.msra.mxu0 %v1937
        %2327 = vmatprep.subr.bf16.mxu0 %v1940
        %2328 = vmatpush1.bf16.msra.mxu0 %v1939
        %2329 = vmatprep.subr.bf16.mxu0 %v1942
        %2330 = vmatpush1.bf16.msra.mxu0 %v1941
        %2331 = vmatprep.subr.bf16.mxu0 %v1944
        %2332 = vmatpush1.bf16.msra.mxu0 %v1943
        %2333 = vmatprep.subr.bf16.mxu0 %v1946
        %2334 = vmatpush1.bf16.msra.mxu0 %v1945
        %2335 = vmatprep.subr.bf16.mxu0 %v1948
        %2336 = vmatpush1.bf16.msra.mxu0 %v1947
        %2337 = vmatprep.subr.bf16.mxu0 %v1950
        %2338 = vmatpush1.bf16.msra.mxu0 %v1949
        %2339 = vmatprep.subr.bf16.mxu0 %v1952
        %2340 = vmatpush1.bf16.msra.mxu0 %v1951
        %2341 = vmatprep.subr.bf16.mxu0 %v1954
        %2342 = vmatpush1.bf16.msra.mxu0 %v1953
        %2343 = vmatprep.subr.bf16.mxu0 %v1956
        %2344 = vmatpush1.bf16.msra.mxu0 %v1955
        %2345 = vmatprep.subr.bf16.mxu0 %v1958
        %2346 = vmatpush1.bf16.msra.mxu0 %v1957
        %2347 = vmatprep.subr.bf16.mxu0 %v1960
        %2348 = vmatpush1.bf16.msra.mxu0 %v1959
        %2349 = vmatprep.subr.bf16.mxu0 %v1962
        %2350 = vmatpush1.bf16.msra.mxu0 %v1961
        %2351 = vmatprep.subr.bf16.mxu0 %v1964
        %2352 = vmatpush1.bf16.msra.mxu0 %v1963
        %2353 = vmatprep.mubr.bf16.mxu0 %v1264
        %2354 = vmatmul.mubr.bf16.gmra.mrb[0].mxu0 %v1257
        %v2355 = vpop.f32.mrb[0].mxu0
        %v2356 = vadd.f32 %v2315, %v2355
        %v2357 = vpop.f32.mrb[0].mxu0
        %v2358 = vadd.f32 %v2317, %v2357
        %v2359 = vpop.f32.mrb[0].mxu0
        %v2360 = vpop.f32.mrb[0].mxu0
        %2361 = vdwg.mxu0
        %2362 = vmatprep.subr.bf16.mxu0 %v1966
        %2363 = vmatpush1.bf16.msra.mxu0 %v1965
        %2364 = vmatprep.subr.bf16.mxu0 %v1968
        %2365 = vmatpush1.bf16.msra.mxu0 %v1967
        %2366 = vmatprep.subr.bf16.mxu0 %v1970
        %2367 = vmatpush1.bf16.msra.mxu0 %v1969
        %2368 = vmatprep.subr.bf16.mxu0 %v1972
        %2369 = vmatpush1.bf16.msra.mxu0 %v1971
        %2370 = vmatprep.subr.bf16.mxu0 %v1974
        %2371 = vmatpush1.bf16.msra.mxu0 %v1973
        %2372 = vmatprep.subr.bf16.mxu0 %v1976
        %2373 = vmatpush1.bf16.msra.mxu0 %v1975
        %2374 = vmatprep.subr.bf16.mxu0 %v1978
        %2375 = vmatpush1.bf16.msra.mxu0 %v1977
        %2376 = vmatprep.subr.bf16.mxu0 %v1980
        %2377 = vmatpush1.bf16.msra.mxu0 %v1979
        %2378 = vmatprep.subr.bf16.mxu0 0
        %2379 = vmatpush1.bf16.msra.mxu0 0
        %2380 = vmatprep.subr.bf16.mxu0 0
        %2381 = vmatpush1.bf16.msra.mxu0 0
        %2382 = vmatprep.subr.bf16.mxu0 0
        %2383 = vmatpush1.bf16.msra.mxu0 0
        %2384 = vmatprep.subr.bf16.mxu0 0
        %2385 = vmatpush1.bf16.msra.mxu0 0
        %2386 = vmatprep.subr.bf16.mxu0 0
        %2387 = vmatpush1.bf16.msra.mxu0 0
        %2388 = vmatprep.subr.bf16.mxu0 0
        %2389 = vmatpush1.bf16.msra.mxu0 0
        %2390 = vmatprep.subr.bf16.mxu0 0
        %2391 = vmatpush1.bf16.msra.mxu0 0
        %2392 = vmatprep.subr.bf16.mxu0 0
        %2393 = vmatpush1.bf16.msra.mxu0 0
        %2394 = vmatprep.mubr.bf16.mxu0 0
        %2395 = vmatmul.mubr.bf16.gmra.mrb[0].mxu0 %v1265
        %v2396 = vpop.f32.mrb[0].mxu0
        %v2397 = vadd.f32 %v2356, %v2396
        %v2398 = vpop.f32.mrb[0].mxu0
        %v2399 = vadd.f32 %v2358, %v2398
        %v2400 = vpop.f32.mrb[0].mxu0
        %v2401 = vpop.f32.mrb[0].mxu0
        %2402 = vdwg.mxu0
        %v2405 = vcombine.low %v2397, %v2399
        %v2407 = vunpack.c.l.s4 1983009808
        %v2408 = vunpack.c.0.s8 %v2407
        %v2409 = vlaneseq
        %v2410 = vshrl.u32 %v2409, 7
        %v2411 = vsub.s32 %v2408, %v2410
        %v2412 = vrot.slane %v2405, %v2411
        %v2414 = vadd.f32 %v1013, %v2412
        %2415 = vst [vmem:[#allocation2] sm:$0xf] %v2414
        %p2416 = scmp.eq.s32.totalorder %s20, 3
        // Predicated region
        $region79: #{v_net_forward.3} parent=69 // pred_check
          %p2417 = pneg %p2416
        $region80: #{v_net_forward.3} parent=69 // pred_check_branch
          %2419 = sbr.rel (%p2417) target = $region82
        $region81: #{v_net_forward.3} parent=69 // pred_region
          %v2420 = vld [vmem:[#allocation2] sm:$0xf]
          %v2421 = vld [vmem:[%s996] sm:$0x3]
          %v2423 = vlaneseq
          %v2424 = vshrl.u32 %v2423, 7
          %v2425 = vsub.s32 0, %v2424
          %v2426 = vrot.slane %v2421, %v2425
          %v2427 = vlaneseq
          %v2428 = vshrl.u32 %v2427, 7
          %v2429 = vsub.s32 1, %v2428
          %v2430 = vrot.slane %v2421, %v2429
          %v2431 = vcombine.low %v2426, %v2430
          %v2433 = vunpack.c.l.s4 1983009808
          %v2434 = vunpack.c.0.s8 %v2433
          %v2435 = vlaneseq
          %v2436 = vshrl.u32 %v2435, 7
          %v2437 = vsub.s32 %v2434, %v2436
          %v2438 = vrot.slane %v2431, %v2437
          %v2440 = vadd.f32 %v2420, %v2438
          %v2441 = vmax.f32 %v2440, 0.0
          %v2442 = vld [vmem:[%s1001] sm:$0x3]
          %v2444 = vlaneseq
          %v2445 = vshrl.u32 %v2444, 7
          %v2446 = vsub.s32 0, %v2445
          %v2447 = vrot.slane %v2442, %v2446
          %v2448 = vlaneseq
          %v2449 = vshrl.u32 %v2448, 7
          %v2450 = vsub.s32 1, %v2449
          %v2451 = vrot.slane %v2442, %v2450
          %v2452 = vcombine.low %v2447, %v2451
          %v2454 = vunpack.c.l.s4 1983009808
          %v2455 = vunpack.c.0.s8 %v2454
          %v2456 = vlaneseq
          %v2457 = vshrl.u32 %v2456, 7
          %v2458 = vsub.s32 %v2455, %v2457
          %v2459 = vrot.slane %v2452, %v2458
          %v2461 = vmul.f32 %v2441, %v2459
          %v2464 = vunpack.c.l.s4 1983009808
          %v2465 = vunpack.c.0.s8 %v2464
          %v2466 = vlaneseq
          %v2467 = vshrl.u32 %v2466, 7
          %v2468 = vsub.s32 %v2465, %v2467
          %v2469 = vrot.slane %v2461, %v2468
          %v2470 = vcombine.high %v2469, %v2469
          %vm2473 = vcmask 1041408
          %v2474 = vsel %vm2473, %v2469, 0.0
          %v2475 = vsel %vm2473, %v2470, 0.0
          %v2476 = vadd.f32 %v2474, %v2475
          %2477 = vadd.xlane.f32.xlu0 %v2476
          %v2478 = vpop.xlane.xlu0 %2477
          %vm2479 = vcmask 1024
          %2480 = vst.msk [vmem:[%s1006] sm:$0x3] %vm2479, %v2478
        $region82: #{v_net_forward.3} parent=69 // pred_fallthru
          _
        %p2481 = scmp.lt.s32.totalorder %s19, 1
        %s2482 = scalar_select %p2481, %s19, 1
        %s2483 = smul.addr %s2482, 2
        %s2484 = scalar_lea.vmem %s4, %s2483
        // Predicated region
        $region83: #{v_net_forward.3} parent=69 // pred_check
          %p2485 = pneg %p151
        $region84: #{v_net_forward.3} parent=69 // pred_check_branch
          %2487 = sbr.rel (%p2485) target = $region86
        $region85: #{v_net_forward.3} parent=69 // pred_region
          _
        $region86: #{v_net_forward.3} parent=69 // pred_fallthru
          _
      $region70: #{v_net_forward.3} parent=5 // pred_fallthru
        _
      %p2488 = scmp.le.s32.totalorder 2, %s10
      // Predicated region
      $region87: #{v_net_forward.3} parent=5 // pred_check
        %p2489 = pneg %p2488
      $region88: #{v_net_forward.3} parent=5 // pred_check_branch
        %2491 = sbr.rel (%p2489) target = $region90
      $region89: #{v_net_forward.3} parent=5 // pred_region
        %s2492 = ssub.s32 %s10, 2
        // Predicated region
        $region91: #{v_net_forward.3} parent=89 // pred_check
          %p2493 = pneg %p157
        $region92: #{v_net_forward.3} parent=89 // pred_check_branch
          %2495 = sbr.rel (%p2493) target = $region94
        $region93: #{v_net_forward.3} parent=89 // pred_region
          %p2496 = scmp.lt.s32.totalorder %s21, 1
          %s2497 = scalar_select %p2496, %s21, 1
          %s2498 = smul.addr %s2497, 2
          %s2499 = scalar_lea.vmem %s4, %s2498
        $region94: #{v_net_forward.3} parent=89 // pred_fallthru
          _
      $region90: #{v_net_forward.3} parent=5 // pred_fallthru
        _
    $region6: #{v_net_forward.3} parent=1 // loop_footer
      %s14 = sadd.s32 1, %s10
    $region7: #{v_net_forward.3} parent=1 // loop_footer_branch
      %9 = sbr.rel target = $region3
    $region8: #{v_net_forward.3} parent=1 // loop_exit
      _

</llo_original>
